<compile_context>
chip_gen: v5e
topology: v5e:2x2
jax: 0.10.0
libtpu: 0.0.40
codegen_flags: <defaults>
</compile_context>

<pallas_src>
import jax
import jax.numpy as jnp
from jax.experimental import pallas as pl
from jax.experimental.pallas import tpu as pltpu

BN_EPS = 1e-5     # torch.nn.BatchNorm1d default eps
POOL_EPS = 1e-7   # HGBlock.eps
NUM_REL = 9       # number of relation slots (adjacency matrices)

# Set to jnp.bfloat16 on v6e/v7x for ~4x MXU throughput at production sizes
# (BN / residual math stays in f32 either way).
MXU_DTYPE = jnp.float32


# ----------------------------------------------------------------------------- kernels

def hg_fused_kernel(xT_ref, gmbarT_ref, gmtilde_ref, coef_ref,
                    w1t_ref, weff_ref, w2t_ref, xu_ref):
    """pool -> 3x HGResidualBlock -> unpool, everything resident in VMEM.

    xT:      (B, N, C)   input pixels, channel-last
    gmbarT:  (B, G, N)   pooling matrix (transposed)
    gmtilde: (B, N, G)   unpooling matrix
    coef:    (B, 9G, G)  pre-permuted coef matrix (see wrapper)
    w1t:     (L, C, C)   dense1 weights, transposed
    weff:    (L*9, C, C) folded graph-conv weight slices W_m
    w2t:     (L, C, C)   dense2 weights, transposed
    xu:      (B, N, C)   unpooled output (pre output-conv)
    """
    B, N, C = xT_ref.shape
    G = gmbarT_ref.shape[1]
    L = w1t_ref.shape[0]
    K = NUM_REL

    def mm(a, b):
        return jnp.dot(a.astype(MXU_DTYPE), b.astype(MXU_DTYPE),
                       preferred_element_type=jnp.float32)

    def group_bn(h2):
        # training-mode BatchNorm1d(G): per-group stats over (batch, feature),
        # single pass (sum and sum-of-squares), biased variance.
        s = jnp.zeros((G, 1), jnp.float32)
        q = jnp.zeros((G, 1), jnp.float32)
        for b in range(B):
            blk = h2[b * G:(b + 1) * G, :]
            s = s + jnp.sum(blk, axis=1, keepdims=True)
            q = q + jnp.sum(blk * blk, axis=1, keepdims=True)
        denom = float(B * C)
        mean = s / denom
        var = q / denom - mean * mean
        inv = jax.lax.rsqrt(var + BN_EPS)
        mean_f = jnp.concatenate([mean] * B, axis=0)     # (B*G, 1)
        inv_f = jnp.concatenate([inv] * B, axis=0)
        return (h2 - mean_f) * inv_f

    # ---- pooling: xp[b] = gm_barT[b] @ xT[b] -> stacked as (B*G, C)
    x2 = jnp.concatenate([mm(gmbarT_ref[b], xT_ref[b]) for b in range(B)], axis=0)

    # ---- residual blocks
    for l in range(L):
        w1t = w1t_ref[l]
        w2t = w2t_ref[l]

        # dense1 (single (B*G,C) matmul) + bn1 + relu
        h2 = jnp.maximum(group_bn(mm(x2, w1t)), 0.0)

        # graph conv: tile-x9 folded into weff; coef applied before the weight slots:
        #   s[b] = sum_m (coef_r[b,m] @ h[b]) @ W_m        (all slices sublane-aligned)
        parts = []
        for b in range(B):
            hb = h2[b * G:(b + 1) * G, :]                 # (G, C)
            p2 = mm(coef_ref[b], hb)                      # (9G, C)
            acc = jnp.zeros((G, C), jnp.float32)
            for m in range(K):
                acc = acc + mm(p2[m * G:(m + 1) * G, :], weff_ref[l * K + m])
            parts.append(acc)
        s2 = jnp.concatenate(parts, axis=0)               # (B*G, C)

        # bn2 + relu, dense2, bn3, residual, relu
        o2 = jnp.maximum(group_bn(s2), 0.0)
        d2 = group_bn(mm(o2, w2t))
        x2 = jnp.maximum(d2 + x2, 0.0)

    # ---- unpooling: xu[b] = gm_tilde[b] @ x[b]
    for b in range(B):
        xu_ref[b] = mm(gmtilde_ref[b], x2[b * G:(b + 1) * G, :])


def conv_out_kernel(ximg_ref, xin_ref, wa_ref, wb_ref, b_ref, y_ref):
    # 1x1 output conv with the channel-concat folded into a weight split:
    #   y = x_img_T @ Wa + x_in_T @ Wb + bias
    # blocks: ximg (1,N,C)  xin (1,N,C)  wa (C,C)  wb (C,C)  bias (1,C)  y (1,N,C)
    y = (jnp.dot(ximg_ref[0].astype(MXU_DTYPE), wa_ref[...].astype(MXU_DTYPE),
                 preferred_element_type=jnp.float32)
         + jnp.dot(xin_ref[0].astype(MXU_DTYPE), wb_ref[...].astype(MXU_DTYPE),
                   preferred_element_type=jnp.float32)
         + b_ref[...])
    y_ref[0] = y


# ------------------------------------------------------------------------ forward glue

def _grouping(B, N, G):
    # TODO(synk): deterministic stand-in for ssn_iter-based grouping.
    base = (jnp.arange(N) * G) // N
    labels = (base[None, :] + jnp.arange(B)[:, None]) % G                    # (B, N)
    return jnp.eye(G, dtype=jnp.float32)[labels]                             # (B, N, G)


def make_coef_matrix(group_matrix, adj_mats):
    adj = adj_mats[None]                                                     # (1, 9, N, N)
    gm = group_matrix[:, None]                                               # (B, 1, N, G)
    gam = jnp.swapaxes(jnp.matmul(adj, gm), 2, 3) @ gm                       # (B, 9, G, G)
    den = jnp.maximum(gam - jnp.flip(gam, axis=0), 0.0)   # flip over batch, as in torch src
    den = den.at[:, 3].set(gam[:, 3])                     # slot index 3, as in torch src
    scale = 1.0 / (jnp.sum(gam, axis=3, keepdims=True) + 1.0)
    return den * scale


def prepare_params(blocks, conv_w, conv_b):
    """Hoisted, one-time weight transforms (transposes + x9-tiling fold + conv split)."""
    C = blocks[0]["w1"].shape[0]
    w1t = jnp.stack([p["w1"].T for p in blocks])                             # (L, C, C)
    w2t = jnp.stack([p["w2"].T for p in blocks])                             # (L, C, C)
    weff = []
    for p in blocks:
        # tile(x, 9) @ Wg.T == x @ w_eff,  w_eff = sum of 9 row blocks of Wg.T
        w_eff = p["wg"].T.reshape(NUM_REL, C, NUM_REL * C).sum(axis=0)       # (C, 9C)
        weff.append(w_eff.reshape(C, NUM_REL, C).transpose(1, 0, 2))         # (9, C, C)
    weff_all = jnp.concatenate(weff, axis=0)                                 # (L*9, C, C)
    return {
        "w1t": w1t, "w2t": w2t, "weff": weff_all,
        "conv_wa": conv_w[:, :C].T,                                          # (C, C)
        "conv_wb": conv_w[:, C:].T,                                          # (C, C)
        "conv_b": conv_b.reshape(1, C),
    }


def hgblock_forward(inp, adj_mats, params, num_groups):
    B, C, H, W = inp.shape
    N = H * W
    G = num_groups

    group_matrix = _grouping(B, N, G)
    coef = make_coef_matrix(group_matrix, adj_mats)                          # (B, 9, G, G)

    # Pre-permute coef so the in-kernel contraction uses only sublane-aligned slices:
    #   coef_r2[b, m*G + g_out, g] = coef[b, (9g+m)//G, g_out, (9g+m)%G]
    coef_perm = jnp.swapaxes(coef, 1, 2).reshape(B, G, NUM_REL * G)
    coef_r2 = jnp.transpose(coef_perm.reshape(B, G, G, NUM_REL),
                            (0, 3, 1, 2)).reshape(B, NUM_REL * G, G)

    gm_bar = group_matrix / (jnp.sum(group_matrix, axis=2, keepdims=True) + POOL_EPS)
    gm_tilde = group_matrix / (jnp.sum(group_matrix, axis=1, keepdims=True) + POOL_EPS)
    gm_barT = jnp.swapaxes(gm_bar, 1, 2)                                     # (B, G, N)
    xT = jnp.swapaxes(inp.reshape(B, C, N), 1, 2)                            # (B, N, C)

    # ---- fused pool + 3 residual blocks + unpool (single pallas_call)
    xu = pl.pallas_call(
        hg_fused_kernel,
        out_shape=jax.ShapeDtypeStruct((B, N, C), jnp.float32),
        in_specs=[pl.BlockSpec(memory_space=pltpu.MemorySpace.VMEM)] * 7,
        out_specs=pl.BlockSpec(memory_space=pltpu.MemorySpace.VMEM),
    )(xT, gm_barT, gm_tilde, coef_r2,
      params["w1t"], params["weff"], params["w2t"])

    # raw row-major reinterpret (B,N,C) -> (B,C,H,W), identical to torch x.reshape(input_shape);
    # then back to channel-last for a lane-friendly matmul layout.
    x_imgT = jnp.swapaxes(xu.reshape(B, C, N), 1, 2)                         # (B, N, C)

    # ---- output 1x1 conv, concat folded into split weights, gridded (parallel) over batch
    y = pl.pallas_call(
        conv_out_kernel,
        out_shape=jax.ShapeDtypeStruct((B, N, C), jnp.float32),
        grid=(B,),
        in_specs=[pl.BlockSpec((1, N, C), lambda b: (b, 0, 0)),
                  pl.BlockSpec((1, N, C), lambda b: (b, 0, 0)),
                  pl.BlockSpec((C, C), lambda b: (0, 0)),
                  pl.BlockSpec((C, C), lambda b: (0, 0)),
                  pl.BlockSpec((1, C), lambda b: (0, 0))],
        out_specs=pl.BlockSpec((1, N, C), lambda b: (b, 0, 0)),
        compiler_params=pltpu.CompilerParams(dimension_semantics=("parallel",)),
    )(x_imgT, xT, params["conv_wa"], params["conv_wb"], params["conv_b"])

    return jnp.swapaxes(y, 1, 2).reshape(B, C, H, W)


# ---------------------------------------------------------------------- pure-JAX reference

def _bn_ref(h):
    mean = jnp.mean(h, axis=(0, 2), keepdims=True)
    var = jnp.mean(jnp.square(h - mean), axis=(0, 2), keepdims=True)
    return (h - mean) * jax.lax.rsqrt(var + BN_EPS)


def _residual_block_ref(x, coef, p):
    B, G, C = x.shape
    h = jax.nn.relu(_bn_ref(jnp.einsum("bgc,dc->bgd", x, p["w1"])))
    o = jnp.einsum("bgi,ji->bgj", jnp.tile(h, (1, 1, 9)), p["wg"])
    o = o.reshape(B, 9, G, C)
    o = jnp.sum(jnp.matmul(coef, o), axis=1)
    o = jax.nn.relu(_bn_ref(o))
    o = _bn_ref(jnp.einsum("bgc,dc->bgd", o, p["w2"]))
    return jax.nn.relu(o + x)


def hgblock_forward_ref(inp, adj_mats, blocks, conv_w, conv_b, num_groups):
    B, C, H, W = inp.shape
    N = H * W
    G = num_groups
    group_matrix = _grouping(B, N, G)
    coef = make_coef_matrix(group_matrix, adj_mats)
    gm_bar = group_matrix / (jnp.sum(group_matrix, axis=2, keepdims=True) + POOL_EPS)
    x = jnp.swapaxes(jnp.matmul(inp.reshape(B, C, N), gm_bar), 1, 2)
    for p in blocks:
        x = _residual_block_ref(x, coef, p)
    gm_tilde = group_matrix / (jnp.sum(group_matrix, axis=1, keepdims=True) + POOL_EPS)
    x = jnp.matmul(gm_tilde, x)
    x = x.reshape(B, C, H, W)
    x = jnp.concatenate([x, inp], axis=1)
    return jnp.einsum("bdhw,cd->bchw", x, conv_w) + conv_b[None, :, None, None]


# ----------------------------------------------------------------------------- parameters

def init_params(key, C, G):
    keys = jax.random.split(key, 11)

    def lin(k, out_dim, in_dim):
        bound = 1.0 / (in_dim ** 0.5)
        return jax.random.uniform(k, (out_dim, in_dim), jnp.float32, -bound, bound)

    blocks = []
    i = 0
    for _ in range(3):
        blocks.append({"w1": lin(keys[i], C, C),
                       "wg": lin(keys[i + 1], 9 * C, 9 * C),
                       "w2": lin(keys[i + 2], C, C)})
        i += 3
    conv_w = lin(keys[i], C, 2 * C)                                          # (C, 2C) 1x1 conv
    bound = 1.0 / ((2 * C) ** 0.5)
    conv_b = jax.random.uniform(keys[i + 1], (C,), jnp.float32, -bound, bound)
    return blocks, conv_w, conv_b


# ----------------------------------------------------------------------------------- main

if __name__ == "__main__":
    B, C, H, W = 2, 16, 8, 8          # input_shape = (B, C, H, W)
    G = 8                             # num_groups
    N = H * W

    key = jax.random.PRNGKey(0)
    k_inp, k_adj, k_par = jax.random.split(key, 3)
    inp = jax.random.normal(k_inp, (B, C, H, W), jnp.float32)
    adj_mats = (jax.random.uniform(k_adj, (9, N, N)) < 0.3).astype(jnp.float32)
    blocks, conv_w, conv_b = init_params(k_par, C, G)
    params = prepare_params(blocks, conv_w, conv_b)      # hoisted weight transforms

    fwd = jax.jit(hgblock_forward, static_argnames=("num_groups",))
    out = jax.block_until_ready(fwd(inp, adj_mats, params, num_groups=G))
    assert out.shape == (B, C, H, W), out.shape

    ref = hgblock_forward_ref(inp, adj_mats, blocks, conv_w, conv_b, G)
    if not jnp.allclose(out, ref, rtol=5e-2, atol=5e-2):
        err = float(jnp.max(jnp.abs(out - ref)))
        raise AssertionError(f"Pallas HGBlock does not match JAX reference (max abs err {err})")
    print("KERNEL_OK")
</pallas_src>

<mosaic_0001>
module attributes {stable_mosaic.version = 11 : i64} {
  func.func @hg_fused_kernel(%arg0: memref<2x64x16xf32, #tpu.memory_space<vmem>>, %arg1: memref<2x8x64xf32, #tpu.memory_space<vmem>>, %arg2: memref<2x64x8xf32, #tpu.memory_space<vmem>>, %arg3: memref<2x72x8xf32, #tpu.memory_space<vmem>>, %arg4: memref<3x16x16xf32, #tpu.memory_space<vmem>>, %arg5: memref<27x16x16xf32, #tpu.memory_space<vmem>>, %arg6: memref<3x16x16xf32, #tpu.memory_space<vmem>>, %arg7: memref<2x64x16xf32, #tpu.memory_space<vmem>>) attributes {dimension_semantics = [], scalar_prefetch = 0 : i64, scratch_operands = 0 : i64, tpu.core_type = #tpu.core_type<tc>} {
    %c0 = arith.constant 0 : index
    %c0_0 = arith.constant 0 : index
    %c0_1 = arith.constant 0 : index
    %0 = vector.load %arg1[%c0, %c0_0, %c0_1] : memref<2x8x64xf32, #tpu.memory_space<vmem>>, vector<1x8x64xf32>
    %1 = vector.shape_cast %0 : vector<1x8x64xf32> to vector<8x64xf32>
    %c0_2 = arith.constant 0 : index
    %c0_3 = arith.constant 0 : index
    %c0_4 = arith.constant 0 : index
    %2 = vector.load %arg0[%c0_2, %c0_3, %c0_4] : memref<2x64x16xf32, #tpu.memory_space<vmem>>, vector<1x64x16xf32>
    %3 = vector.shape_cast %2 : vector<1x64x16xf32> to vector<64x16xf32>
    %cst = arith.constant dense<0.000000e+00> : vector<8x16xf32>
    %4 = tpu.matmul %1, %3, %cst {dimension_numbers = #tpu.dot_dimension_numbers<[1], [0], [0], [1], [0, 0, 1, 1], [], []>} : vector<8x64xf32>, vector<64x16xf32>, vector<8x16xf32> -> vector<8x16xf32>
    %c1 = arith.constant 1 : index
    %c0_5 = arith.constant 0 : index
    %c0_6 = arith.constant 0 : index
    %5 = vector.load %arg1[%c1, %c0_5, %c0_6] : memref<2x8x64xf32, #tpu.memory_space<vmem>>, vector<1x8x64xf32>
    %6 = vector.shape_cast %5 : vector<1x8x64xf32> to vector<8x64xf32>
    %c1_7 = arith.constant 1 : index
    %c0_8 = arith.constant 0 : index
    %c0_9 = arith.constant 0 : index
    %7 = vector.load %arg0[%c1_7, %c0_8, %c0_9] : memref<2x64x16xf32, #tpu.memory_space<vmem>>, vector<1x64x16xf32>
    %8 = vector.shape_cast %7 : vector<1x64x16xf32> to vector<64x16xf32>
    %cst_10 = arith.constant dense<0.000000e+00> : vector<8x16xf32>
    %9 = tpu.matmul %6, %8, %cst_10 {dimension_numbers = #tpu.dot_dimension_numbers<[1], [0], [0], [1], [0, 0, 1, 1], [], []>} : vector<8x64xf32>, vector<64x16xf32>, vector<8x16xf32> -> vector<8x16xf32>
    %10 = tpu.concatenate %4, %9 in 0 : vector<8x16xf32>, vector<8x16xf32> -> vector<16x16xf32>
    %c0_11 = arith.constant 0 : index
    %c0_12 = arith.constant 0 : index
    %c0_13 = arith.constant 0 : index
    %11 = vector.load %arg4[%c0_11, %c0_12, %c0_13] : memref<3x16x16xf32, #tpu.memory_space<vmem>>, vector<1x16x16xf32>
    %12 = vector.shape_cast %11 : vector<1x16x16xf32> to vector<16x16xf32>
    %c0_14 = arith.constant 0 : index
    %c0_15 = arith.constant 0 : index
    %c0_16 = arith.constant 0 : index
    %13 = vector.load %arg6[%c0_14, %c0_15, %c0_16] : memref<3x16x16xf32, #tpu.memory_space<vmem>>, vector<1x16x16xf32>
    %14 = vector.shape_cast %13 : vector<1x16x16xf32> to vector<16x16xf32>
    %cst_17 = arith.constant dense<0.000000e+00> : vector<16x16xf32>
    %15 = tpu.matmul %10, %12, %cst_17 {dimension_numbers = #tpu.dot_dimension_numbers<[1], [0], [0], [1], [0, 0, 1, 1], [], []>} : vector<16x16xf32>, vector<16x16xf32>, vector<16x16xf32> -> vector<16x16xf32>
    %cst_18 = arith.constant 0.000000e+00 : f32
    %16 = vector.broadcast %cst_18 : f32 to vector<8x1xf32>
    %cst_19 = arith.constant 0.000000e+00 : f32
    %17 = vector.broadcast %cst_19 : f32 to vector<8x1xf32>
    %18 = vector.extract_strided_slice %15 {offsets = [0, 0], sizes = [8, 16], strides = [1, 1]} : vector<16x16xf32> to vector<8x16xf32>
    %cst_20 = arith.constant dense<0.000000e+00> : vector<8xf32>
    %19 = vector.multi_reduction <add>, %18, %cst_20 [1] : vector<8x16xf32> to vector<8xf32>
    %20 = vector.shape_cast %19 : vector<8xf32> to vector<8x1xf32>
    %21 = arith.addf %16, %20 : vector<8x1xf32>
    %22 = arith.mulf %18, %18 : vector<8x16xf32>
    %cst_21 = arith.constant dense<0.000000e+00> : vector<8xf32>
    %23 = vector.multi_reduction <add>, %22, %cst_21 [1] : vector<8x16xf32> to vector<8xf32>
    %24 = vector.shape_cast %23 : vector<8xf32> to vector<8x1xf32>
    %25 = arith.addf %17, %24 : vector<8x1xf32>
    %26 = vector.extract_strided_slice %15 {offsets = [8, 0], sizes = [8, 16], strides = [1, 1]} : vector<16x16xf32> to vector<8x16xf32>
    %cst_22 = arith.constant dense<0.000000e+00> : vector<8xf32>
    %27 = vector.multi_reduction <add>, %26, %cst_22 [1] : vector<8x16xf32> to vector<8xf32>
    %28 = vector.shape_cast %27 : vector<8xf32> to vector<8x1xf32>
    %29 = arith.addf %21, %28 : vector<8x1xf32>
    %30 = arith.mulf %26, %26 : vector<8x16xf32>
    %cst_23 = arith.constant dense<0.000000e+00> : vector<8xf32>
    %31 = vector.multi_reduction <add>, %30, %cst_23 [1] : vector<8x16xf32> to vector<8xf32>
    %32 = vector.shape_cast %31 : vector<8xf32> to vector<8x1xf32>
    %33 = arith.addf %25, %32 : vector<8x1xf32>
    %cst_24 = arith.constant 3.200000e+01 : f32
    %34 = vector.broadcast %cst_24 : f32 to vector<8x1xf32>
    %35 = arith.divf %29, %34 : vector<8x1xf32>
    %cst_25 = arith.constant 3.200000e+01 : f32
    %36 = vector.broadcast %cst_25 : f32 to vector<8x1xf32>
    %37 = arith.divf %33, %36 : vector<8x1xf32>
    %38 = arith.mulf %35, %35 : vector<8x1xf32>
    %39 = arith.subf %37, %38 : vector<8x1xf32>
    %cst_26 = arith.constant 9.99999974E-6 : f32
    %40 = vector.broadcast %cst_26 : f32 to vector<8x1xf32>
    %41 = arith.addf %39, %40 : vector<8x1xf32>
    %42 = math.rsqrt %41 : vector<8x1xf32>
    %43 = tpu.concatenate %35, %35 in 0 : vector<8x1xf32>, vector<8x1xf32> -> vector<16x1xf32>
    %44 = tpu.concatenate %42, %42 in 0 : vector<8x1xf32>, vector<8x1xf32> -> vector<16x1xf32>
    %45 = vector.broadcast %43 : vector<16x1xf32> to vector<16x16xf32>
    %46 = arith.subf %15, %45 : vector<16x16xf32>
    %47 = vector.broadcast %44 : vector<16x1xf32> to vector<16x16xf32>
    %48 = arith.mulf %46, %47 : vector<16x16xf32>
    %cst_27 = arith.constant 0.000000e+00 : f32
    %49 = vector.broadcast %cst_27 : f32 to vector<16x16xf32>
    %50 = arith.maximumf %48, %49 : vector<16x16xf32>
    %51 = vector.extract_strided_slice %50 {offsets = [0, 0], sizes = [8, 16], strides = [1, 1]} : vector<16x16xf32> to vector<8x16xf32>
    %c0_28 = arith.constant 0 : index
    %c0_29 = arith.constant 0 : index
    %c0_30 = arith.constant 0 : index
    %52 = vector.load %arg3[%c0_28, %c0_29, %c0_30] : memref<2x72x8xf32, #tpu.memory_space<vmem>>, vector<1x72x8xf32>
    %53 = vector.shape_cast %52 : vector<1x72x8xf32> to vector<72x8xf32>
    %cst_31 = arith.constant dense<0.000000e+00> : vector<72x16xf32>
    %54 = tpu.matmul %53, %51, %cst_31 {dimension_numbers = #tpu.dot_dimension_numbers<[1], [0], [0], [1], [0, 0, 1, 1], [], []>} : vector<72x8xf32>, vector<8x16xf32>, vector<72x16xf32> -> vector<72x16xf32>
    %cst_32 = arith.constant 0.000000e+00 : f32
    %55 = vector.broadcast %cst_32 : f32 to vector<8x16xf32>
    %56 = vector.extract_strided_slice %54 {offsets = [0, 0], sizes = [8, 16], strides = [1, 1]} : vector<72x16xf32> to vector<8x16xf32>
    %c0_33 = arith.constant 0 : index
    %c0_34 = arith.constant 0 : index
    %c0_35 = arith.constant 0 : index
    %57 = vector.load %arg5[%c0_33, %c0_34, %c0_35] : memref<27x16x16xf32, #tpu.memory_space<vmem>>, vector<1x16x16xf32>
    %58 = vector.shape_cast %57 : vector<1x16x16xf32> to vector<16x16xf32>
    %cst_36 = arith.constant dense<0.000000e+00> : vector<8x16xf32>
    %59 = tpu.matmul %56, %58, %cst_36 {dimension_numbers = #tpu.dot_dimension_numbers<[1], [0], [0], [1], [0, 0, 1, 1], [], []>} : vector<8x16xf32>, vector<16x16xf32>, vector<8x16xf32> -> vector<8x16xf32>
    %60 = arith.addf %55, %59 : vector<8x16xf32>
    %61 = vector.extract_strided_slice %54 {offsets = [8, 0], sizes = [8, 16], strides = [1, 1]} : vector<72x16xf32> to vector<8x16xf32>
    %c1_37 = arith.constant 1 : index
    %c0_38 = arith.constant 0 : index
    %c0_39 = arith.constant 0 : index
    %62 = vector.load %arg5[%c1_37, %c0_38, %c0_39] : memref<27x16x16xf32, #tpu.memory_space<vmem>>, vector<1x16x16xf32>
    %63 = vector.shape_cast %62 : vector<1x16x16xf32> to vector<16x16xf32>
    %cst_40 = arith.constant dense<0.000000e+00> : vector<8x16xf32>
    %64 = tpu.matmul %61, %63, %cst_40 {dimension_numbers = #tpu.dot_dimension_numbers<[1], [0], [0], [1], [0, 0, 1, 1], [], []>} : vector<8x16xf32>, vector<16x16xf32>, vector<8x16xf32> -> vector<8x16xf32>
    %65 = arith.addf %60, %64 : vector<8x16xf32>
    %66 = vector.extract_strided_slice %54 {offsets = [16, 0], sizes = [8, 16], strides = [1, 1]} : vector<72x16xf32> to vector<8x16xf32>
    %c2 = arith.constant 2 : index
    %c0_41 = arith.constant 0 : index
    %c0_42 = arith.constant 0 : index
    %67 = vector.load %arg5[%c2, %c0_41, %c0_42] : memref<27x16x16xf32, #tpu.memory_space<vmem>>, vector<1x16x16xf32>
    %68 = vector.shape_cast %67 : vector<1x16x16xf32> to vector<16x16xf32>
    %cst_43 = arith.constant dense<0.000000e+00> : vector<8x16xf32>
    %69 = tpu.matmul %66, %68, %cst_43 {dimension_numbers = #tpu.dot_dimension_numbers<[1], [0], [0], [1], [0, 0, 1, 1], [], []>} : vector<8x16xf32>, vector<16x16xf32>, vector<8x16xf32> -> vector<8x16xf32>
    %70 = arith.addf %65, %69 : vector<8x16xf32>
    %71 = vector.extract_strided_slice %54 {offsets = [24, 0], sizes = [8, 16], strides = [1, 1]} : vector<72x16xf32> to vector<8x16xf32>
    %c3 = arith.constant 3 : index
    %c0_44 = arith.constant 0 : index
    %c0_45 = arith.constant 0 : index
    %72 = vector.load %arg5[%c3, %c0_44, %c0_45] : memref<27x16x16xf32, #tpu.memory_space<vmem>>, vector<1x16x16xf32>
    %73 = vector.shape_cast %72 : vector<1x16x16xf32> to vector<16x16xf32>
    %cst_46 = arith.constant dense<0.000000e+00> : vector<8x16xf32>
    %74 = tpu.matmul %71, %73, %cst_46 {dimension_numbers = #tpu.dot_dimension_numbers<[1], [0], [0], [1], [0, 0, 1, 1], [], []>} : vector<8x16xf32>, vector<16x16xf32>, vector<8x16xf32> -> vector<8x16xf32>
    %75 = arith.addf %70, %74 : vector<8x16xf32>
    %76 = vector.extract_strided_slice %54 {offsets = [32, 0], sizes = [8, 16], strides = [1, 1]} : vector<72x16xf32> to vector<8x16xf32>
    %c4 = arith.constant 4 : index
    %c0_47 = arith.constant 0 : index
    %c0_48 = arith.constant 0 : index
    %77 = vector.load %arg5[%c4, %c0_47, %c0_48] : memref<27x16x16xf32, #tpu.memory_space<vmem>>, vector<1x16x16xf32>
    %78 = vector.shape_cast %77 : vector<1x16x16xf32> to vector<16x16xf32>
    %cst_49 = arith.constant dense<0.000000e+00> : vector<8x16xf32>
    %79 = tpu.matmul %76, %78, %cst_49 {dimension_numbers = #tpu.dot_dimension_numbers<[1], [0], [0], [1], [0, 0, 1, 1], [], []>} : vector<8x16xf32>, vector<16x16xf32>, vector<8x16xf32> -> vector<8x16xf32>
    %80 = arith.addf %75, %79 : vector<8x16xf32>
    %81 = vector.extract_strided_slice %54 {offsets = [40, 0], sizes = [8, 16], strides = [1, 1]} : vector<72x16xf32> to vector<8x16xf32>
    %c5 = arith.constant 5 : index
    %c0_50 = arith.constant 0 : index
    %c0_51 = arith.constant 0 : index
    %82 = vector.load %arg5[%c5, %c0_50, %c0_51] : memref<27x16x16xf32, #tpu.memory_space<vmem>>, vector<1x16x16xf32>
    %83 = vector.shape_cast %82 : vector<1x16x16xf32> to vector<16x16xf32>
    %cst_52 = arith.constant dense<0.000000e+00> : vector<8x16xf32>
    %84 = tpu.matmul %81, %83, %cst_52 {dimension_numbers = #tpu.dot_dimension_numbers<[1], [0], [0], [1], [0, 0, 1, 1], [], []>} : vector<8x16xf32>, vector<16x16xf32>, vector<8x16xf32> -> vector<8x16xf32>
    %85 = arith.addf %80, %84 : vector<8x16xf32>
    %86 = vector.extract_strided_slice %54 {offsets = [48, 0], sizes = [8, 16], strides = [1, 1]} : vector<72x16xf32> to vector<8x16xf32>
    %c6 = arith.constant 6 : index
    %c0_53 = arith.constant 0 : index
    %c0_54 = arith.constant 0 : index
    %87 = vector.load %arg5[%c6, %c0_53, %c0_54] : memref<27x16x16xf32, #tpu.memory_space<vmem>>, vector<1x16x16xf32>
    %88 = vector.shape_cast %87 : vector<1x16x16xf32> to vector<16x16xf32>
    %cst_55 = arith.constant dense<0.000000e+00> : vector<8x16xf32>
    %89 = tpu.matmul %86, %88, %cst_55 {dimension_numbers = #tpu.dot_dimension_numbers<[1], [0], [0], [1], [0, 0, 1, 1], [], []>} : vector<8x16xf32>, vector<16x16xf32>, vector<8x16xf32> -> vector<8x16xf32>
    %90 = arith.addf %85, %89 : vector<8x16xf32>
    %91 = vector.extract_strided_slice %54 {offsets = [56, 0], sizes = [8, 16], strides = [1, 1]} : vector<72x16xf32> to vector<8x16xf32>
    %c7 = arith.constant 7 : index
    %c0_56 = arith.constant 0 : index
    %c0_57 = arith.constant 0 : index
    %92 = vector.load %arg5[%c7, %c0_56, %c0_57] : memref<27x16x16xf32, #tpu.memory_space<vmem>>, vector<1x16x16xf32>
    %93 = vector.shape_cast %92 : vector<1x16x16xf32> to vector<16x16xf32>
    %cst_58 = arith.constant dense<0.000000e+00> : vector<8x16xf32>
    %94 = tpu.matmul %91, %93, %cst_58 {dimension_numbers = #tpu.dot_dimension_numbers<[1], [0], [0], [1], [0, 0, 1, 1], [], []>} : vector<8x16xf32>, vector<16x16xf32>, vector<8x16xf32> -> vector<8x16xf32>
    %95 = arith.addf %90, %94 : vector<8x16xf32>
    %96 = vector.extract_strided_slice %54 {offsets = [64, 0], sizes = [8, 16], strides = [1, 1]} : vector<72x16xf32> to vector<8x16xf32>
    %c8 = arith.constant 8 : index
    %c0_59 = arith.constant 0 : index
    %c0_60 = arith.constant 0 : index
    %97 = vector.load %arg5[%c8, %c0_59, %c0_60] : memref<27x16x16xf32, #tpu.memory_space<vmem>>, vector<1x16x16xf32>
    %98 = vector.shape_cast %97 : vector<1x16x16xf32> to vector<16x16xf32>
    %cst_61 = arith.constant dense<0.000000e+00> : vector<8x16xf32>
    %99 = tpu.matmul %96, %98, %cst_61 {dimension_numbers = #tpu.dot_dimension_numbers<[1], [0], [0], [1], [0, 0, 1, 1], [], []>} : vector<8x16xf32>, vector<16x16xf32>, vector<8x16xf32> -> vector<8x16xf32>
    %100 = arith.addf %95, %99 : vector<8x16xf32>
    %101 = vector.extract_strided_slice %50 {offsets = [8, 0], sizes = [8, 16], strides = [1, 1]} : vector<16x16xf32> to vector<8x16xf32>
    %c1_62 = arith.constant 1 : index
    %c0_63 = arith.constant 0 : index
    %c0_64 = arith.constant 0 : index
    %102 = vector.load %arg3[%c1_62, %c0_63, %c0_64] : memref<2x72x8xf32, #tpu.memory_space<vmem>>, vector<1x72x8xf32>
    %103 = vector.shape_cast %102 : vector<1x72x8xf32> to vector<72x8xf32>
    %cst_65 = arith.constant dense<0.000000e+00> : vector<72x16xf32>
    %104 = tpu.matmul %103, %101, %cst_65 {dimension_numbers = #tpu.dot_dimension_numbers<[1], [0], [0], [1], [0, 0, 1, 1], [], []>} : vector<72x8xf32>, vector<8x16xf32>, vector<72x16xf32> -> vector<72x16xf32>
    %cst_66 = arith.constant 0.000000e+00 : f32
    %105 = vector.broadcast %cst_66 : f32 to vector<8x16xf32>
    %106 = vector.extract_strided_slice %104 {offsets = [0, 0], sizes = [8, 16], strides = [1, 1]} : vector<72x16xf32> to vector<8x16xf32>
    %c0_67 = arith.constant 0 : index
    %c0_68 = arith.constant 0 : index
    %c0_69 = arith.constant 0 : index
    %107 = vector.load %arg5[%c0_67, %c0_68, %c0_69] : memref<27x16x16xf32, #tpu.memory_space<vmem>>, vector<1x16x16xf32>
    %108 = vector.shape_cast %107 : vector<1x16x16xf32> to vector<16x16xf32>
    %cst_70 = arith.constant dense<0.000000e+00> : vector<8x16xf32>
    %109 = tpu.matmul %106, %108, %cst_70 {dimension_numbers = #tpu.dot_dimension_numbers<[1], [0], [0], [1], [0, 0, 1, 1], [], []>} : vector<8x16xf32>, vector<16x16xf32>, vector<8x16xf32> -> vector<8x16xf32>
    %110 = arith.addf %105, %109 : vector<8x16xf32>
    %111 = vector.extract_strided_slice %104 {offsets = [8, 0], sizes = [8, 16], strides = [1, 1]} : vector<72x16xf32> to vector<8x16xf32>
    %c1_71 = arith.constant 1 : index
    %c0_72 = arith.constant 0 : index
    %c0_73 = arith.constant 0 : index
    %112 = vector.load %arg5[%c1_71, %c0_72, %c0_73] : memref<27x16x16xf32, #tpu.memory_space<vmem>>, vector<1x16x16xf32>
    %113 = vector.shape_cast %112 : vector<1x16x16xf32> to vector<16x16xf32>
    %cst_74 = arith.constant dense<0.000000e+00> : vector<8x16xf32>
    %114 = tpu.matmul %111, %113, %cst_74 {dimension_numbers = #tpu.dot_dimension_numbers<[1], [0], [0], [1], [0, 0, 1, 1], [], []>} : vector<8x16xf32>, vector<16x16xf32>, vector<8x16xf32> -> vector<8x16xf32>
    %115 = arith.addf %110, %114 : vector<8x16xf32>
    %116 = vector.extract_strided_slice %104 {offsets = [16, 0], sizes = [8, 16], strides = [1, 1]} : vector<72x16xf32> to vector<8x16xf32>
    %c2_75 = arith.constant 2 : index
    %c0_76 = arith.constant 0 : index
    %c0_77 = arith.constant 0 : index
    %117 = vector.load %arg5[%c2_75, %c0_76, %c0_77] : memref<27x16x16xf32, #tpu.memory_space<vmem>>, vector<1x16x16xf32>
    %118 = vector.shape_cast %117 : vector<1x16x16xf32> to vector<16x16xf32>
    %cst_78 = arith.constant dense<0.000000e+00> : vector<8x16xf32>
    %119 = tpu.matmul %116, %118, %cst_78 {dimension_numbers = #tpu.dot_dimension_numbers<[1], [0], [0], [1], [0, 0, 1, 1], [], []>} : vector<8x16xf32>, vector<16x16xf32>, vector<8x16xf32> -> vector<8x16xf32>
    %120 = arith.addf %115, %119 : vector<8x16xf32>
    %121 = vector.extract_strided_slice %104 {offsets = [24, 0], sizes = [8, 16], strides = [1, 1]} : vector<72x16xf32> to vector<8x16xf32>
    %c3_79 = arith.constant 3 : index
    %c0_80 = arith.constant 0 : index
    %c0_81 = arith.constant 0 : index
    %122 = vector.load %arg5[%c3_79, %c0_80, %c0_81] : memref<27x16x16xf32, #tpu.memory_space<vmem>>, vector<1x16x16xf32>
    %123 = vector.shape_cast %122 : vector<1x16x16xf32> to vector<16x16xf32>
    %cst_82 = arith.constant dense<0.000000e+00> : vector<8x16xf32>
    %124 = tpu.matmul %121, %123, %cst_82 {dimension_numbers = #tpu.dot_dimension_numbers<[1], [0], [0], [1], [0, 0, 1, 1], [], []>} : vector<8x16xf32>, vector<16x16xf32>, vector<8x16xf32> -> vector<8x16xf32>
    %125 = arith.addf %120, %124 : vector<8x16xf32>
    %126 = vector.extract_strided_slice %104 {offsets = [32, 0], sizes = [8, 16], strides = [1, 1]} : vector<72x16xf32> to vector<8x16xf32>
    %c4_83 = arith.constant 4 : index
    %c0_84 = arith.constant 0 : index
    %c0_85 = arith.constant 0 : index
    %127 = vector.load %arg5[%c4_83, %c0_84, %c0_85] : memref<27x16x16xf32, #tpu.memory_space<vmem>>, vector<1x16x16xf32>
    %128 = vector.shape_cast %127 : vector<1x16x16xf32> to vector<16x16xf32>
    %cst_86 = arith.constant dense<0.000000e+00> : vector<8x16xf32>
    %129 = tpu.matmul %126, %128, %cst_86 {dimension_numbers = #tpu.dot_dimension_numbers<[1], [0], [0], [1], [0, 0, 1, 1], [], []>} : vector<8x16xf32>, vector<16x16xf32>, vector<8x16xf32> -> vector<8x16xf32>
    %130 = arith.addf %125, %129 : vector<8x16xf32>
    %131 = vector.extract_strided_slice %104 {offsets = [40, 0], sizes = [8, 16], strides = [1, 1]} : vector<72x16xf32> to vector<8x16xf32>
    %c5_87 = arith.constant 5 : index
    %c0_88 = arith.constant 0 : index
    %c0_89 = arith.constant 0 : index
    %132 = vector.load %arg5[%c5_87, %c0_88, %c0_89] : memref<27x16x16xf32, #tpu.memory_space<vmem>>, vector<1x16x16xf32>
    %133 = vector.shape_cast %132 : vector<1x16x16xf32> to vector<16x16xf32>
    %cst_90 = arith.constant dense<0.000000e+00> : vector<8x16xf32>
    %134 = tpu.matmul %131, %133, %cst_90 {dimension_numbers = #tpu.dot_dimension_numbers<[1], [0], [0], [1], [0, 0, 1, 1], [], []>} : vector<8x16xf32>, vector<16x16xf32>, vector<8x16xf32> -> vector<8x16xf32>
    %135 = arith.addf %130, %134 : vector<8x16xf32>
    %136 = vector.extract_strided_slice %104 {offsets = [48, 0], sizes = [8, 16], strides = [1, 1]} : vector<72x16xf32> to vector<8x16xf32>
    %c6_91 = arith.constant 6 : index
    %c0_92 = arith.constant 0 : index
    %c0_93 = arith.constant 0 : index
    %137 = vector.load %arg5[%c6_91, %c0_92, %c0_93] : memref<27x16x16xf32, #tpu.memory_space<vmem>>, vector<1x16x16xf32>
    %138 = vector.shape_cast %137 : vector<1x16x16xf32> to vector<16x16xf32>
    %cst_94 = arith.constant dense<0.000000e+00> : vector<8x16xf32>
    %139 = tpu.matmul %136, %138, %cst_94 {dimension_numbers = #tpu.dot_dimension_numbers<[1], [0], [0], [1], [0, 0, 1, 1], [], []>} : vector<8x16xf32>, vector<16x16xf32>, vector<8x16xf32> -> vector<8x16xf32>
    %140 = arith.addf %135, %139 : vector<8x16xf32>
    %141 = vector.extract_strided_slice %104 {offsets = [56, 0], sizes = [8, 16], strides = [1, 1]} : vector<72x16xf32> to vector<8x16xf32>
    %c7_95 = arith.constant 7 : index
    %c0_96 = arith.constant 0 : index
    %c0_97 = arith.constant 0 : index
    %142 = vector.load %arg5[%c7_95, %c0_96, %c0_97] : memref<27x16x16xf32, #tpu.memory_space<vmem>>, vector<1x16x16xf32>
    %143 = vector.shape_cast %142 : vector<1x16x16xf32> to vector<16x16xf32>
    %cst_98 = arith.constant dense<0.000000e+00> : vector<8x16xf32>
    %144 = tpu.matmul %141, %143, %cst_98 {dimension_numbers = #tpu.dot_dimension_numbers<[1], [0], [0], [1], [0, 0, 1, 1], [], []>} : vector<8x16xf32>, vector<16x16xf32>, vector<8x16xf32> -> vector<8x16xf32>
    %145 = arith.addf %140, %144 : vector<8x16xf32>
    %146 = vector.extract_strided_slice %104 {offsets = [64, 0], sizes = [8, 16], strides = [1, 1]} : vector<72x16xf32> to vector<8x16xf32>
    %c8_99 = arith.constant 8 : index
    %c0_100 = arith.constant 0 : index
    %c0_101 = arith.constant 0 : index
    %147 = vector.load %arg5[%c8_99, %c0_100, %c0_101] : memref<27x16x16xf32, #tpu.memory_space<vmem>>, vector<1x16x16xf32>
    %148 = vector.shape_cast %147 : vector<1x16x16xf32> to vector<16x16xf32>
    %cst_102 = arith.constant dense<0.000000e+00> : vector<8x16xf32>
    %149 = tpu.matmul %146, %148, %cst_102 {dimension_numbers = #tpu.dot_dimension_numbers<[1], [0], [0], [1], [0, 0, 1, 1], [], []>} : vector<8x16xf32>, vector<16x16xf32>, vector<8x16xf32> -> vector<8x16xf32>
    %150 = arith.addf %145, %149 : vector<8x16xf32>
    %151 = tpu.concatenate %100, %150 in 0 : vector<8x16xf32>, vector<8x16xf32> -> vector<16x16xf32>
    %cst_103 = arith.constant 0.000000e+00 : f32
    %152 = vector.broadcast %cst_103 : f32 to vector<8x1xf32>
    %cst_104 = arith.constant 0.000000e+00 : f32
    %153 = vector.broadcast %cst_104 : f32 to vector<8x1xf32>
    %154 = vector.extract_strided_slice %151 {offsets = [0, 0], sizes = [8, 16], strides = [1, 1]} : vector<16x16xf32> to vector<8x16xf32>
    %cst_105 = arith.constant dense<0.000000e+00> : vector<8xf32>
    %155 = vector.multi_reduction <add>, %154, %cst_105 [1] : vector<8x16xf32> to vector<8xf32>
    %156 = vector.shape_cast %155 : vector<8xf32> to vector<8x1xf32>
    %157 = arith.addf %152, %156 : vector<8x1xf32>
    %158 = arith.mulf %154, %154 : vector<8x16xf32>
    %cst_106 = arith.constant dense<0.000000e+00> : vector<8xf32>
    %159 = vector.multi_reduction <add>, %158, %cst_106 [1] : vector<8x16xf32> to vector<8xf32>
    %160 = vector.shape_cast %159 : vector<8xf32> to vector<8x1xf32>
    %161 = arith.addf %153, %160 : vector<8x1xf32>
    %162 = vector.extract_strided_slice %151 {offsets = [8, 0], sizes = [8, 16], strides = [1, 1]} : vector<16x16xf32> to vector<8x16xf32>
    %cst_107 = arith.constant dense<0.000000e+00> : vector<8xf32>
    %163 = vector.multi_reduction <add>, %162, %cst_107 [1] : vector<8x16xf32> to vector<8xf32>
    %164 = vector.shape_cast %163 : vector<8xf32> to vector<8x1xf32>
    %165 = arith.addf %157, %164 : vector<8x1xf32>
    %166 = arith.mulf %162, %162 : vector<8x16xf32>
    %cst_108 = arith.constant dense<0.000000e+00> : vector<8xf32>
    %167 = vector.multi_reduction <add>, %166, %cst_108 [1] : vector<8x16xf32> to vector<8xf32>
    %168 = vector.shape_cast %167 : vector<8xf32> to vector<8x1xf32>
    %169 = arith.addf %161, %168 : vector<8x1xf32>
    %cst_109 = arith.constant 3.200000e+01 : f32
    %170 = vector.broadcast %cst_109 : f32 to vector<8x1xf32>
    %171 = arith.divf %165, %170 : vector<8x1xf32>
    %cst_110 = arith.constant 3.200000e+01 : f32
    %172 = vector.broadcast %cst_110 : f32 to vector<8x1xf32>
    %173 = arith.divf %169, %172 : vector<8x1xf32>
    %174 = arith.mulf %171, %171 : vector<8x1xf32>
    %175 = arith.subf %173, %174 : vector<8x1xf32>
    %cst_111 = arith.constant 9.99999974E-6 : f32
    %176 = vector.broadcast %cst_111 : f32 to vector<8x1xf32>
    %177 = arith.addf %175, %176 : vector<8x1xf32>
    %178 = math.rsqrt %177 : vector<8x1xf32>
    %179 = tpu.concatenate %171, %171 in 0 : vector<8x1xf32>, vector<8x1xf32> -> vector<16x1xf32>
    %180 = tpu.concatenate %178, %178 in 0 : vector<8x1xf32>, vector<8x1xf32> -> vector<16x1xf32>
    %181 = vector.broadcast %179 : vector<16x1xf32> to vector<16x16xf32>
    %182 = arith.subf %151, %181 : vector<16x16xf32>
    %183 = vector.broadcast %180 : vector<16x1xf32> to vector<16x16xf32>
    %184 = arith.mulf %182, %183 : vector<16x16xf32>
    %cst_112 = arith.constant 0.000000e+00 : f32
    %185 = vector.broadcast %cst_112 : f32 to vector<16x16xf32>
    %186 = arith.maximumf %184, %185 : vector<16x16xf32>
    %cst_113 = arith.constant dense<0.000000e+00> : vector<16x16xf32>
    %187 = tpu.matmul %186, %14, %cst_113 {dimension_numbers = #tpu.dot_dimension_numbers<[1], [0], [0], [1], [0, 0, 1, 1], [], []>} : vector<16x16xf32>, vector<16x16xf32>, vector<16x16xf32> -> vector<16x16xf32>
    %cst_114 = arith.constant 0.000000e+00 : f32
    %188 = vector.broadcast %cst_114 : f32 to vector<8x1xf32>
    %cst_115 = arith.constant 0.000000e+00 : f32
    %189 = vector.broadcast %cst_115 : f32 to vector<8x1xf32>
    %190 = vector.extract_strided_slice %187 {offsets = [0, 0], sizes = [8, 16], strides = [1, 1]} : vector<16x16xf32> to vector<8x16xf32>
    %cst_116 = arith.constant dense<0.000000e+00> : vector<8xf32>
    %191 = vector.multi_reduction <add>, %190, %cst_116 [1] : vector<8x16xf32> to vector<8xf32>
    %192 = vector.shape_cast %191 : vector<8xf32> to vector<8x1xf32>
    %193 = arith.addf %188, %192 : vector<8x1xf32>
    %194 = arith.mulf %190, %190 : vector<8x16xf32>
    %cst_117 = arith.constant dense<0.000000e+00> : vector<8xf32>
    %195 = vector.multi_reduction <add>, %194, %cst_117 [1] : vector<8x16xf32> to vector<8xf32>
    %196 = vector.shape_cast %195 : vector<8xf32> to vector<8x1xf32>
    %197 = arith.addf %189, %196 : vector<8x1xf32>
    %198 = vector.extract_strided_slice %187 {offsets = [8, 0], sizes = [8, 16], strides = [1, 1]} : vector<16x16xf32> to vector<8x16xf32>
    %cst_118 = arith.constant dense<0.000000e+00> : vector<8xf32>
    %199 = vector.multi_reduction <add>, %198, %cst_118 [1] : vector<8x16xf32> to vector<8xf32>
    %200 = vector.shape_cast %199 : vector<8xf32> to vector<8x1xf32>
    %201 = arith.addf %193, %200 : vector<8x1xf32>
    %202 = arith.mulf %198, %198 : vector<8x16xf32>
    %cst_119 = arith.constant dense<0.000000e+00> : vector<8xf32>
    %203 = vector.multi_reduction <add>, %202, %cst_119 [1] : vector<8x16xf32> to vector<8xf32>
    %204 = vector.shape_cast %203 : vector<8xf32> to vector<8x1xf32>
    %205 = arith.addf %197, %204 : vector<8x1xf32>
    %cst_120 = arith.constant 3.200000e+01 : f32
    %206 = vector.broadcast %cst_120 : f32 to vector<8x1xf32>
    %207 = arith.divf %201, %206 : vector<8x1xf32>
    %cst_121 = arith.constant 3.200000e+01 : f32
    %208 = vector.broadcast %cst_121 : f32 to vector<8x1xf32>
    %209 = arith.divf %205, %208 : vector<8x1xf32>
    %210 = arith.mulf %207, %207 : vector<8x1xf32>
    %211 = arith.subf %209, %210 : vector<8x1xf32>
    %cst_122 = arith.constant 9.99999974E-6 : f32
    %212 = vector.broadcast %cst_122 : f32 to vector<8x1xf32>
    %213 = arith.addf %211, %212 : vector<8x1xf32>
    %214 = math.rsqrt %213 : vector<8x1xf32>
    %215 = tpu.concatenate %207, %207 in 0 : vector<8x1xf32>, vector<8x1xf32> -> vector<16x1xf32>
    %216 = tpu.concatenate %214, %214 in 0 : vector<8x1xf32>, vector<8x1xf32> -> vector<16x1xf32>
    %217 = vector.broadcast %215 : vector<16x1xf32> to vector<16x16xf32>
    %218 = arith.subf %187, %217 : vector<16x16xf32>
    %219 = vector.broadcast %216 : vector<16x1xf32> to vector<16x16xf32>
    %220 = arith.mulf %218, %219 : vector<16x16xf32>
    %221 = arith.addf %220, %10 : vector<16x16xf32>
    %cst_123 = arith.constant 0.000000e+00 : f32
    %222 = vector.broadcast %cst_123 : f32 to vector<16x16xf32>
    %223 = arith.maximumf %221, %222 : vector<16x16xf32>
    %c1_124 = arith.constant 1 : index
    %c0_125 = arith.constant 0 : index
    %c0_126 = arith.constant 0 : index
    %224 = vector.load %arg4[%c1_124, %c0_125, %c0_126] : memref<3x16x16xf32, #tpu.memory_space<vmem>>, vector<1x16x16xf32>
    %225 = vector.shape_cast %224 : vector<1x16x16xf32> to vector<16x16xf32>
    %c1_127 = arith.constant 1 : index
    %c0_128 = arith.constant 0 : index
    %c0_129 = arith.constant 0 : index
    %226 = vector.load %arg6[%c1_127, %c0_128, %c0_129] : memref<3x16x16xf32, #tpu.memory_space<vmem>>, vector<1x16x16xf32>
    %227 = vector.shape_cast %226 : vector<1x16x16xf32> to vector<16x16xf32>
    %cst_130 = arith.constant dense<0.000000e+00> : vector<16x16xf32>
    %228 = tpu.matmul %223, %225, %cst_130 {dimension_numbers = #tpu.dot_dimension_numbers<[1], [0], [0], [1], [0, 0, 1, 1], [], []>} : vector<16x16xf32>, vector<16x16xf32>, vector<16x16xf32> -> vector<16x16xf32>
    %cst_131 = arith.constant 0.000000e+00 : f32
    %229 = vector.broadcast %cst_131 : f32 to vector<8x1xf32>
    %cst_132 = arith.constant 0.000000e+00 : f32
    %230 = vector.broadcast %cst_132 : f32 to vector<8x1xf32>
    %231 = vector.extract_strided_slice %228 {offsets = [0, 0], sizes = [8, 16], strides = [1, 1]} : vector<16x16xf32> to vector<8x16xf32>
    %cst_133 = arith.constant dense<0.000000e+00> : vector<8xf32>
    %232 = vector.multi_reduction <add>, %231, %cst_133 [1] : vector<8x16xf32> to vector<8xf32>
    %233 = vector.shape_cast %232 : vector<8xf32> to vector<8x1xf32>
    %234 = arith.addf %229, %233 : vector<8x1xf32>
    %235 = arith.mulf %231, %231 : vector<8x16xf32>
    %cst_134 = arith.constant dense<0.000000e+00> : vector<8xf32>
    %236 = vector.multi_reduction <add>, %235, %cst_134 [1] : vector<8x16xf32> to vector<8xf32>
    %237 = vector.shape_cast %236 : vector<8xf32> to vector<8x1xf32>
    %238 = arith.addf %230, %237 : vector<8x1xf32>
    %239 = vector.extract_strided_slice %228 {offsets = [8, 0], sizes = [8, 16], strides = [1, 1]} : vector<16x16xf32> to vector<8x16xf32>
    %cst_135 = arith.constant dense<0.000000e+00> : vector<8xf32>
    %240 = vector.multi_reduction <add>, %239, %cst_135 [1] : vector<8x16xf32> to vector<8xf32>
    %241 = vector.shape_cast %240 : vector<8xf32> to vector<8x1xf32>
    %242 = arith.addf %234, %241 : vector<8x1xf32>
    %243 = arith.mulf %239, %239 : vector<8x16xf32>
    %cst_136 = arith.constant dense<0.000000e+00> : vector<8xf32>
    %244 = vector.multi_reduction <add>, %243, %cst_136 [1] : vector<8x16xf32> to vector<8xf32>
    %245 = vector.shape_cast %244 : vector<8xf32> to vector<8x1xf32>
    %246 = arith.addf %238, %245 : vector<8x1xf32>
    %cst_137 = arith.constant 3.200000e+01 : f32
    %247 = vector.broadcast %cst_137 : f32 to vector<8x1xf32>
    %248 = arith.divf %242, %247 : vector<8x1xf32>
    %cst_138 = arith.constant 3.200000e+01 : f32
    %249 = vector.broadcast %cst_138 : f32 to vector<8x1xf32>
    %250 = arith.divf %246, %249 : vector<8x1xf32>
    %251 = arith.mulf %248, %248 : vector<8x1xf32>
    %252 = arith.subf %250, %251 : vector<8x1xf32>
    %cst_139 = arith.constant 9.99999974E-6 : f32
    %253 = vector.broadcast %cst_139 : f32 to vector<8x1xf32>
    %254 = arith.addf %252, %253 : vector<8x1xf32>
    %255 = math.rsqrt %254 : vector<8x1xf32>
    %256 = tpu.concatenate %248, %248 in 0 : vector<8x1xf32>, vector<8x1xf32> -> vector<16x1xf32>
    %257 = tpu.concatenate %255, %255 in 0 : vector<8x1xf32>, vector<8x1xf32> -> vector<16x1xf32>
    %258 = vector.broadcast %256 : vector<16x1xf32> to vector<16x16xf32>
    %259 = arith.subf %228, %258 : vector<16x16xf32>
    %260 = vector.broadcast %257 : vector<16x1xf32> to vector<16x16xf32>
    %261 = arith.mulf %259, %260 : vector<16x16xf32>
    %cst_140 = arith.constant 0.000000e+00 : f32
    %262 = vector.broadcast %cst_140 : f32 to vector<16x16xf32>
    %263 = arith.maximumf %261, %262 : vector<16x16xf32>
    %264 = vector.extract_strided_slice %263 {offsets = [0, 0], sizes = [8, 16], strides = [1, 1]} : vector<16x16xf32> to vector<8x16xf32>
    %c0_141 = arith.constant 0 : index
    %c0_142 = arith.constant 0 : index
    %c0_143 = arith.constant 0 : index
    %265 = vector.load %arg3[%c0_141, %c0_142, %c0_143] : memref<2x72x8xf32, #tpu.memory_space<vmem>>, vector<1x72x8xf32>
    %266 = vector.shape_cast %265 : vector<1x72x8xf32> to vector<72x8xf32>
    %cst_144 = arith.constant dense<0.000000e+00> : vector<72x16xf32>
    %267 = tpu.matmul %266, %264, %cst_144 {dimension_numbers = #tpu.dot_dimension_numbers<[1], [0], [0], [1], [0, 0, 1, 1], [], []>} : vector<72x8xf32>, vector<8x16xf32>, vector<72x16xf32> -> vector<72x16xf32>
    %cst_145 = arith.constant 0.000000e+00 : f32
    %268 = vector.broadcast %cst_145 : f32 to vector<8x16xf32>
    %269 = vector.extract_strided_slice %267 {offsets = [0, 0], sizes = [8, 16], strides = [1, 1]} : vector<72x16xf32> to vector<8x16xf32>
    %c9 = arith.constant 9 : index
    %c0_146 = arith.constant 0 : index
    %c0_147 = arith.constant 0 : index
    %270 = vector.load %arg5[%c9, %c0_146, %c0_147] : memref<27x16x16xf32, #tpu.memory_space<vmem>>, vector<1x16x16xf32>
    %271 = vector.shape_cast %270 : vector<1x16x16xf32> to vector<16x16xf32>
    %cst_148 = arith.constant dense<0.000000e+00> : vector<8x16xf32>
    %272 = tpu.matmul %269, %271, %cst_148 {dimension_numbers = #tpu.dot_dimension_numbers<[1], [0], [0], [1], [0, 0, 1, 1], [], []>} : vector<8x16xf32>, vector<16x16xf32>, vector<8x16xf32> -> vector<8x16xf32>
    %273 = arith.addf %268, %272 : vector<8x16xf32>
    %274 = vector.extract_strided_slice %267 {offsets = [8, 0], sizes = [8, 16], strides = [1, 1]} : vector<72x16xf32> to vector<8x16xf32>
    %c10 = arith.constant 10 : index
    %c0_149 = arith.constant 0 : index
    %c0_150 = arith.constant 0 : index
    %275 = vector.load %arg5[%c10, %c0_149, %c0_150] : memref<27x16x16xf32, #tpu.memory_space<vmem>>, vector<1x16x16xf32>
    %276 = vector.shape_cast %275 : vector<1x16x16xf32> to vector<16x16xf32>
    %cst_151 = arith.constant dense<0.000000e+00> : vector<8x16xf32>
    %277 = tpu.matmul %274, %276, %cst_151 {dimension_numbers = #tpu.dot_dimension_numbers<[1], [0], [0], [1], [0, 0, 1, 1], [], []>} : vector<8x16xf32>, vector<16x16xf32>, vector<8x16xf32> -> vector<8x16xf32>
    %278 = arith.addf %273, %277 : vector<8x16xf32>
    %279 = vector.extract_strided_slice %267 {offsets = [16, 0], sizes = [8, 16], strides = [1, 1]} : vector<72x16xf32> to vector<8x16xf32>
    %c11 = arith.constant 11 : index
    %c0_152 = arith.constant 0 : index
    %c0_153 = arith.constant 0 : index
    %280 = vector.load %arg5[%c11, %c0_152, %c0_153] : memref<27x16x16xf32, #tpu.memory_space<vmem>>, vector<1x16x16xf32>
    %281 = vector.shape_cast %280 : vector<1x16x16xf32> to vector<16x16xf32>
    %cst_154 = arith.constant dense<0.000000e+00> : vector<8x16xf32>
    %282 = tpu.matmul %279, %281, %cst_154 {dimension_numbers = #tpu.dot_dimension_numbers<[1], [0], [0], [1], [0, 0, 1, 1], [], []>} : vector<8x16xf32>, vector<16x16xf32>, vector<8x16xf32> -> vector<8x16xf32>
    %283 = arith.addf %278, %282 : vector<8x16xf32>
    %284 = vector.extract_strided_slice %267 {offsets = [24, 0], sizes = [8, 16], strides = [1, 1]} : vector<72x16xf32> to vector<8x16xf32>
    %c12 = arith.constant 12 : index
    %c0_155 = arith.constant 0 : index
    %c0_156 = arith.constant 0 : index
    %285 = vector.load %arg5[%c12, %c0_155, %c0_156] : memref<27x16x16xf32, #tpu.memory_space<vmem>>, vector<1x16x16xf32>
    %286 = vector.shape_cast %285 : vector<1x16x16xf32> to vector<16x16xf32>
    %cst_157 = arith.constant dense<0.000000e+00> : vector<8x16xf32>
    %287 = tpu.matmul %284, %286, %cst_157 {dimension_numbers = #tpu.dot_dimension_numbers<[1], [0], [0], [1], [0, 0, 1, 1], [], []>} : vector<8x16xf32>, vector<16x16xf32>, vector<8x16xf32> -> vector<8x16xf32>
    %288 = arith.addf %283, %287 : vector<8x16xf32>
    %289 = vector.extract_strided_slice %267 {offsets = [32, 0], sizes = [8, 16], strides = [1, 1]} : vector<72x16xf32> to vector<8x16xf32>
    %c13 = arith.constant 13 : index
    %c0_158 = arith.constant 0 : index
    %c0_159 = arith.constant 0 : index
    %290 = vector.load %arg5[%c13, %c0_158, %c0_159] : memref<27x16x16xf32, #tpu.memory_space<vmem>>, vector<1x16x16xf32>
    %291 = vector.shape_cast %290 : vector<1x16x16xf32> to vector<16x16xf32>
    %cst_160 = arith.constant dense<0.000000e+00> : vector<8x16xf32>
    %292 = tpu.matmul %289, %291, %cst_160 {dimension_numbers = #tpu.dot_dimension_numbers<[1], [0], [0], [1], [0, 0, 1, 1], [], []>} : vector<8x16xf32>, vector<16x16xf32>, vector<8x16xf32> -> vector<8x16xf32>
    %293 = arith.addf %288, %292 : vector<8x16xf32>
    %294 = vector.extract_strided_slice %267 {offsets = [40, 0], sizes = [8, 16], strides = [1, 1]} : vector<72x16xf32> to vector<8x16xf32>
    %c14 = arith.constant 14 : index
    %c0_161 = arith.constant 0 : index
    %c0_162 = arith.constant 0 : index
    %295 = vector.load %arg5[%c14, %c0_161, %c0_162] : memref<27x16x16xf32, #tpu.memory_space<vmem>>, vector<1x16x16xf32>
    %296 = vector.shape_cast %295 : vector<1x16x16xf32> to vector<16x16xf32>
    %cst_163 = arith.constant dense<0.000000e+00> : vector<8x16xf32>
    %297 = tpu.matmul %294, %296, %cst_163 {dimension_numbers = #tpu.dot_dimension_numbers<[1], [0], [0], [1], [0, 0, 1, 1], [], []>} : vector<8x16xf32>, vector<16x16xf32>, vector<8x16xf32> -> vector<8x16xf32>
    %298 = arith.addf %293, %297 : vector<8x16xf32>
    %299 = vector.extract_strided_slice %267 {offsets = [48, 0], sizes = [8, 16], strides = [1, 1]} : vector<72x16xf32> to vector<8x16xf32>
    %c15 = arith.constant 15 : index
    %c0_164 = arith.constant 0 : index
    %c0_165 = arith.constant 0 : index
    %300 = vector.load %arg5[%c15, %c0_164, %c0_165] : memref<27x16x16xf32, #tpu.memory_space<vmem>>, vector<1x16x16xf32>
    %301 = vector.shape_cast %300 : vector<1x16x16xf32> to vector<16x16xf32>
    %cst_166 = arith.constant dense<0.000000e+00> : vector<8x16xf32>
    %302 = tpu.matmul %299, %301, %cst_166 {dimension_numbers = #tpu.dot_dimension_numbers<[1], [0], [0], [1], [0, 0, 1, 1], [], []>} : vector<8x16xf32>, vector<16x16xf32>, vector<8x16xf32> -> vector<8x16xf32>
    %303 = arith.addf %298, %302 : vector<8x16xf32>
    %304 = vector.extract_strided_slice %267 {offsets = [56, 0], sizes = [8, 16], strides = [1, 1]} : vector<72x16xf32> to vector<8x16xf32>
    %c16 = arith.constant 16 : index
    %c0_167 = arith.constant 0 : index
    %c0_168 = arith.constant 0 : index
    %305 = vector.load %arg5[%c16, %c0_167, %c0_168] : memref<27x16x16xf32, #tpu.memory_space<vmem>>, vector<1x16x16xf32>
    %306 = vector.shape_cast %305 : vector<1x16x16xf32> to vector<16x16xf32>
    %cst_169 = arith.constant dense<0.000000e+00> : vector<8x16xf32>
    %307 = tpu.matmul %304, %306, %cst_169 {dimension_numbers = #tpu.dot_dimension_numbers<[1], [0], [0], [1], [0, 0, 1, 1], [], []>} : vector<8x16xf32>, vector<16x16xf32>, vector<8x16xf32> -> vector<8x16xf32>
    %308 = arith.addf %303, %307 : vector<8x16xf32>
    %309 = vector.extract_strided_slice %267 {offsets = [64, 0], sizes = [8, 16], strides = [1, 1]} : vector<72x16xf32> to vector<8x16xf32>
    %c17 = arith.constant 17 : index
    %c0_170 = arith.constant 0 : index
    %c0_171 = arith.constant 0 : index
    %310 = vector.load %arg5[%c17, %c0_170, %c0_171] : memref<27x16x16xf32, #tpu.memory_space<vmem>>, vector<1x16x16xf32>
    %311 = vector.shape_cast %310 : vector<1x16x16xf32> to vector<16x16xf32>
    %cst_172 = arith.constant dense<0.000000e+00> : vector<8x16xf32>
    %312 = tpu.matmul %309, %311, %cst_172 {dimension_numbers = #tpu.dot_dimension_numbers<[1], [0], [0], [1], [0, 0, 1, 1], [], []>} : vector<8x16xf32>, vector<16x16xf32>, vector<8x16xf32> -> vector<8x16xf32>
    %313 = arith.addf %308, %312 : vector<8x16xf32>
    %314 = vector.extract_strided_slice %263 {offsets = [8, 0], sizes = [8, 16], strides = [1, 1]} : vector<16x16xf32> to vector<8x16xf32>
    %c1_173 = arith.constant 1 : index
    %c0_174 = arith.constant 0 : index
    %c0_175 = arith.constant 0 : index
    %315 = vector.load %arg3[%c1_173, %c0_174, %c0_175] : memref<2x72x8xf32, #tpu.memory_space<vmem>>, vector<1x72x8xf32>
    %316 = vector.shape_cast %315 : vector<1x72x8xf32> to vector<72x8xf32>
    %cst_176 = arith.constant dense<0.000000e+00> : vector<72x16xf32>
    %317 = tpu.matmul %316, %314, %cst_176 {dimension_numbers = #tpu.dot_dimension_numbers<[1], [0], [0], [1], [0, 0, 1, 1], [], []>} : vector<72x8xf32>, vector<8x16xf32>, vector<72x16xf32> -> vector<72x16xf32>
    %cst_177 = arith.constant 0.000000e+00 : f32
    %318 = vector.broadcast %cst_177 : f32 to vector<8x16xf32>
    %319 = vector.extract_strided_slice %317 {offsets = [0, 0], sizes = [8, 16], strides = [1, 1]} : vector<72x16xf32> to vector<8x16xf32>
    %c9_178 = arith.constant 9 : index
    %c0_179 = arith.constant 0 : index
    %c0_180 = arith.constant 0 : index
    %320 = vector.load %arg5[%c9_178, %c0_179, %c0_180] : memref<27x16x16xf32, #tpu.memory_space<vmem>>, vector<1x16x16xf32>
    %321 = vector.shape_cast %320 : vector<1x16x16xf32> to vector<16x16xf32>
    %cst_181 = arith.constant dense<0.000000e+00> : vector<8x16xf32>
    %322 = tpu.matmul %319, %321, %cst_181 {dimension_numbers = #tpu.dot_dimension_numbers<[1], [0], [0], [1], [0, 0, 1, 1], [], []>} : vector<8x16xf32>, vector<16x16xf32>, vector<8x16xf32> -> vector<8x16xf32>
    %323 = arith.addf %318, %322 : vector<8x16xf32>
    %324 = vector.extract_strided_slice %317 {offsets = [8, 0], sizes = [8, 16], strides = [1, 1]} : vector<72x16xf32> to vector<8x16xf32>
    %c10_182 = arith.constant 10 : index
    %c0_183 = arith.constant 0 : index
    %c0_184 = arith.constant 0 : index
    %325 = vector.load %arg5[%c10_182, %c0_183, %c0_184] : memref<27x16x16xf32, #tpu.memory_space<vmem>>, vector<1x16x16xf32>
    %326 = vector.shape_cast %325 : vector<1x16x16xf32> to vector<16x16xf32>
    %cst_185 = arith.constant dense<0.000000e+00> : vector<8x16xf32>
    %327 = tpu.matmul %324, %326, %cst_185 {dimension_numbers = #tpu.dot_dimension_numbers<[1], [0], [0], [1], [0, 0, 1, 1], [], []>} : vector<8x16xf32>, vector<16x16xf32>, vector<8x16xf32> -> vector<8x16xf32>
    %328 = arith.addf %323, %327 : vector<8x16xf32>
    %329 = vector.extract_strided_slice %317 {offsets = [16, 0], sizes = [8, 16], strides = [1, 1]} : vector<72x16xf32> to vector<8x16xf32>
    %c11_186 = arith.constant 11 : index
    %c0_187 = arith.constant 0 : index
    %c0_188 = arith.constant 0 : index
    %330 = vector.load %arg5[%c11_186, %c0_187, %c0_188] : memref<27x16x16xf32, #tpu.memory_space<vmem>>, vector<1x16x16xf32>
    %331 = vector.shape_cast %330 : vector<1x16x16xf32> to vector<16x16xf32>
    %cst_189 = arith.constant dense<0.000000e+00> : vector<8x16xf32>
    %332 = tpu.matmul %329, %331, %cst_189 {dimension_numbers = #tpu.dot_dimension_numbers<[1], [0], [0], [1], [0, 0, 1, 1], [], []>} : vector<8x16xf32>, vector<16x16xf32>, vector<8x16xf32> -> vector<8x16xf32>
    %333 = arith.addf %328, %332 : vector<8x16xf32>
    %334 = vector.extract_strided_slice %317 {offsets = [24, 0], sizes = [8, 16], strides = [1, 1]} : vector<72x16xf32> to vector<8x16xf32>
    %c12_190 = arith.constant 12 : index
    %c0_191 = arith.constant 0 : index
    %c0_192 = arith.constant 0 : index
    %335 = vector.load %arg5[%c12_190, %c0_191, %c0_192] : memref<27x16x16xf32, #tpu.memory_space<vmem>>, vector<1x16x16xf32>
    %336 = vector.shape_cast %335 : vector<1x16x16xf32> to vector<16x16xf32>
    %cst_193 = arith.constant dense<0.000000e+00> : vector<8x16xf32>
    %337 = tpu.matmul %334, %336, %cst_193 {dimension_numbers = #tpu.dot_dimension_numbers<[1], [0], [0], [1], [0, 0, 1, 1], [], []>} : vector<8x16xf32>, vector<16x16xf32>, vector<8x16xf32> -> vector<8x16xf32>
    %338 = arith.addf %333, %337 : vector<8x16xf32>
    %339 = vector.extract_strided_slice %317 {offsets = [32, 0], sizes = [8, 16], strides = [1, 1]} : vector<72x16xf32> to vector<8x16xf32>
    %c13_194 = arith.constant 13 : index
    %c0_195 = arith.constant 0 : index
    %c0_196 = arith.constant 0 : index
    %340 = vector.load %arg5[%c13_194, %c0_195, %c0_196] : memref<27x16x16xf32, #tpu.memory_space<vmem>>, vector<1x16x16xf32>
    %341 = vector.shape_cast %340 : vector<1x16x16xf32> to vector<16x16xf32>
    %cst_197 = arith.constant dense<0.000000e+00> : vector<8x16xf32>
    %342 = tpu.matmul %339, %341, %cst_197 {dimension_numbers = #tpu.dot_dimension_numbers<[1], [0], [0], [1], [0, 0, 1, 1], [], []>} : vector<8x16xf32>, vector<16x16xf32>, vector<8x16xf32> -> vector<8x16xf32>
    %343 = arith.addf %338, %342 : vector<8x16xf32>
    %344 = vector.extract_strided_slice %317 {offsets = [40, 0], sizes = [8, 16], strides = [1, 1]} : vector<72x16xf32> to vector<8x16xf32>
    %c14_198 = arith.constant 14 : index
    %c0_199 = arith.constant 0 : index
    %c0_200 = arith.constant 0 : index
    %345 = vector.load %arg5[%c14_198, %c0_199, %c0_200] : memref<27x16x16xf32, #tpu.memory_space<vmem>>, vector<1x16x16xf32>
    %346 = vector.shape_cast %345 : vector<1x16x16xf32> to vector<16x16xf32>
    %cst_201 = arith.constant dense<0.000000e+00> : vector<8x16xf32>
    %347 = tpu.matmul %344, %346, %cst_201 {dimension_numbers = #tpu.dot_dimension_numbers<[1], [0], [0], [1], [0, 0, 1, 1], [], []>} : vector<8x16xf32>, vector<16x16xf32>, vector<8x16xf32> -> vector<8x16xf32>
    %348 = arith.addf %343, %347 : vector<8x16xf32>
    %349 = vector.extract_strided_slice %317 {offsets = [48, 0], sizes = [8, 16], strides = [1, 1]} : vector<72x16xf32> to vector<8x16xf32>
    %c15_202 = arith.constant 15 : index
    %c0_203 = arith.constant 0 : index
    %c0_204 = arith.constant 0 : index
    %350 = vector.load %arg5[%c15_202, %c0_203, %c0_204] : memref<27x16x16xf32, #tpu.memory_space<vmem>>, vector<1x16x16xf32>
    %351 = vector.shape_cast %350 : vector<1x16x16xf32> to vector<16x16xf32>
    %cst_205 = arith.constant dense<0.000000e+00> : vector<8x16xf32>
    %352 = tpu.matmul %349, %351, %cst_205 {dimension_numbers = #tpu.dot_dimension_numbers<[1], [0], [0], [1], [0, 0, 1, 1], [], []>} : vector<8x16xf32>, vector<16x16xf32>, vector<8x16xf32> -> vector<8x16xf32>
    %353 = arith.addf %348, %352 : vector<8x16xf32>
    %354 = vector.extract_strided_slice %317 {offsets = [56, 0], sizes = [8, 16], strides = [1, 1]} : vector<72x16xf32> to vector<8x16xf32>
    %c16_206 = arith.constant 16 : index
    %c0_207 = arith.constant 0 : index
    %c0_208 = arith.constant 0 : index
    %355 = vector.load %arg5[%c16_206, %c0_207, %c0_208] : memref<27x16x16xf32, #tpu.memory_space<vmem>>, vector<1x16x16xf32>
    %356 = vector.shape_cast %355 : vector<1x16x16xf32> to vector<16x16xf32>
    %cst_209 = arith.constant dense<0.000000e+00> : vector<8x16xf32>
    %357 = tpu.matmul %354, %356, %cst_209 {dimension_numbers = #tpu.dot_dimension_numbers<[1], [0], [0], [1], [0, 0, 1, 1], [], []>} : vector<8x16xf32>, vector<16x16xf32>, vector<8x16xf32> -> vector<8x16xf32>
    %358 = arith.addf %353, %357 : vector<8x16xf32>
    %359 = vector.extract_strided_slice %317 {offsets = [64, 0], sizes = [8, 16], strides = [1, 1]} : vector<72x16xf32> to vector<8x16xf32>
    %c17_210 = arith.constant 17 : index
    %c0_211 = arith.constant 0 : index
    %c0_212 = arith.constant 0 : index
    %360 = vector.load %arg5[%c17_210, %c0_211, %c0_212] : memref<27x16x16xf32, #tpu.memory_space<vmem>>, vector<1x16x16xf32>
    %361 = vector.shape_cast %360 : vector<1x16x16xf32> to vector<16x16xf32>
    %cst_213 = arith.constant dense<0.000000e+00> : vector<8x16xf32>
    %362 = tpu.matmul %359, %361, %cst_213 {dimension_numbers = #tpu.dot_dimension_numbers<[1], [0], [0], [1], [0, 0, 1, 1], [], []>} : vector<8x16xf32>, vector<16x16xf32>, vector<8x16xf32> -> vector<8x16xf32>
    %363 = arith.addf %358, %362 : vector<8x16xf32>
    %364 = tpu.concatenate %313, %363 in 0 : vector<8x16xf32>, vector<8x16xf32> -> vector<16x16xf32>
    %cst_214 = arith.constant 0.000000e+00 : f32
    %365 = vector.broadcast %cst_214 : f32 to vector<8x1xf32>
    %cst_215 = arith.constant 0.000000e+00 : f32
    %366 = vector.broadcast %cst_215 : f32 to vector<8x1xf32>
    %367 = vector.extract_strided_slice %364 {offsets = [0, 0], sizes = [8, 16], strides = [1, 1]} : vector<16x16xf32> to vector<8x16xf32>
    %cst_216 = arith.constant dense<0.000000e+00> : vector<8xf32>
    %368 = vector.multi_reduction <add>, %367, %cst_216 [1] : vector<8x16xf32> to vector<8xf32>
    %369 = vector.shape_cast %368 : vector<8xf32> to vector<8x1xf32>
    %370 = arith.addf %365, %369 : vector<8x1xf32>
    %371 = arith.mulf %367, %367 : vector<8x16xf32>
    %cst_217 = arith.constant dense<0.000000e+00> : vector<8xf32>
    %372 = vector.multi_reduction <add>, %371, %cst_217 [1] : vector<8x16xf32> to vector<8xf32>
    %373 = vector.shape_cast %372 : vector<8xf32> to vector<8x1xf32>
    %374 = arith.addf %366, %373 : vector<8x1xf32>
    %375 = vector.extract_strided_slice %364 {offsets = [8, 0], sizes = [8, 16], strides = [1, 1]} : vector<16x16xf32> to vector<8x16xf32>
    %cst_218 = arith.constant dense<0.000000e+00> : vector<8xf32>
    %376 = vector.multi_reduction <add>, %375, %cst_218 [1] : vector<8x16xf32> to vector<8xf32>
    %377 = vector.shape_cast %376 : vector<8xf32> to vector<8x1xf32>
    %378 = arith.addf %370, %377 : vector<8x1xf32>
    %379 = arith.mulf %375, %375 : vector<8x16xf32>
    %cst_219 = arith.constant dense<0.000000e+00> : vector<8xf32>
    %380 = vector.multi_reduction <add>, %379, %cst_219 [1] : vector<8x16xf32> to vector<8xf32>
    %381 = vector.shape_cast %380 : vector<8xf32> to vector<8x1xf32>
    %382 = arith.addf %374, %381 : vector<8x1xf32>
    %cst_220 = arith.constant 3.200000e+01 : f32
    %383 = vector.broadcast %cst_220 : f32 to vector<8x1xf32>
    %384 = arith.divf %378, %383 : vector<8x1xf32>
    %cst_221 = arith.constant 3.200000e+01 : f32
    %385 = vector.broadcast %cst_221 : f32 to vector<8x1xf32>
    %386 = arith.divf %382, %385 : vector<8x1xf32>
    %387 = arith.mulf %384, %384 : vector<8x1xf32>
    %388 = arith.subf %386, %387 : vector<8x1xf32>
    %cst_222 = arith.constant 9.99999974E-6 : f32
    %389 = vector.broadcast %cst_222 : f32 to vector<8x1xf32>
    %390 = arith.addf %388, %389 : vector<8x1xf32>
    %391 = math.rsqrt %390 : vector<8x1xf32>
    %392 = tpu.concatenate %384, %384 in 0 : vector<8x1xf32>, vector<8x1xf32> -> vector<16x1xf32>
    %393 = tpu.concatenate %391, %391 in 0 : vector<8x1xf32>, vector<8x1xf32> -> vector<16x1xf32>
    %394 = vector.broadcast %392 : vector<16x1xf32> to vector<16x16xf32>
    %395 = arith.subf %364, %394 : vector<16x16xf32>
    %396 = vector.broadcast %393 : vector<16x1xf32> to vector<16x16xf32>
    %397 = arith.mulf %395, %396 : vector<16x16xf32>
    %cst_223 = arith.constant 0.000000e+00 : f32
    %398 = vector.broadcast %cst_223 : f32 to vector<16x16xf32>
    %399 = arith.maximumf %397, %398 : vector<16x16xf32>
    %cst_224 = arith.constant dense<0.000000e+00> : vector<16x16xf32>
    %400 = tpu.matmul %399, %227, %cst_224 {dimension_numbers = #tpu.dot_dimension_numbers<[1], [0], [0], [1], [0, 0, 1, 1], [], []>} : vector<16x16xf32>, vector<16x16xf32>, vector<16x16xf32> -> vector<16x16xf32>
    %cst_225 = arith.constant 0.000000e+00 : f32
    %401 = vector.broadcast %cst_225 : f32 to vector<8x1xf32>
    %cst_226 = arith.constant 0.000000e+00 : f32
    %402 = vector.broadcast %cst_226 : f32 to vector<8x1xf32>
    %403 = vector.extract_strided_slice %400 {offsets = [0, 0], sizes = [8, 16], strides = [1, 1]} : vector<16x16xf32> to vector<8x16xf32>
    %cst_227 = arith.constant dense<0.000000e+00> : vector<8xf32>
    %404 = vector.multi_reduction <add>, %403, %cst_227 [1] : vector<8x16xf32> to vector<8xf32>
    %405 = vector.shape_cast %404 : vector<8xf32> to vector<8x1xf32>
    %406 = arith.addf %401, %405 : vector<8x1xf32>
    %407 = arith.mulf %403, %403 : vector<8x16xf32>
    %cst_228 = arith.constant dense<0.000000e+00> : vector<8xf32>
    %408 = vector.multi_reduction <add>, %407, %cst_228 [1] : vector<8x16xf32> to vector<8xf32>
    %409 = vector.shape_cast %408 : vector<8xf32> to vector<8x1xf32>
    %410 = arith.addf %402, %409 : vector<8x1xf32>
    %411 = vector.extract_strided_slice %400 {offsets = [8, 0], sizes = [8, 16], strides = [1, 1]} : vector<16x16xf32> to vector<8x16xf32>
    %cst_229 = arith.constant dense<0.000000e+00> : vector<8xf32>
    %412 = vector.multi_reduction <add>, %411, %cst_229 [1] : vector<8x16xf32> to vector<8xf32>
    %413 = vector.shape_cast %412 : vector<8xf32> to vector<8x1xf32>
    %414 = arith.addf %406, %413 : vector<8x1xf32>
    %415 = arith.mulf %411, %411 : vector<8x16xf32>
    %cst_230 = arith.constant dense<0.000000e+00> : vector<8xf32>
    %416 = vector.multi_reduction <add>, %415, %cst_230 [1] : vector<8x16xf32> to vector<8xf32>
    %417 = vector.shape_cast %416 : vector<8xf32> to vector<8x1xf32>
    %418 = arith.addf %410, %417 : vector<8x1xf32>
    %cst_231 = arith.constant 3.200000e+01 : f32
    %419 = vector.broadcast %cst_231 : f32 to vector<8x1xf32>
    %420 = arith.divf %414, %419 : vector<8x1xf32>
    %cst_232 = arith.constant 3.200000e+01 : f32
    %421 = vector.broadcast %cst_232 : f32 to vector<8x1xf32>
    %422 = arith.divf %418, %421 : vector<8x1xf32>
    %423 = arith.mulf %420, %420 : vector<8x1xf32>
    %424 = arith.subf %422, %423 : vector<8x1xf32>
    %cst_233 = arith.constant 9.99999974E-6 : f32
    %425 = vector.broadcast %cst_233 : f32 to vector<8x1xf32>
    %426 = arith.addf %424, %425 : vector<8x1xf32>
    %427 = math.rsqrt %426 : vector<8x1xf32>
    %428 = tpu.concatenate %420, %420 in 0 : vector<8x1xf32>, vector<8x1xf32> -> vector<16x1xf32>
    %429 = tpu.concatenate %427, %427 in 0 : vector<8x1xf32>, vector<8x1xf32> -> vector<16x1xf32>
    %430 = vector.broadcast %428 : vector<16x1xf32> to vector<16x16xf32>
    %431 = arith.subf %400, %430 : vector<16x16xf32>
    %432 = vector.broadcast %429 : vector<16x1xf32> to vector<16x16xf32>
    %433 = arith.mulf %431, %432 : vector<16x16xf32>
    %434 = arith.addf %433, %223 : vector<16x16xf32>
    %cst_234 = arith.constant 0.000000e+00 : f32
    %435 = vector.broadcast %cst_234 : f32 to vector<16x16xf32>
    %436 = arith.maximumf %434, %435 : vector<16x16xf32>
    %c2_235 = arith.constant 2 : index
    %c0_236 = arith.constant 0 : index
    %c0_237 = arith.constant 0 : index
    %437 = vector.load %arg4[%c2_235, %c0_236, %c0_237] : memref<3x16x16xf32, #tpu.memory_space<vmem>>, vector<1x16x16xf32>
    %438 = vector.shape_cast %437 : vector<1x16x16xf32> to vector<16x16xf32>
    %c2_238 = arith.constant 2 : index
    %c0_239 = arith.constant 0 : index
    %c0_240 = arith.constant 0 : index
    %439 = vector.load %arg6[%c2_238, %c0_239, %c0_240] : memref<3x16x16xf32, #tpu.memory_space<vmem>>, vector<1x16x16xf32>
    %440 = vector.shape_cast %439 : vector<1x16x16xf32> to vector<16x16xf32>
    %cst_241 = arith.constant dense<0.000000e+00> : vector<16x16xf32>
    %441 = tpu.matmul %436, %438, %cst_241 {dimension_numbers = #tpu.dot_dimension_numbers<[1], [0], [0], [1], [0, 0, 1, 1], [], []>} : vector<16x16xf32>, vector<16x16xf32>, vector<16x16xf32> -> vector<16x16xf32>
    %cst_242 = arith.constant 0.000000e+00 : f32
    %442 = vector.broadcast %cst_242 : f32 to vector<8x1xf32>
    %cst_243 = arith.constant 0.000000e+00 : f32
    %443 = vector.broadcast %cst_243 : f32 to vector<8x1xf32>
    %444 = vector.extract_strided_slice %441 {offsets = [0, 0], sizes = [8, 16], strides = [1, 1]} : vector<16x16xf32> to vector<8x16xf32>
    %cst_244 = arith.constant dense<0.000000e+00> : vector<8xf32>
    %445 = vector.multi_reduction <add>, %444, %cst_244 [1] : vector<8x16xf32> to vector<8xf32>
    %446 = vector.shape_cast %445 : vector<8xf32> to vector<8x1xf32>
    %447 = arith.addf %442, %446 : vector<8x1xf32>
    %448 = arith.mulf %444, %444 : vector<8x16xf32>
    %cst_245 = arith.constant dense<0.000000e+00> : vector<8xf32>
    %449 = vector.multi_reduction <add>, %448, %cst_245 [1] : vector<8x16xf32> to vector<8xf32>
    %450 = vector.shape_cast %449 : vector<8xf32> to vector<8x1xf32>
    %451 = arith.addf %443, %450 : vector<8x1xf32>
    %452 = vector.extract_strided_slice %441 {offsets = [8, 0], sizes = [8, 16], strides = [1, 1]} : vector<16x16xf32> to vector<8x16xf32>
    %cst_246 = arith.constant dense<0.000000e+00> : vector<8xf32>
    %453 = vector.multi_reduction <add>, %452, %cst_246 [1] : vector<8x16xf32> to vector<8xf32>
    %454 = vector.shape_cast %453 : vector<8xf32> to vector<8x1xf32>
    %455 = arith.addf %447, %454 : vector<8x1xf32>
    %456 = arith.mulf %452, %452 : vector<8x16xf32>
    %cst_247 = arith.constant dense<0.000000e+00> : vector<8xf32>
    %457 = vector.multi_reduction <add>, %456, %cst_247 [1] : vector<8x16xf32> to vector<8xf32>
    %458 = vector.shape_cast %457 : vector<8xf32> to vector<8x1xf32>
    %459 = arith.addf %451, %458 : vector<8x1xf32>
    %cst_248 = arith.constant 3.200000e+01 : f32
    %460 = vector.broadcast %cst_248 : f32 to vector<8x1xf32>
    %461 = arith.divf %455, %460 : vector<8x1xf32>
    %cst_249 = arith.constant 3.200000e+01 : f32
    %462 = vector.broadcast %cst_249 : f32 to vector<8x1xf32>
    %463 = arith.divf %459, %462 : vector<8x1xf32>
    %464 = arith.mulf %461, %461 : vector<8x1xf32>
    %465 = arith.subf %463, %464 : vector<8x1xf32>
    %cst_250 = arith.constant 9.99999974E-6 : f32
    %466 = vector.broadcast %cst_250 : f32 to vector<8x1xf32>
    %467 = arith.addf %465, %466 : vector<8x1xf32>
    %468 = math.rsqrt %467 : vector<8x1xf32>
    %469 = tpu.concatenate %461, %461 in 0 : vector<8x1xf32>, vector<8x1xf32> -> vector<16x1xf32>
    %470 = tpu.concatenate %468, %468 in 0 : vector<8x1xf32>, vector<8x1xf32> -> vector<16x1xf32>
    %471 = vector.broadcast %469 : vector<16x1xf32> to vector<16x16xf32>
    %472 = arith.subf %441, %471 : vector<16x16xf32>
    %473 = vector.broadcast %470 : vector<16x1xf32> to vector<16x16xf32>
    %474 = arith.mulf %472, %473 : vector<16x16xf32>
    %cst_251 = arith.constant 0.000000e+00 : f32
    %475 = vector.broadcast %cst_251 : f32 to vector<16x16xf32>
    %476 = arith.maximumf %474, %475 : vector<16x16xf32>
    %477 = vector.extract_strided_slice %476 {offsets = [0, 0], sizes = [8, 16], strides = [1, 1]} : vector<16x16xf32> to vector<8x16xf32>
    %c0_252 = arith.constant 0 : index
    %c0_253 = arith.constant 0 : index
    %c0_254 = arith.constant 0 : index
    %478 = vector.load %arg3[%c0_252, %c0_253, %c0_254] : memref<2x72x8xf32, #tpu.memory_space<vmem>>, vector<1x72x8xf32>
    %479 = vector.shape_cast %478 : vector<1x72x8xf32> to vector<72x8xf32>
    %cst_255 = arith.constant dense<0.000000e+00> : vector<72x16xf32>
    %480 = tpu.matmul %479, %477, %cst_255 {dimension_numbers = #tpu.dot_dimension_numbers<[1], [0], [0], [1], [0, 0, 1, 1], [], []>} : vector<72x8xf32>, vector<8x16xf32>, vector<72x16xf32> -> vector<72x16xf32>
    %cst_256 = arith.constant 0.000000e+00 : f32
    %481 = vector.broadcast %cst_256 : f32 to vector<8x16xf32>
    %482 = vector.extract_strided_slice %480 {offsets = [0, 0], sizes = [8, 16], strides = [1, 1]} : vector<72x16xf32> to vector<8x16xf32>
    %c18 = arith.constant 18 : index
    %c0_257 = arith.constant 0 : index
    %c0_258 = arith.constant 0 : index
    %483 = vector.load %arg5[%c18, %c0_257, %c0_258] : memref<27x16x16xf32, #tpu.memory_space<vmem>>, vector<1x16x16xf32>
    %484 = vector.shape_cast %483 : vector<1x16x16xf32> to vector<16x16xf32>
    %cst_259 = arith.constant dense<0.000000e+00> : vector<8x16xf32>
    %485 = tpu.matmul %482, %484, %cst_259 {dimension_numbers = #tpu.dot_dimension_numbers<[1], [0], [0], [1], [0, 0, 1, 1], [], []>} : vector<8x16xf32>, vector<16x16xf32>, vector<8x16xf32> -> vector<8x16xf32>
    %486 = arith.addf %481, %485 : vector<8x16xf32>
    %487 = vector.extract_strided_slice %480 {offsets = [8, 0], sizes = [8, 16], strides = [1, 1]} : vector<72x16xf32> to vector<8x16xf32>
    %c19 = arith.constant 19 : index
    %c0_260 = arith.constant 0 : index
    %c0_261 = arith.constant 0 : index
    %488 = vector.load %arg5[%c19, %c0_260, %c0_261] : memref<27x16x16xf32, #tpu.memory_space<vmem>>, vector<1x16x16xf32>
    %489 = vector.shape_cast %488 : vector<1x16x16xf32> to vector<16x16xf32>
    %cst_262 = arith.constant dense<0.000000e+00> : vector<8x16xf32>
    %490 = tpu.matmul %487, %489, %cst_262 {dimension_numbers = #tpu.dot_dimension_numbers<[1], [0], [0], [1], [0, 0, 1, 1], [], []>} : vector<8x16xf32>, vector<16x16xf32>, vector<8x16xf32> -> vector<8x16xf32>
    %491 = arith.addf %486, %490 : vector<8x16xf32>
    %492 = vector.extract_strided_slice %480 {offsets = [16, 0], sizes = [8, 16], strides = [1, 1]} : vector<72x16xf32> to vector<8x16xf32>
    %c20 = arith.constant 20 : index
    %c0_263 = arith.constant 0 : index
    %c0_264 = arith.constant 0 : index
    %493 = vector.load %arg5[%c20, %c0_263, %c0_264] : memref<27x16x16xf32, #tpu.memory_space<vmem>>, vector<1x16x16xf32>
    %494 = vector.shape_cast %493 : vector<1x16x16xf32> to vector<16x16xf32>
    %cst_265 = arith.constant dense<0.000000e+00> : vector<8x16xf32>
    %495 = tpu.matmul %492, %494, %cst_265 {dimension_numbers = #tpu.dot_dimension_numbers<[1], [0], [0], [1], [0, 0, 1, 1], [], []>} : vector<8x16xf32>, vector<16x16xf32>, vector<8x16xf32> -> vector<8x16xf32>
    %496 = arith.addf %491, %495 : vector<8x16xf32>
    %497 = vector.extract_strided_slice %480 {offsets = [24, 0], sizes = [8, 16], strides = [1, 1]} : vector<72x16xf32> to vector<8x16xf32>
    %c21 = arith.constant 21 : index
    %c0_266 = arith.constant 0 : index
    %c0_267 = arith.constant 0 : index
    %498 = vector.load %arg5[%c21, %c0_266, %c0_267] : memref<27x16x16xf32, #tpu.memory_space<vmem>>, vector<1x16x16xf32>
    %499 = vector.shape_cast %498 : vector<1x16x16xf32> to vector<16x16xf32>
    %cst_268 = arith.constant dense<0.000000e+00> : vector<8x16xf32>
    %500 = tpu.matmul %497, %499, %cst_268 {dimension_numbers = #tpu.dot_dimension_numbers<[1], [0], [0], [1], [0, 0, 1, 1], [], []>} : vector<8x16xf32>, vector<16x16xf32>, vector<8x16xf32> -> vector<8x16xf32>
    %501 = arith.addf %496, %500 : vector<8x16xf32>
    %502 = vector.extract_strided_slice %480 {offsets = [32, 0], sizes = [8, 16], strides = [1, 1]} : vector<72x16xf32> to vector<8x16xf32>
    %c22 = arith.constant 22 : index
    %c0_269 = arith.constant 0 : index
    %c0_270 = arith.constant 0 : index
    %503 = vector.load %arg5[%c22, %c0_269, %c0_270] : memref<27x16x16xf32, #tpu.memory_space<vmem>>, vector<1x16x16xf32>
    %504 = vector.shape_cast %503 : vector<1x16x16xf32> to vector<16x16xf32>
    %cst_271 = arith.constant dense<0.000000e+00> : vector<8x16xf32>
    %505 = tpu.matmul %502, %504, %cst_271 {dimension_numbers = #tpu.dot_dimension_numbers<[1], [0], [0], [1], [0, 0, 1, 1], [], []>} : vector<8x16xf32>, vector<16x16xf32>, vector<8x16xf32> -> vector<8x16xf32>
    %506 = arith.addf %501, %505 : vector<8x16xf32>
    %507 = vector.extract_strided_slice %480 {offsets = [40, 0], sizes = [8, 16], strides = [1, 1]} : vector<72x16xf32> to vector<8x16xf32>
    %c23 = arith.constant 23 : index
    %c0_272 = arith.constant 0 : index
    %c0_273 = arith.constant 0 : index
    %508 = vector.load %arg5[%c23, %c0_272, %c0_273] : memref<27x16x16xf32, #tpu.memory_space<vmem>>, vector<1x16x16xf32>
    %509 = vector.shape_cast %508 : vector<1x16x16xf32> to vector<16x16xf32>
    %cst_274 = arith.constant dense<0.000000e+00> : vector<8x16xf32>
    %510 = tpu.matmul %507, %509, %cst_274 {dimension_numbers = #tpu.dot_dimension_numbers<[1], [0], [0], [1], [0, 0, 1, 1], [], []>} : vector<8x16xf32>, vector<16x16xf32>, vector<8x16xf32> -> vector<8x16xf32>
    %511 = arith.addf %506, %510 : vector<8x16xf32>
    %512 = vector.extract_strided_slice %480 {offsets = [48, 0], sizes = [8, 16], strides = [1, 1]} : vector<72x16xf32> to vector<8x16xf32>
    %c24 = arith.constant 24 : index
    %c0_275 = arith.constant 0 : index
    %c0_276 = arith.constant 0 : index
    %513 = vector.load %arg5[%c24, %c0_275, %c0_276] : memref<27x16x16xf32, #tpu.memory_space<vmem>>, vector<1x16x16xf32>
    %514 = vector.shape_cast %513 : vector<1x16x16xf32> to vector<16x16xf32>
    %cst_277 = arith.constant dense<0.000000e+00> : vector<8x16xf32>
    %515 = tpu.matmul %512, %514, %cst_277 {dimension_numbers = #tpu.dot_dimension_numbers<[1], [0], [0], [1], [0, 0, 1, 1], [], []>} : vector<8x16xf32>, vector<16x16xf32>, vector<8x16xf32> -> vector<8x16xf32>
    %516 = arith.addf %511, %515 : vector<8x16xf32>
    %517 = vector.extract_strided_slice %480 {offsets = [56, 0], sizes = [8, 16], strides = [1, 1]} : vector<72x16xf32> to vector<8x16xf32>
    %c25 = arith.constant 25 : index
    %c0_278 = arith.constant 0 : index
    %c0_279 = arith.constant 0 : index
    %518 = vector.load %arg5[%c25, %c0_278, %c0_279] : memref<27x16x16xf32, #tpu.memory_space<vmem>>, vector<1x16x16xf32>
    %519 = vector.shape_cast %518 : vector<1x16x16xf32> to vector<16x16xf32>
    %cst_280 = arith.constant dense<0.000000e+00> : vector<8x16xf32>
    %520 = tpu.matmul %517, %519, %cst_280 {dimension_numbers = #tpu.dot_dimension_numbers<[1], [0], [0], [1], [0, 0, 1, 1], [], []>} : vector<8x16xf32>, vector<16x16xf32>, vector<8x16xf32> -> vector<8x16xf32>
    %521 = arith.addf %516, %520 : vector<8x16xf32>
    %522 = vector.extract_strided_slice %480 {offsets = [64, 0], sizes = [8, 16], strides = [1, 1]} : vector<72x16xf32> to vector<8x16xf32>
    %c26 = arith.constant 26 : index
    %c0_281 = arith.constant 0 : index
    %c0_282 = arith.constant 0 : index
    %523 = vector.load %arg5[%c26, %c0_281, %c0_282] : memref<27x16x16xf32, #tpu.memory_space<vmem>>, vector<1x16x16xf32>
    %524 = vector.shape_cast %523 : vector<1x16x16xf32> to vector<16x16xf32>
    %cst_283 = arith.constant dense<0.000000e+00> : vector<8x16xf32>
    %525 = tpu.matmul %522, %524, %cst_283 {dimension_numbers = #tpu.dot_dimension_numbers<[1], [0], [0], [1], [0, 0, 1, 1], [], []>} : vector<8x16xf32>, vector<16x16xf32>, vector<8x16xf32> -> vector<8x16xf32>
    %526 = arith.addf %521, %525 : vector<8x16xf32>
    %527 = vector.extract_strided_slice %476 {offsets = [8, 0], sizes = [8, 16], strides = [1, 1]} : vector<16x16xf32> to vector<8x16xf32>
    %c1_284 = arith.constant 1 : index
    %c0_285 = arith.constant 0 : index
    %c0_286 = arith.constant 0 : index
    %528 = vector.load %arg3[%c1_284, %c0_285, %c0_286] : memref<2x72x8xf32, #tpu.memory_space<vmem>>, vector<1x72x8xf32>
    %529 = vector.shape_cast %528 : vector<1x72x8xf32> to vector<72x8xf32>
    %cst_287 = arith.constant dense<0.000000e+00> : vector<72x16xf32>
    %530 = tpu.matmul %529, %527, %cst_287 {dimension_numbers = #tpu.dot_dimension_numbers<[1], [0], [0], [1], [0, 0, 1, 1], [], []>} : vector<72x8xf32>, vector<8x16xf32>, vector<72x16xf32> -> vector<72x16xf32>
    %cst_288 = arith.constant 0.000000e+00 : f32
    %531 = vector.broadcast %cst_288 : f32 to vector<8x16xf32>
    %532 = vector.extract_strided_slice %530 {offsets = [0, 0], sizes = [8, 16], strides = [1, 1]} : vector<72x16xf32> to vector<8x16xf32>
    %c18_289 = arith.constant 18 : index
    %c0_290 = arith.constant 0 : index
    %c0_291 = arith.constant 0 : index
    %533 = vector.load %arg5[%c18_289, %c0_290, %c0_291] : memref<27x16x16xf32, #tpu.memory_space<vmem>>, vector<1x16x16xf32>
    %534 = vector.shape_cast %533 : vector<1x16x16xf32> to vector<16x16xf32>
    %cst_292 = arith.constant dense<0.000000e+00> : vector<8x16xf32>
    %535 = tpu.matmul %532, %534, %cst_292 {dimension_numbers = #tpu.dot_dimension_numbers<[1], [0], [0], [1], [0, 0, 1, 1], [], []>} : vector<8x16xf32>, vector<16x16xf32>, vector<8x16xf32> -> vector<8x16xf32>
    %536 = arith.addf %531, %535 : vector<8x16xf32>
    %537 = vector.extract_strided_slice %530 {offsets = [8, 0], sizes = [8, 16], strides = [1, 1]} : vector<72x16xf32> to vector<8x16xf32>
    %c19_293 = arith.constant 19 : index
    %c0_294 = arith.constant 0 : index
    %c0_295 = arith.constant 0 : index
    %538 = vector.load %arg5[%c19_293, %c0_294, %c0_295] : memref<27x16x16xf32, #tpu.memory_space<vmem>>, vector<1x16x16xf32>
    %539 = vector.shape_cast %538 : vector<1x16x16xf32> to vector<16x16xf32>
    %cst_296 = arith.constant dense<0.000000e+00> : vector<8x16xf32>
    %540 = tpu.matmul %537, %539, %cst_296 {dimension_numbers = #tpu.dot_dimension_numbers<[1], [0], [0], [1], [0, 0, 1, 1], [], []>} : vector<8x16xf32>, vector<16x16xf32>, vector<8x16xf32> -> vector<8x16xf32>
    %541 = arith.addf %536, %540 : vector<8x16xf32>
    %542 = vector.extract_strided_slice %530 {offsets = [16, 0], sizes = [8, 16], strides = [1, 1]} : vector<72x16xf32> to vector<8x16xf32>
    %c20_297 = arith.constant 20 : index
    %c0_298 = arith.constant 0 : index
    %c0_299 = arith.constant 0 : index
    %543 = vector.load %arg5[%c20_297, %c0_298, %c0_299] : memref<27x16x16xf32, #tpu.memory_space<vmem>>, vector<1x16x16xf32>
    %544 = vector.shape_cast %543 : vector<1x16x16xf32> to vector<16x16xf32>
    %cst_300 = arith.constant dense<0.000000e+00> : vector<8x16xf32>
    %545 = tpu.matmul %542, %544, %cst_300 {dimension_numbers = #tpu.dot_dimension_numbers<[1], [0], [0], [1], [0, 0, 1, 1], [], []>} : vector<8x16xf32>, vector<16x16xf32>, vector<8x16xf32> -> vector<8x16xf32>
    %546 = arith.addf %541, %545 : vector<8x16xf32>
    %547 = vector.extract_strided_slice %530 {offsets = [24, 0], sizes = [8, 16], strides = [1, 1]} : vector<72x16xf32> to vector<8x16xf32>
    %c21_301 = arith.constant 21 : index
    %c0_302 = arith.constant 0 : index
    %c0_303 = arith.constant 0 : index
    %548 = vector.load %arg5[%c21_301, %c0_302, %c0_303] : memref<27x16x16xf32, #tpu.memory_space<vmem>>, vector<1x16x16xf32>
    %549 = vector.shape_cast %548 : vector<1x16x16xf32> to vector<16x16xf32>
    %cst_304 = arith.constant dense<0.000000e+00> : vector<8x16xf32>
    %550 = tpu.matmul %547, %549, %cst_304 {dimension_numbers = #tpu.dot_dimension_numbers<[1], [0], [0], [1], [0, 0, 1, 1], [], []>} : vector<8x16xf32>, vector<16x16xf32>, vector<8x16xf32> -> vector<8x16xf32>
    %551 = arith.addf %546, %550 : vector<8x16xf32>
    %552 = vector.extract_strided_slice %530 {offsets = [32, 0], sizes = [8, 16], strides = [1, 1]} : vector<72x16xf32> to vector<8x16xf32>
    %c22_305 = arith.constant 22 : index
    %c0_306 = arith.constant 0 : index
    %c0_307 = arith.constant 0 : index
    %553 = vector.load %arg5[%c22_305, %c0_306, %c0_307] : memref<27x16x16xf32, #tpu.memory_space<vmem>>, vector<1x16x16xf32>
    %554 = vector.shape_cast %553 : vector<1x16x16xf32> to vector<16x16xf32>
    %cst_308 = arith.constant dense<0.000000e+00> : vector<8x16xf32>
    %555 = tpu.matmul %552, %554, %cst_308 {dimension_numbers = #tpu.dot_dimension_numbers<[1], [0], [0], [1], [0, 0, 1, 1], [], []>} : vector<8x16xf32>, vector<16x16xf32>, vector<8x16xf32> -> vector<8x16xf32>
    %556 = arith.addf %551, %555 : vector<8x16xf32>
    %557 = vector.extract_strided_slice %530 {offsets = [40, 0], sizes = [8, 16], strides = [1, 1]} : vector<72x16xf32> to vector<8x16xf32>
    %c23_309 = arith.constant 23 : index
    %c0_310 = arith.constant 0 : index
    %c0_311 = arith.constant 0 : index
    %558 = vector.load %arg5[%c23_309, %c0_310, %c0_311] : memref<27x16x16xf32, #tpu.memory_space<vmem>>, vector<1x16x16xf32>
    %559 = vector.shape_cast %558 : vector<1x16x16xf32> to vector<16x16xf32>
    %cst_312 = arith.constant dense<0.000000e+00> : vector<8x16xf32>
    %560 = tpu.matmul %557, %559, %cst_312 {dimension_numbers = #tpu.dot_dimension_numbers<[1], [0], [0], [1], [0, 0, 1, 1], [], []>} : vector<8x16xf32>, vector<16x16xf32>, vector<8x16xf32> -> vector<8x16xf32>
    %561 = arith.addf %556, %560 : vector<8x16xf32>
    %562 = vector.extract_strided_slice %530 {offsets = [48, 0], sizes = [8, 16], strides = [1, 1]} : vector<72x16xf32> to vector<8x16xf32>
    %c24_313 = arith.constant 24 : index
    %c0_314 = arith.constant 0 : index
    %c0_315 = arith.constant 0 : index
    %563 = vector.load %arg5[%c24_313, %c0_314, %c0_315] : memref<27x16x16xf32, #tpu.memory_space<vmem>>, vector<1x16x16xf32>
    %564 = vector.shape_cast %563 : vector<1x16x16xf32> to vector<16x16xf32>
    %cst_316 = arith.constant dense<0.000000e+00> : vector<8x16xf32>
    %565 = tpu.matmul %562, %564, %cst_316 {dimension_numbers = #tpu.dot_dimension_numbers<[1], [0], [0], [1], [0, 0, 1, 1], [], []>} : vector<8x16xf32>, vector<16x16xf32>, vector<8x16xf32> -> vector<8x16xf32>
    %566 = arith.addf %561, %565 : vector<8x16xf32>
    %567 = vector.extract_strided_slice %530 {offsets = [56, 0], sizes = [8, 16], strides = [1, 1]} : vector<72x16xf32> to vector<8x16xf32>
    %c25_317 = arith.constant 25 : index
    %c0_318 = arith.constant 0 : index
    %c0_319 = arith.constant 0 : index
    %568 = vector.load %arg5[%c25_317, %c0_318, %c0_319] : memref<27x16x16xf32, #tpu.memory_space<vmem>>, vector<1x16x16xf32>
    %569 = vector.shape_cast %568 : vector<1x16x16xf32> to vector<16x16xf32>
    %cst_320 = arith.constant dense<0.000000e+00> : vector<8x16xf32>
    %570 = tpu.matmul %567, %569, %cst_320 {dimension_numbers = #tpu.dot_dimension_numbers<[1], [0], [0], [1], [0, 0, 1, 1], [], []>} : vector<8x16xf32>, vector<16x16xf32>, vector<8x16xf32> -> vector<8x16xf32>
    %571 = arith.addf %566, %570 : vector<8x16xf32>
    %572 = vector.extract_strided_slice %530 {offsets = [64, 0], sizes = [8, 16], strides = [1, 1]} : vector<72x16xf32> to vector<8x16xf32>
    %c26_321 = arith.constant 26 : index
    %c0_322 = arith.constant 0 : index
    %c0_323 = arith.constant 0 : index
    %573 = vector.load %arg5[%c26_321, %c0_322, %c0_323] : memref<27x16x16xf32, #tpu.memory_space<vmem>>, vector<1x16x16xf32>
    %574 = vector.shape_cast %573 : vector<1x16x16xf32> to vector<16x16xf32>
    %cst_324 = arith.constant dense<0.000000e+00> : vector<8x16xf32>
    %575 = tpu.matmul %572, %574, %cst_324 {dimension_numbers = #tpu.dot_dimension_numbers<[1], [0], [0], [1], [0, 0, 1, 1], [], []>} : vector<8x16xf32>, vector<16x16xf32>, vector<8x16xf32> -> vector<8x16xf32>
    %576 = arith.addf %571, %575 : vector<8x16xf32>
    %577 = tpu.concatenate %526, %576 in 0 : vector<8x16xf32>, vector<8x16xf32> -> vector<16x16xf32>
    %cst_325 = arith.constant 0.000000e+00 : f32
    %578 = vector.broadcast %cst_325 : f32 to vector<8x1xf32>
    %cst_326 = arith.constant 0.000000e+00 : f32
    %579 = vector.broadcast %cst_326 : f32 to vector<8x1xf32>
    %580 = vector.extract_strided_slice %577 {offsets = [0, 0], sizes = [8, 16], strides = [1, 1]} : vector<16x16xf32> to vector<8x16xf32>
    %cst_327 = arith.constant dense<0.000000e+00> : vector<8xf32>
    %581 = vector.multi_reduction <add>, %580, %cst_327 [1] : vector<8x16xf32> to vector<8xf32>
    %582 = vector.shape_cast %581 : vector<8xf32> to vector<8x1xf32>
    %583 = arith.addf %578, %582 : vector<8x1xf32>
    %584 = arith.mulf %580, %580 : vector<8x16xf32>
    %cst_328 = arith.constant dense<0.000000e+00> : vector<8xf32>
    %585 = vector.multi_reduction <add>, %584, %cst_328 [1] : vector<8x16xf32> to vector<8xf32>
    %586 = vector.shape_cast %585 : vector<8xf32> to vector<8x1xf32>
    %587 = arith.addf %579, %586 : vector<8x1xf32>
    %588 = vector.extract_strided_slice %577 {offsets = [8, 0], sizes = [8, 16], strides = [1, 1]} : vector<16x16xf32> to vector<8x16xf32>
    %cst_329 = arith.constant dense<0.000000e+00> : vector<8xf32>
    %589 = vector.multi_reduction <add>, %588, %cst_329 [1] : vector<8x16xf32> to vector<8xf32>
    %590 = vector.shape_cast %589 : vector<8xf32> to vector<8x1xf32>
    %591 = arith.addf %583, %590 : vector<8x1xf32>
    %592 = arith.mulf %588, %588 : vector<8x16xf32>
    %cst_330 = arith.constant dense<0.000000e+00> : vector<8xf32>
    %593 = vector.multi_reduction <add>, %592, %cst_330 [1] : vector<8x16xf32> to vector<8xf32>
    %594 = vector.shape_cast %593 : vector<8xf32> to vector<8x1xf32>
    %595 = arith.addf %587, %594 : vector<8x1xf32>
    %cst_331 = arith.constant 3.200000e+01 : f32
    %596 = vector.broadcast %cst_331 : f32 to vector<8x1xf32>
    %597 = arith.divf %591, %596 : vector<8x1xf32>
    %cst_332 = arith.constant 3.200000e+01 : f32
    %598 = vector.broadcast %cst_332 : f32 to vector<8x1xf32>
    %599 = arith.divf %595, %598 : vector<8x1xf32>
    %600 = arith.mulf %597, %597 : vector<8x1xf32>
    %601 = arith.subf %599, %600 : vector<8x1xf32>
    %cst_333 = arith.constant 9.99999974E-6 : f32
    %602 = vector.broadcast %cst_333 : f32 to vector<8x1xf32>
    %603 = arith.addf %601, %602 : vector<8x1xf32>
    %604 = math.rsqrt %603 : vector<8x1xf32>
    %605 = tpu.concatenate %597, %597 in 0 : vector<8x1xf32>, vector<8x1xf32> -> vector<16x1xf32>
    %606 = tpu.concatenate %604, %604 in 0 : vector<8x1xf32>, vector<8x1xf32> -> vector<16x1xf32>
    %607 = vector.broadcast %605 : vector<16x1xf32> to vector<16x16xf32>
    %608 = arith.subf %577, %607 : vector<16x16xf32>
    %609 = vector.broadcast %606 : vector<16x1xf32> to vector<16x16xf32>
    %610 = arith.mulf %608, %609 : vector<16x16xf32>
    %cst_334 = arith.constant 0.000000e+00 : f32
    %611 = vector.broadcast %cst_334 : f32 to vector<16x16xf32>
    %612 = arith.maximumf %610, %611 : vector<16x16xf32>
    %cst_335 = arith.constant dense<0.000000e+00> : vector<16x16xf32>
    %613 = tpu.matmul %612, %440, %cst_335 {dimension_numbers = #tpu.dot_dimension_numbers<[1], [0], [0], [1], [0, 0, 1, 1], [], []>} : vector<16x16xf32>, vector<16x16xf32>, vector<16x16xf32> -> vector<16x16xf32>
    %cst_336 = arith.constant 0.000000e+00 : f32
    %614 = vector.broadcast %cst_336 : f32 to vector<8x1xf32>
    %cst_337 = arith.constant 0.000000e+00 : f32
    %615 = vector.broadcast %cst_337 : f32 to vector<8x1xf32>
    %616 = vector.extract_strided_slice %613 {offsets = [0, 0], sizes = [8, 16], strides = [1, 1]} : vector<16x16xf32> to vector<8x16xf32>
    %cst_338 = arith.constant dense<0.000000e+00> : vector<8xf32>
    %617 = vector.multi_reduction <add>, %616, %cst_338 [1] : vector<8x16xf32> to vector<8xf32>
    %618 = vector.shape_cast %617 : vector<8xf32> to vector<8x1xf32>
    %619 = arith.addf %614, %618 : vector<8x1xf32>
    %620 = arith.mulf %616, %616 : vector<8x16xf32>
    %cst_339 = arith.constant dense<0.000000e+00> : vector<8xf32>
    %621 = vector.multi_reduction <add>, %620, %cst_339 [1] : vector<8x16xf32> to vector<8xf32>
    %622 = vector.shape_cast %621 : vector<8xf32> to vector<8x1xf32>
    %623 = arith.addf %615, %622 : vector<8x1xf32>
    %624 = vector.extract_strided_slice %613 {offsets = [8, 0], sizes = [8, 16], strides = [1, 1]} : vector<16x16xf32> to vector<8x16xf32>
    %cst_340 = arith.constant dense<0.000000e+00> : vector<8xf32>
    %625 = vector.multi_reduction <add>, %624, %cst_340 [1] : vector<8x16xf32> to vector<8xf32>
    %626 = vector.shape_cast %625 : vector<8xf32> to vector<8x1xf32>
    %627 = arith.addf %619, %626 : vector<8x1xf32>
    %628 = arith.mulf %624, %624 : vector<8x16xf32>
    %cst_341 = arith.constant dense<0.000000e+00> : vector<8xf32>
    %629 = vector.multi_reduction <add>, %628, %cst_341 [1] : vector<8x16xf32> to vector<8xf32>
    %630 = vector.shape_cast %629 : vector<8xf32> to vector<8x1xf32>
    %631 = arith.addf %623, %630 : vector<8x1xf32>
    %cst_342 = arith.constant 3.200000e+01 : f32
    %632 = vector.broadcast %cst_342 : f32 to vector<8x1xf32>
    %633 = arith.divf %627, %632 : vector<8x1xf32>
    %cst_343 = arith.constant 3.200000e+01 : f32
    %634 = vector.broadcast %cst_343 : f32 to vector<8x1xf32>
    %635 = arith.divf %631, %634 : vector<8x1xf32>
    %636 = arith.mulf %633, %633 : vector<8x1xf32>
    %637 = arith.subf %635, %636 : vector<8x1xf32>
    %cst_344 = arith.constant 9.99999974E-6 : f32
    %638 = vector.broadcast %cst_344 : f32 to vector<8x1xf32>
    %639 = arith.addf %637, %638 : vector<8x1xf32>
    %640 = math.rsqrt %639 : vector<8x1xf32>
    %641 = tpu.concatenate %633, %633 in 0 : vector<8x1xf32>, vector<8x1xf32> -> vector<16x1xf32>
    %642 = tpu.concatenate %640, %640 in 0 : vector<8x1xf32>, vector<8x1xf32> -> vector<16x1xf32>
    %643 = vector.broadcast %641 : vector<16x1xf32> to vector<16x16xf32>
    %644 = arith.subf %613, %643 : vector<16x16xf32>
    %645 = vector.broadcast %642 : vector<16x1xf32> to vector<16x16xf32>
    %646 = arith.mulf %644, %645 : vector<16x16xf32>
    %647 = arith.addf %646, %436 : vector<16x16xf32>
    %cst_345 = arith.constant 0.000000e+00 : f32
    %648 = vector.broadcast %cst_345 : f32 to vector<16x16xf32>
    %649 = arith.maximumf %647, %648 : vector<16x16xf32>
    %c0_346 = arith.constant 0 : index
    %c0_347 = arith.constant 0 : index
    %c0_348 = arith.constant 0 : index
    %650 = vector.load %arg2[%c0_346, %c0_347, %c0_348] : memref<2x64x8xf32, #tpu.memory_space<vmem>>, vector<1x64x8xf32>
    %651 = vector.shape_cast %650 : vector<1x64x8xf32> to vector<64x8xf32>
    %652 = vector.extract_strided_slice %649 {offsets = [0, 0], sizes = [8, 16], strides = [1, 1]} : vector<16x16xf32> to vector<8x16xf32>
    %cst_349 = arith.constant dense<0.000000e+00> : vector<64x16xf32>
    %653 = tpu.matmul %651, %652, %cst_349 {dimension_numbers = #tpu.dot_dimension_numbers<[1], [0], [0], [1], [0, 0, 1, 1], [], []>} : vector<64x8xf32>, vector<8x16xf32>, vector<64x16xf32> -> vector<64x16xf32>
    %c0_350 = arith.constant 0 : index
    %c0_351 = arith.constant 0 : index
    %c0_352 = arith.constant 0 : index
    %654 = vector.load %arg7[%c0_350, %c0_351, %c0_352] : memref<2x64x16xf32, #tpu.memory_space<vmem>>, vector<1x64x16xf32>
    %655 = vector.shape_cast %654 : vector<1x64x16xf32> to vector<64x16xf32>
    %656 = vector.shape_cast %653 : vector<64x16xf32> to vector<1x64x16xf32>
    tpu.vector_store %arg7[%c0_350, %c0_351, %c0_352], %656 {strides = array<i32>} : memref<2x64x16xf32, #tpu.memory_space<vmem>>, vector<1x64x16xf32>,
    %c1_353 = arith.constant 1 : index
    %c0_354 = arith.constant 0 : index
    %c0_355 = arith.constant 0 : index
    %657 = vector.load %arg2[%c1_353, %c0_354, %c0_355] : memref<2x64x8xf32, #tpu.memory_space<vmem>>, vector<1x64x8xf32>
    %658 = vector.shape_cast %657 : vector<1x64x8xf32> to vector<64x8xf32>
    %659 = vector.extract_strided_slice %649 {offsets = [8, 0], sizes = [8, 16], strides = [1, 1]} : vector<16x16xf32> to vector<8x16xf32>
    %cst_356 = arith.constant dense<0.000000e+00> : vector<64x16xf32>
    %660 = tpu.matmul %658, %659, %cst_356 {dimension_numbers = #tpu.dot_dimension_numbers<[1], [0], [0], [1], [0, 0, 1, 1], [], []>} : vector<64x8xf32>, vector<8x16xf32>, vector<64x16xf32> -> vector<64x16xf32>
    %c1_357 = arith.constant 1 : index
    %c0_358 = arith.constant 0 : index
    %c0_359 = arith.constant 0 : index
    %661 = vector.load %arg7[%c1_357, %c0_358, %c0_359] : memref<2x64x16xf32, #tpu.memory_space<vmem>>, vector<1x64x16xf32>
    %662 = vector.shape_cast %661 : vector<1x64x16xf32> to vector<64x16xf32>
    %663 = vector.shape_cast %660 : vector<64x16xf32> to vector<1x64x16xf32>
    tpu.vector_store %arg7[%c1_357, %c0_358, %c0_359], %663 {strides = array<i32>} : memref<2x64x16xf32, #tpu.memory_space<vmem>>, vector<1x64x16xf32>,
    return
  }
}

module attributes {stable_mosaic.version = 11 : i64} {
  func.func @conv_out_kernel(%arg0: i32, %arg1: memref<1x64x16xf32, #tpu.memory_space<vmem>>, %arg2: memref<1x64x16xf32, #tpu.memory_space<vmem>>, %arg3: memref<16x16xf32, #tpu.memory_space<vmem>>, %arg4: memref<16x16xf32, #tpu.memory_space<vmem>>, %arg5: memref<1x16xf32, #tpu.memory_space<vmem>>, %arg6: memref<1x64x16xf32, #tpu.memory_space<vmem>>) attributes {dimension_semantics = [#tpu.dimension_semantics<parallel>], iteration_bounds = array<i64: 2>, scalar_prefetch = 0 : i64, scratch_operands = 0 : i64, tpu.core_type = #tpu.core_type<tc>, window_params = [{transform_indices = @transform_0, window_bounds = array<i64: 1, 64, 16>}, {transform_indices = @transform_1, window_bounds = array<i64: 1, 64, 16>}, {pipeline_mode = #tpu.pipeline_mode<synchronous>, transform_indices = @transform_2, window_bounds = array<i64: 16, 16>}, {pipeline_mode = #tpu.pipeline_mode<synchronous>, transform_indices = @transform_3, window_bounds = array<i64: 16, 16>}, {pipeline_mode = #tpu.pipeline_mode<synchronous>, transform_indices = @transform_4, window_bounds = array<i64: 1, 16>}, {transform_indices = @transform_5, window_bounds = array<i64: 1, 64, 16>}]} {
    %c0 = arith.constant 0 : index
    %c0_0 = arith.constant 0 : index
    %c0_1 = arith.constant 0 : index
    %0 = vector.load %arg1[%c0, %c0_0, %c0_1] : memref<1x64x16xf32, #tpu.memory_space<vmem>>, vector<1x64x16xf32>
    %1 = vector.shape_cast %0 : vector<1x64x16xf32> to vector<64x16xf32>
    %c0_2 = arith.constant 0 : index
    %c0_3 = arith.constant 0 : index
    %2 = vector.load %arg3[%c0_2, %c0_3] : memref<16x16xf32, #tpu.memory_space<vmem>>, vector<16x16xf32>
    %cst = arith.constant dense<0.000000e+00> : vector<64x16xf32>
    %3 = tpu.matmul %1, %2, %cst {dimension_numbers = #tpu.dot_dimension_numbers<[1], [0], [0], [1], [0, 0, 1, 1], [], []>} : vector<64x16xf32>, vector<16x16xf32>, vector<64x16xf32> -> vector<64x16xf32>
    %c0_4 = arith.constant 0 : index
    %c0_5 = arith.constant 0 : index
    %c0_6 = arith.constant 0 : index
    %4 = vector.load %arg2[%c0_4, %c0_5, %c0_6] : memref<1x64x16xf32, #tpu.memory_space<vmem>>, vector<1x64x16xf32>
    %5 = vector.shape_cast %4 : vector<1x64x16xf32> to vector<64x16xf32>
    %c0_7 = arith.constant 0 : index
    %c0_8 = arith.constant 0 : index
    %6 = vector.load %arg4[%c0_7, %c0_8] : memref<16x16xf32, #tpu.memory_space<vmem>>, vector<16x16xf32>
    %cst_9 = arith.constant dense<0.000000e+00> : vector<64x16xf32>
    %7 = tpu.matmul %5, %6, %cst_9 {dimension_numbers = #tpu.dot_dimension_numbers<[1], [0], [0], [1], [0, 0, 1, 1], [], []>} : vector<64x16xf32>, vector<16x16xf32>, vector<64x16xf32> -> vector<64x16xf32>
    %8 = arith.addf %3, %7 : vector<64x16xf32>
    %c0_10 = arith.constant 0 : index
    %c0_11 = arith.constant 0 : index
    %9 = vector.load %arg5[%c0_10, %c0_11] : memref<1x16xf32, #tpu.memory_space<vmem>>, vector<1x16xf32>
    %10 = vector.broadcast %9 : vector<1x16xf32> to vector<64x16xf32>
    %11 = arith.addf %8, %10 : vector<64x16xf32>
    %c0_12 = arith.constant 0 : index
    %c0_13 = arith.constant 0 : index
    %c0_14 = arith.constant 0 : index
    %12 = vector.load %arg6[%c0_12, %c0_13, %c0_14] : memref<1x64x16xf32, #tpu.memory_space<vmem>>, vector<1x64x16xf32>
    %13 = vector.shape_cast %12 : vector<1x64x16xf32> to vector<64x16xf32>
    %14 = vector.shape_cast %11 : vector<64x16xf32> to vector<1x64x16xf32>
    tpu.vector_store %arg6[%c0_12, %c0_13, %c0_14], %14 {strides = array<i32>} : memref<1x64x16xf32, #tpu.memory_space<vmem>>, vector<1x64x16xf32>,
    return
  }
  func.func @transform_0(%arg0: i32) -> (i32, i32, i32) {
    %c0_i32 = arith.constant 0 : i32
    %c0_i32_0 = arith.constant 0 : i32
    %c0_i32_1 = arith.constant 0 : i32
    return %arg0, %c0_i32, %c0_i32_0 : i32, i32, i32
  }
  func.func @transform_1(%arg0: i32) -> (i32, i32, i32) {
    %c0_i32 = arith.constant 0 : i32
    %c0_i32_0 = arith.constant 0 : i32
    %c0_i32_1 = arith.constant 0 : i32
    return %arg0, %c0_i32, %c0_i32_0 : i32, i32, i32
  }
  func.func @transform_2(%arg0: i32) -> (i32, i32) {
    %c0_i32 = arith.constant 0 : i32
    %c0_i32_0 = arith.constant 0 : i32
    %c0_i32_1 = arith.constant 0 : i32
    return %c0_i32, %c0_i32_0 : i32, i32
  }
  func.func @transform_3(%arg0: i32) -> (i32, i32) {
    %c0_i32 = arith.constant 0 : i32
    %c0_i32_0 = arith.constant 0 : i32
    %c0_i32_1 = arith.constant 0 : i32
    return %c0_i32, %c0_i32_0 : i32, i32
  }
  func.func @transform_4(%arg0: i32) -> (i32, i32) {
    %c0_i32 = arith.constant 0 : i32
    %c0_i32_0 = arith.constant 0 : i32
    %c0_i32_1 = arith.constant 0 : i32
    return %c0_i32, %c0_i32_0 : i32, i32
  }
  func.func @transform_5(%arg0: i32) -> (i32, i32, i32) {
    %c0_i32 = arith.constant 0 : i32
    %c0_i32_0 = arith.constant 0 : i32
    %c0_i32_1 = arith.constant 0 : i32
    return %arg0, %c0_i32, %c0_i32_0 : i32, i32, i32
  }
}

</mosaic_0001>

<llo_original>
// kernel: hgblock_forward.3
$region0: #{hgblock_forward.3}
  #allocation0 [shape = 'u32[]', space=smem, size = 0x4, offset = 0x4, fixed_abs, tag = 'smem constant byte address 0x4 - core index']
  #allocation1 [shape = 'u32[72,128]{1,0:T(1,128)}', space=vmem, size = 0x9000, scoped, tag = 'internal scratch']
  %s0 = inlined_call_operand.vmem [shape: f32[2,64,16], index: 0, kind: input, shape index: {}]
  %s1 = inlined_call_operand.vmem [shape: f32[2,64,16], index: 1, kind: input, shape index: {}]
  %s2 = inlined_call_operand.vmem [shape: f32[16,16], index: 2, kind: input, shape index: {}]
  %s3 = inlined_call_operand.vmem [shape: f32[16,16], index: 3, kind: input, shape index: {}]
  %s4 = inlined_call_operand.vmem [shape: f32[1,16], index: 4, kind: input, shape index: {}]
  %s5 = inlined_call_operand.hbm [shape: f32[2,64,16], index: 5, kind: output, shape index: {}]
  %s6 = sld [smem:[#allocation0]]
  $region53: #{hgblock_forward.3} parent=0
    _
  %s8 = ssub.s32 1, %s6
  %s9 = scalar_select 0, %s8, %s6
  $region1: #{hgblock_forward.3} parent=0
    #allocation2 [shape = 'u8[65536]{0}', space=vmem, size = 0x10000, scoped, tag = 'output window, operand 0']
    #allocation3 [shape = 's32[2]{0}', space=sflag, size = 0x8, scoped, tag = 'scoped memory for hgblock_forward.3']
    %10 = vsyncpa [#allocation3], 0
    %s11 = scalar_lea.sflag [#allocation3], 1
    %12 = vsyncpa %s11, 0
    loop: start=0, step=1, limit=4
    $region2: #{hgblock_forward.3} parent=1 // loop_pre_header
      _
    $region3: #{hgblock_forward.3} parent=1 // loop_header
      %s14 = sphi 0, %s18
      %p15 = scmp.ge.s32.totalorder %s14, 4
      %s24 = sphi 0, %s26
      %s27 = sphi 0, %s24
      %s28 = sphi 0, %s27
      %s44 = sphi 0, %s28
      %s50 = sphi 0, %s52
      %s53 = sphi 0, %s50
      %s54 = sphi 0, %s53
      %s70 = sphi 0, %s54
      %s74 = sphi 0, %s74
      %s76 = sphi 0, %s74
      %s77 = sphi 0, %s76
      %s91 = sphi 0, %s77
      %s95 = sphi 0, %s95
      %s97 = sphi 0, %s95
      %s98 = sphi 0, %s97
      %s112 = sphi 0, %s98
      %s116 = sphi 0, %s116
      %s118 = sphi 0, %s116
      %s119 = sphi 0, %s118
      %s133 = sphi 0, %s119
      %s139 = sphi 0, %s141
      %s142 = sphi 0, %s139
      %s143 = sphi 0, %s142
      %s159 = sphi 0, %s143
    $region4: #{hgblock_forward.3} parent=1 // loop_header_branch
      %17 = sbr.rel (%p15) target = $region8
    $region5: #{hgblock_forward.3} parent=1 // loop_body
      %s19 = ssub.s32 %s14, 1
      %s20 = ssub.s32 %s14, 2
      %s21 = sadd.s32 %s14, 1
      %s22 = ssub.s32 %s14, %s21
      %p23 = scmp.eq.s32.totalorder %s22, 0
      %s25 = sadd.s32 %s24, 1
      %s26 = scalar_select %p23, %s24, %s25
      %p29 = pneg %p23
      %p30 = scmp.eq.s32.totalorder %s14, 1
      %p31 = por %p29, %p30
      %p32 = scmp.ne.s32.totalorder %s24, %s27
      %p33 = scmp.eq.s32.totalorder %s14, 0
      %p34 = por %p32, %p33
      %p35 = scmp.ne.s32.totalorder %s24, %s27
      %p36 = scmp.eq.s32.totalorder %s19, 1
      %p37 = por %p35, %p36
      %p38 = scmp.ne.s32.totalorder %s27, %s28
      %p39 = scmp.eq.s32.totalorder %s19, 0
      %p40 = por %p38, %p39
      %p41 = scmp.ne.s32.totalorder %s27, %s28
      %p42 = scmp.eq.s32.totalorder %s20, 1
      %p43 = por %p41, %p42
      %p45 = scmp.ne.s32.totalorder %s28, %s44
      %p46 = scmp.eq.s32.totalorder %s20, 0
      %p47 = por %p45, %p46
      %s48 = ssub.s32 %s14, %s21
      %p49 = scmp.eq.s32.totalorder %s48, 0
      %s51 = sadd.s32 %s50, 1
      %s52 = scalar_select %p49, %s50, %s51
      %p55 = pneg %p49
      %p56 = scmp.eq.s32.totalorder %s14, 1
      %p57 = por %p55, %p56
      %p58 = scmp.ne.s32.totalorder %s50, %s53
      %p59 = scmp.eq.s32.totalorder %s14, 0
      %p60 = por %p58, %p59
      %p61 = scmp.ne.s32.totalorder %s50, %s53
      %p62 = scmp.eq.s32.totalorder %s19, 1
      %p63 = por %p61, %p62
      %p64 = scmp.ne.s32.totalorder %s53, %s54
      %p65 = scmp.eq.s32.totalorder %s19, 0
      %p66 = por %p64, %p65
      %p67 = scmp.ne.s32.totalorder %s53, %s54
      %p68 = scmp.eq.s32.totalorder %s20, 1
      %p69 = por %p67, %p68
      %p71 = scmp.ne.s32.totalorder %s54, %s70
      %p72 = scmp.eq.s32.totalorder %s20, 0
      %p73 = por %p71, %p72
      %s75 = sadd.s32 %s74, 1
      %p78 = scmp.eq.s32.totalorder %s14, 1
      %p79 = scmp.ne.s32.totalorder %s74, %s76
      %p80 = scmp.eq.s32.totalorder %s14, 0
      %p81 = por %p79, %p80
      %p82 = scmp.ne.s32.totalorder %s74, %s76
      %p83 = scmp.eq.s32.totalorder %s19, 1
      %p84 = por %p82, %p83
      %p85 = scmp.ne.s32.totalorder %s76, %s77
      %p86 = scmp.eq.s32.totalorder %s19, 0
      %p87 = por %p85, %p86
      %p88 = scmp.ne.s32.totalorder %s76, %s77
      %p89 = scmp.eq.s32.totalorder %s20, 1
      %p90 = por %p88, %p89
      %p92 = scmp.ne.s32.totalorder %s77, %s91
      %p93 = scmp.eq.s32.totalorder %s20, 0
      %p94 = por %p92, %p93
      %s96 = sadd.s32 %s95, 1
      %p99 = scmp.eq.s32.totalorder %s14, 1
      %p100 = scmp.ne.s32.totalorder %s95, %s97
      %p101 = scmp.eq.s32.totalorder %s14, 0
      %p102 = por %p100, %p101
      %p103 = scmp.ne.s32.totalorder %s95, %s97
      %p104 = scmp.eq.s32.totalorder %s19, 1
      %p105 = por %p103, %p104
      %p106 = scmp.ne.s32.totalorder %s97, %s98
      %p107 = scmp.eq.s32.totalorder %s19, 0
      %p108 = por %p106, %p107
      %p109 = scmp.ne.s32.totalorder %s97, %s98
      %p110 = scmp.eq.s32.totalorder %s20, 1
      %p111 = por %p109, %p110
      %p113 = scmp.ne.s32.totalorder %s98, %s112
      %p114 = scmp.eq.s32.totalorder %s20, 0
      %p115 = por %p113, %p114
      %s117 = sadd.s32 %s116, 1
      %p120 = scmp.eq.s32.totalorder %s14, 1
      %p121 = scmp.ne.s32.totalorder %s116, %s118
      %p122 = scmp.eq.s32.totalorder %s14, 0
      %p123 = por %p121, %p122
      %p124 = scmp.ne.s32.totalorder %s116, %s118
      %p125 = scmp.eq.s32.totalorder %s19, 1
      %p126 = por %p124, %p125
      %p127 = scmp.ne.s32.totalorder %s118, %s119
      %p128 = scmp.eq.s32.totalorder %s19, 0
      %p129 = por %p127, %p128
      %p130 = scmp.ne.s32.totalorder %s118, %s119
      %p131 = scmp.eq.s32.totalorder %s20, 1
      %p132 = por %p130, %p131
      %p134 = scmp.ne.s32.totalorder %s119, %s133
      %p135 = scmp.eq.s32.totalorder %s20, 0
      %p136 = por %p134, %p135
      %s137 = ssub.s32 %s14, %s21
      %p138 = scmp.eq.s32.totalorder %s137, 0
      %s140 = sadd.s32 %s139, 1
      %s141 = scalar_select %p138, %s139, %s140
      %p144 = pneg %p138
      %p145 = scmp.eq.s32.totalorder %s14, 1
      %p146 = por %p144, %p145
      %p147 = scmp.ne.s32.totalorder %s139, %s142
      %p148 = scmp.eq.s32.totalorder %s14, 0
      %p149 = por %p147, %p148
      %p150 = scmp.ne.s32.totalorder %s139, %s142
      %p151 = scmp.eq.s32.totalorder %s19, 1
      %p152 = por %p150, %p151
      %p153 = scmp.ne.s32.totalorder %s142, %s143
      %p154 = scmp.eq.s32.totalorder %s19, 0
      %p155 = por %p153, %p154
      %p156 = scmp.ne.s32.totalorder %s142, %s143
      %p157 = scmp.eq.s32.totalorder %s20, 1
      %p158 = por %p156, %p157
      %p160 = scmp.ne.s32.totalorder %s143, %s159
      %p161 = scmp.eq.s32.totalorder %s20, 0
      %p162 = por %p160, %p161
      %p163 = scmp.le.s32.totalorder 1, %s14
      %p164 = scmp.lt.s32.totalorder %s14, 3
      %p165 = pnand %p163, %p164
      %p166 = pneg %p165
      // Predicated region
      $region9: #{hgblock_forward.3} parent=5 // pred_check
        _
      $region10: #{hgblock_forward.3} parent=5 // pred_check_branch
        %168 = sbr.rel (%p165) target = $region12
      $region11: #{hgblock_forward.3} parent=5 // pred_region
        %s169 = ssub.s32 %s14, 1
        // Predicated region
        $region13: #{hgblock_forward.3} parent=11 // pred_check
          %p170 = pneg %p87
        $region14: #{hgblock_forward.3} parent=11 // pred_check_branch
          %172 = sbr.rel (%p170) target = $region16
        $region15: #{hgblock_forward.3} parent=11 // pred_region
          _
        $region16: #{hgblock_forward.3} parent=11 // pred_fallthru
          _
        // Predicated region
        $region17: #{hgblock_forward.3} parent=11 // pred_check
          %p173 = pneg %p108
        $region18: #{hgblock_forward.3} parent=11 // pred_check_branch
          %175 = sbr.rel (%p173) target = $region20
        $region19: #{hgblock_forward.3} parent=11 // pred_region
          _
        $region20: #{hgblock_forward.3} parent=11 // pred_fallthru
          _
        // Predicated region
        $region21: #{hgblock_forward.3} parent=11 // pred_check
          %p176 = pneg %p129
        $region22: #{hgblock_forward.3} parent=11 // pred_check_branch
          %178 = sbr.rel (%p176) target = $region24
        $region23: #{hgblock_forward.3} parent=11 // pred_region
          _
        $region24: #{hgblock_forward.3} parent=11 // pred_fallthru
          _
      $region12: #{hgblock_forward.3} parent=5 // pred_fallthru
        _
      %p179 = scmp.lt.s32.totalorder %s14, 2
      // Predicated region
      $region25: #{hgblock_forward.3} parent=5 // pred_check
        %p180 = pneg %p179
      $region26: #{hgblock_forward.3} parent=5 // pred_check_branch
        %182 = sbr.rel (%p180) target = $region28
      $region27: #{hgblock_forward.3} parent=5 // pred_region
        // Predicated region
        $region29: #{hgblock_forward.3} parent=27 // pred_check
          %p183 = pneg %p34
        $region30: #{hgblock_forward.3} parent=27 // pred_check_branch
          %185 = sbr.rel (%p183) target = $region32
        $region31: #{hgblock_forward.3} parent=27 // pred_region
          %p186 = scmp.lt.s32.totalorder %s14, 1
          %s187 = scalar_select %p186, %s14, 1
          %s188 = smul.addr %s187, 8
          %s189 = smul.addr %s188, 8
          %s190 = scalar_lea.vmem %s0, %s189
        $region32: #{hgblock_forward.3} parent=27 // pred_fallthru
          _
        // Predicated region
        $region33: #{hgblock_forward.3} parent=27 // pred_check
          %p191 = pneg %p60
        $region34: #{hgblock_forward.3} parent=27 // pred_check_branch
          %193 = sbr.rel (%p191) target = $region36
        $region35: #{hgblock_forward.3} parent=27 // pred_region
          %p194 = scmp.lt.s32.totalorder %s14, 1
          %s195 = scalar_select %p194, %s14, 1
          %s196 = smul.addr %s195, 8
          %s197 = smul.addr %s196, 8
          %s198 = scalar_lea.vmem %s1, %s197
        $region36: #{hgblock_forward.3} parent=27 // pred_fallthru
          _
      $region28: #{hgblock_forward.3} parent=5 // pred_fallthru
        _
      %p199 = scmp.le.s32.totalorder 1, %s14
      %p200 = scmp.lt.s32.totalorder %s14, 3
      %p201 = pnand %p199, %p200
      %p202 = pneg %p201
      // Predicated region
      $region37: #{hgblock_forward.3} parent=5 // pred_check
        _
      $region38: #{hgblock_forward.3} parent=5 // pred_check_branch
        %204 = sbr.rel (%p201) target = $region40
      $region39: #{hgblock_forward.3} parent=5 // pred_region
        %s205 = ssub.s32 %s14, 1
        %p206 = scmp.lt.s32.totalorder %s19, 1
        %s207 = scalar_select %p206, %s19, 1
        %s208 = smul.addr %s207, 8
        %s209 = smul.addr %s208, 8
        %s210 = scalar_lea.vmem %s0, %s209
        %p211 = pneg %p40
        %p212 = pneg %p37
        %p213 = scmp.lt.s32.totalorder %s19, 1
        %s214 = scalar_select %p213, %s19, 1
        %s215 = smul.addr %s214, 8
        %s216 = smul.addr %s215, 8
        %s217 = scalar_lea.vmem %s1, %s216
        %p218 = pneg %p66
        %p219 = pneg %p63
        %p220 = pneg %p87
        %p221 = pneg %p84
        %p222 = pneg %p108
        %p223 = pneg %p105
        %p224 = pneg %p129
        %p225 = pneg %p126
        %p226 = pneg %p155
        %p227 = pneg %p152
        %s228 = sand.u32 %s142, 1
        %s229 = scalar_lea.sflag [#allocation3], %s228
        %s230 = sand.u32 %s142, 1
        %s231 = smul.addr %s230, 64
        %s232 = scalar_lea.vmem [#allocation2], %s231
        %p233 = scmp.lt.s32.totalorder %s19, 1
        %s234 = scalar_select %p233, %s19, 1
        %s235 = smul.addr %s234, 8
        %s236 = smul.addr %s235, 8
        %s237 = scalar_lea.vmem %s0, %s236
        %p238 = scmp.lt.s32.totalorder %s19, 1
        %s239 = scalar_select %p238, %s19, 1
        %s240 = smul.addr %s239, 8
        %s241 = smul.addr %s240, 8
        %s242 = scalar_lea.vmem %s1, %s241
        %v243 = vld [vmem:[%s237] sm:$0xff]
        %v244 = vld [vmem:[%s237 + $0x8] sm:$0xff]
        %v245 = vld [vmem:[%s237 + $0x10] sm:$0xff]
        %v246 = vld [vmem:[%s237 + $0x18] sm:$0xff]
        %v247 = vld [vmem:[%s237 + $0x20] sm:$0xff]
        %v248 = vld [vmem:[%s237 + $0x28] sm:$0xff]
        %v249 = vld [vmem:[%s237 + $0x30] sm:$0xff]
        %v250 = vld [vmem:[%s237 + $0x38] sm:$0xff]
        %v251 = vld [vmem:[%s2] sm:$0xff]
        %v252 = vld [vmem:[%s2 + $0x8] sm:$0xff]
        %v253 = vld [vmem:[%s242] sm:$0xff]
        %v254 = vld [vmem:[%s242 + $0x8] sm:$0xff]
        %v255 = vld [vmem:[%s242 + $0x10] sm:$0xff]
        %v256 = vld [vmem:[%s242 + $0x18] sm:$0xff]
        %v257 = vld [vmem:[%s242 + $0x20] sm:$0xff]
        %v258 = vld [vmem:[%s242 + $0x28] sm:$0xff]
        %v259 = vld [vmem:[%s242 + $0x30] sm:$0xff]
        %v260 = vld [vmem:[%s242 + $0x38] sm:$0xff]
        %v261 = vld [vmem:[%s3] sm:$0xff]
        %v262 = vld [vmem:[%s3 + $0x8] sm:$0xff]
        %vm263 = vcmask 130048
        %v265 = vsel %vm263, %v253, 0
        %v268 = vsel %vm263, %v254, 0
        %v271 = vsel %vm263, %v255, 0
        %v274 = vsel %vm263, %v256, 0
        %v277 = vsel %vm263, %v257, 0
        %v280 = vsel %vm263, %v258, 0
        %v283 = vsel %vm263, %v259, 0
        %v286 = vsel %vm263, %v260, 0
        %288 = vmatpush.msra.mxu0 0.0
        %289 = vmatpush.msra.mxu0 0.0
        %290 = vmatpush.msra.mxu0 0.0
        %291 = vmatpush.msra.mxu0 0.0
        %292 = vmatpush.msra.mxu0 0.0
        %293 = vmatpush.msra.mxu0 0.0
        %294 = vmatpush.msra.mxu0 0.0
        %295 = vmatpush.msra.mxu0 0.0
        %296 = vmatpush.msra.mxu0 0.0
        %297 = vmatpush.msra.mxu0 0.0
        %298 = vmatpush.msra.mxu0 0.0
        %299 = vmatpush.msra.mxu0 0.0
        %300 = vmatpush.msra.mxu0 0.0
        %301 = vmatpush.msra.mxu0 0.0
        %302 = vmatpush.msra.mxu0 %v262
        %303 = vmatpush.msra.mxu0 %v261
        %304 = vmatmul.f32.gmra.mxu0 %v265
        %v305 = vpop.f32.mrf.mxu0
        %v306 = vadd.f32 0.0, %v305
        %307 = vmatmul.f32.gmra.mxu0 %v268
        %v308 = vpop.f32.mrf.mxu0
        %v309 = vadd.f32 0.0, %v308
        %310 = vmatmul.f32.gmra.mxu0 %v271
        %v311 = vpop.f32.mrf.mxu0
        %v312 = vadd.f32 0.0, %v311
        %313 = vmatmul.f32.gmra.mxu0 %v274
        %v314 = vpop.f32.mrf.mxu0
        %v315 = vadd.f32 0.0, %v314
        %316 = vmatmul.f32.gmra.mxu0 %v277
        %v317 = vpop.f32.mrf.mxu0
        %v318 = vadd.f32 0.0, %v317
        %319 = vmatmul.f32.gmra.mxu0 %v280
        %v320 = vpop.f32.mrf.mxu0
        %v321 = vadd.f32 0.0, %v320
        %322 = vmatmul.f32.gmra.mxu0 %v283
        %v323 = vpop.f32.mrf.mxu0
        %v324 = vadd.f32 0.0, %v323
        %325 = vmatmul.f32.gmra.mxu0 %v286
        %v326 = vpop.f32.mrf.mxu0
        %v327 = vadd.f32 0.0, %v326
        %328 = vdwg.mxu0
        %v330 = vsel %vm263, %v243, 0
        %v333 = vsel %vm263, %v244, 0
        %v336 = vsel %vm263, %v245, 0
        %v339 = vsel %vm263, %v246, 0
        %v342 = vsel %vm263, %v247, 0
        %v345 = vsel %vm263, %v248, 0
        %v348 = vsel %vm263, %v249, 0
        %v351 = vsel %vm263, %v250, 0
        %353 = vmatpush.msra.mxu0 0.0
        %354 = vmatpush.msra.mxu0 0.0
        %355 = vmatpush.msra.mxu0 0.0
        %356 = vmatpush.msra.mxu0 0.0
        %357 = vmatpush.msra.mxu0 0.0
        %358 = vmatpush.msra.mxu0 0.0
        %359 = vmatpush.msra.mxu0 0.0
        %360 = vmatpush.msra.mxu0 0.0
        %361 = vmatpush.msra.mxu0 0.0
        %362 = vmatpush.msra.mxu0 0.0
        %363 = vmatpush.msra.mxu0 0.0
        %364 = vmatpush.msra.mxu0 0.0
        %365 = vmatpush.msra.mxu0 0.0
        %366 = vmatpush.msra.mxu0 0.0
        %367 = vmatpush.msra.mxu0 %v252
        %368 = vmatpush.msra.mxu0 %v251
        %369 = vmatmul.f32.gmra.mxu0 %v330
        %v370 = vpop.f32.mrf.mxu0
        %v371 = vadd.f32 %v306, %v370
        %372 = vmatmul.f32.gmra.mxu0 %v333
        %v373 = vpop.f32.mrf.mxu0
        %v374 = vadd.f32 %v309, %v373
        %375 = vmatmul.f32.gmra.mxu0 %v336
        %v376 = vpop.f32.mrf.mxu0
        %v377 = vadd.f32 %v312, %v376
        %378 = vmatmul.f32.gmra.mxu0 %v339
        %v379 = vpop.f32.mrf.mxu0
        %v380 = vadd.f32 %v315, %v379
        %381 = vmatmul.f32.gmra.mxu0 %v342
        %v382 = vpop.f32.mrf.mxu0
        %v383 = vadd.f32 %v318, %v382
        %384 = vmatmul.f32.gmra.mxu0 %v345
        %v385 = vpop.f32.mrf.mxu0
        %v386 = vadd.f32 %v321, %v385
        %387 = vmatmul.f32.gmra.mxu0 %v348
        %v388 = vpop.f32.mrf.mxu0
        %v389 = vadd.f32 %v324, %v388
        %390 = vmatmul.f32.gmra.mxu0 %v351
        %v391 = vpop.f32.mrf.mxu0
        %v392 = vadd.f32 %v327, %v391
        %393 = vdwg.mxu0
        %v394 = vld [vmem:[%s4] sm:$0x1]
        %v396 = vperm.slane %v394, 0
        %v398 = vadd.f32 %v371, %v396
        %v399 = vadd.f32 %v374, %v396
        %v400 = vadd.f32 %v377, %v396
        %v401 = vadd.f32 %v380, %v396
        %v402 = vadd.f32 %v383, %v396
        %v403 = vadd.f32 %v386, %v396
        %v404 = vadd.f32 %v389, %v396
        %v405 = vadd.f32 %v392, %v396
        %406 = vst.msk [vmem:[%s232] sm:$0xff] %vm263, %v398
        %407 = vst.msk [vmem:[%s232 + $0x8] sm:$0xff] %vm263, %v399
        %408 = vst.msk [vmem:[%s232 + $0x10] sm:$0xff] %vm263, %v400
        %409 = vst.msk [vmem:[%s232 + $0x18] sm:$0xff] %vm263, %v401
        %410 = vst.msk [vmem:[%s232 + $0x20] sm:$0xff] %vm263, %v402
        %411 = vst.msk [vmem:[%s232 + $0x28] sm:$0xff] %vm263, %v403
        %412 = vst.msk [vmem:[%s232 + $0x30] sm:$0xff] %vm263, %v404
        %413 = vst.msk [vmem:[%s232 + $0x38] sm:$0xff] %vm263, %v405
        %s414 = sand.u32 %s142, 1
        %s415 = scalar_lea.sflag [#allocation3], %s414
        %s416 = sand.u32 %s142, 1
        %s417 = smul.addr %s416, 64
        %s418 = scalar_lea.vmem [#allocation2], %s417
        // Predicated region
        $region41: #{hgblock_forward.3} parent=39 // pred_check
          %p419 = pneg %p152
        $region42: #{hgblock_forward.3} parent=39 // pred_check_branch
          %421 = sbr.rel (%p419) target = $region44
        $region43: #{hgblock_forward.3} parent=39 // pred_region
          %423 = vsyncadd %s415, 0
          %s424 = smul.addr %s19, 8
          %s425 = smul.addr %s424, 8
          %s426 = scalar_lea.hbm %s5, %s425
          %s427 = sshll.u32 %s418, 4
          %s428 = int_to_ptr.vmem [resolvable:$true] %s427
          %s429 = sshll.u32 %s426, 4
          %s430 = int_to_ptr.hbm [resolvable:$true] %s429
          %435 = dma.vmem_to_hbm [thread:$0]  %s428, 1024, %s430, %s415, 128, 128, 8
        $region44: #{hgblock_forward.3} parent=39 // pred_fallthru
          _
      $region40: #{hgblock_forward.3} parent=5 // pred_fallthru
        _
      %p436 = scmp.le.s32.totalorder 2, %s14
      // Predicated region
      $region45: #{hgblock_forward.3} parent=5 // pred_check
        %p437 = pneg %p436
      $region46: #{hgblock_forward.3} parent=5 // pred_check_branch
        %439 = sbr.rel (%p437) target = $region48
      $region47: #{hgblock_forward.3} parent=5 // pred_region
        %s440 = ssub.s32 %s14, 2
        // Predicated region
        $region49: #{hgblock_forward.3} parent=47 // pred_check
          %p441 = pneg %p158
        $region50: #{hgblock_forward.3} parent=47 // pred_check_branch
          %443 = sbr.rel (%p441) target = $region52
        $region51: #{hgblock_forward.3} parent=47 // pred_region
          %s444 = sand.u32 %s143, 1
          %s445 = scalar_lea.sflag [#allocation3], %s444
          %s446 = sand.u32 %s143, 1
          %s447 = smul.addr %s446, 64
          %s448 = scalar_lea.vmem [#allocation2], %s447
          %450 = dma.done %s445, 1024
        $region52: #{hgblock_forward.3} parent=47 // pred_fallthru
          _
      $region48: #{hgblock_forward.3} parent=5 // pred_fallthru
        _
    $region6: #{hgblock_forward.3} parent=1 // loop_footer
      %s18 = sadd.s32 1, %s14
    $region7: #{hgblock_forward.3} parent=1 // loop_footer_branch
      %13 = sbr.rel target = $region3
    $region8: #{hgblock_forward.3} parent=1 // loop_exit
      _
    %451 = vsyncpa [#allocation3], 1
    %s452 = scalar_lea.sflag [#allocation3], 1
    %453 = vsyncpa %s452, 1

// kernel: hgblock_forward.2
$region0: #{hgblock_forward.2}
  #allocation0 [shape = 'u32[]', space=smem, size = 0x4, offset = 0x4, fixed_abs, tag = 'smem constant byte address 0x4 - core index']
  #allocation1 [shape = 'u32[72,128]{1,0:T(1,128)}', space=vmem, size = 0x9000, scoped, tag = 'internal scratch']
  %s0 = inlined_call_operand.vmem [shape: f32[2,64,16], index: 0, kind: input, shape index: {}]
  %s1 = inlined_call_operand.vmem [shape: f32[2,8,64], index: 1, kind: input, shape index: {}]
  %s2 = inlined_call_operand.vmem [shape: f32[2,64,8], index: 2, kind: input, shape index: {}]
  %s3 = inlined_call_operand.vmem [shape: f32[2,72,8], index: 3, kind: input, shape index: {}]
  %s4 = inlined_call_operand.vmem [shape: f32[3,16,16], index: 4, kind: input, shape index: {}]
  %s5 = inlined_call_operand.vmem [shape: f32[27,16,16], index: 5, kind: input, shape index: {}]
  %s6 = inlined_call_operand.vmem [shape: f32[3,16,16], index: 6, kind: input, shape index: {}]
  %s7 = inlined_call_operand.vmem [shape: f32[2,64,16], index: 7, kind: output, shape index: {}]
  %s8 = sld [smem:[#allocation0]]
  $region38: #{hgblock_forward.2} parent=0
    _
  %s10 = ssub.s32 1, %s8
  %s11 = scalar_select 0, %s10, %s8
  // Predicated region
  $region2: #{hgblock_forward.2} parent=0 // pred_check
    _
  $region3: #{hgblock_forward.2} parent=0 // pred_check_branch
    %13 = sbr.rel (0) target = $region5
  $region4: #{hgblock_forward.2} parent=0 // pred_region
    _
  $region5: #{hgblock_forward.2} parent=0 // pred_fallthru
    _
  // Predicated region
  $region6: #{hgblock_forward.2} parent=0 // pred_check
    _
  $region7: #{hgblock_forward.2} parent=0 // pred_check_branch
    %15 = sbr.rel (0) target = $region9
  $region8: #{hgblock_forward.2} parent=0 // pred_region
    _
  $region9: #{hgblock_forward.2} parent=0 // pred_fallthru
    _
  // Predicated region
  $region10: #{hgblock_forward.2} parent=0 // pred_check
    _
  $region11: #{hgblock_forward.2} parent=0 // pred_check_branch
    %17 = sbr.rel (0) target = $region13
  $region12: #{hgblock_forward.2} parent=0 // pred_region
    _
  $region13: #{hgblock_forward.2} parent=0 // pred_fallthru
    _
  // Predicated region
  $region14: #{hgblock_forward.2} parent=0 // pred_check
    _
  $region15: #{hgblock_forward.2} parent=0 // pred_check_branch
    %19 = sbr.rel (0) target = $region17
  $region16: #{hgblock_forward.2} parent=0 // pred_region
    _
  $region17: #{hgblock_forward.2} parent=0 // pred_fallthru
    _
  // Predicated region
  $region18: #{hgblock_forward.2} parent=0 // pred_check
    _
  $region19: #{hgblock_forward.2} parent=0 // pred_check_branch
    %21 = sbr.rel (0) target = $region21
  $region20: #{hgblock_forward.2} parent=0 // pred_region
    _
  $region21: #{hgblock_forward.2} parent=0 // pred_fallthru
    _
  // Predicated region
  $region22: #{hgblock_forward.2} parent=0 // pred_check
    _
  $region23: #{hgblock_forward.2} parent=0 // pred_check_branch
    %23 = sbr.rel (0) target = $region25
  $region24: #{hgblock_forward.2} parent=0 // pred_region
    _
  $region25: #{hgblock_forward.2} parent=0 // pred_fallthru
    _
  // Predicated region
  $region26: #{hgblock_forward.2} parent=0 // pred_check
    _
  $region27: #{hgblock_forward.2} parent=0 // pred_check_branch
    %25 = sbr.rel (0) target = $region29
  $region28: #{hgblock_forward.2} parent=0 // pred_region
    _
  $region29: #{hgblock_forward.2} parent=0 // pred_fallthru
    _
  %v26 = vld [vmem:[%s1] sm:$0xff]
  %v27 = vld [vmem:[%s0] sm:$0xff]
  %v28 = vld [vmem:[%s0 + $0x8] sm:$0xff]
  %v29 = vld [vmem:[%s0 + $0x10] sm:$0xff]
  %v30 = vld [vmem:[%s0 + $0x18] sm:$0xff]
  %v31 = vld [vmem:[%s0 + $0x20] sm:$0xff]
  %v32 = vld [vmem:[%s0 + $0x28] sm:$0xff]
  %v33 = vld [vmem:[%s0 + $0x30] sm:$0xff]
  %v34 = vld [vmem:[%s0 + $0x38] sm:$0xff]
  %vm35 = vcmask 523264
  %v37 = vsel %vm35, %v26, 0
  %39 = vmatpush.msra.mxu0 0.0
  %40 = vmatpush.msra.mxu0 0.0
  %41 = vmatpush.msra.mxu0 0.0
  %42 = vmatpush.msra.mxu0 0.0
  %43 = vmatpush.msra.mxu0 0.0
  %44 = vmatpush.msra.mxu0 0.0
  %45 = vmatpush.msra.mxu0 0.0
  %46 = vmatpush.msra.mxu0 0.0
  %47 = vmatpush.msra.mxu0 %v34
  %48 = vmatpush.msra.mxu0 %v33
  %49 = vmatpush.msra.mxu0 %v32
  %50 = vmatpush.msra.mxu0 %v31
  %51 = vmatpush.msra.mxu0 %v30
  %52 = vmatpush.msra.mxu0 %v29
  %53 = vmatpush.msra.mxu0 %v28
  %54 = vmatpush.msra.mxu0 %v27
  %55 = vmatmul.f32.gmra.mxu0 %v37
  %v56 = vpop.f32.mrf.mxu0
  %v57 = vadd.f32 0.0, %v56
  %58 = vdwg.mxu0
  %s59 = scalar_lea.vmem %s1, 8
  %v60 = vld [vmem:[%s59] sm:$0xff]
  %s61 = scalar_lea.vmem %s0, 64
  %v62 = vld [vmem:[%s61] sm:$0xff]
  %v63 = vld [vmem:[%s61 + $0x8] sm:$0xff]
  %v64 = vld [vmem:[%s61 + $0x10] sm:$0xff]
  %v65 = vld [vmem:[%s61 + $0x18] sm:$0xff]
  %v66 = vld [vmem:[%s61 + $0x20] sm:$0xff]
  %v67 = vld [vmem:[%s61 + $0x28] sm:$0xff]
  %v68 = vld [vmem:[%s61 + $0x30] sm:$0xff]
  %v69 = vld [vmem:[%s61 + $0x38] sm:$0xff]
  %v71 = vsel %vm35, %v60, 0
  %73 = vmatpush.msra.mxu0 0.0
  %74 = vmatpush.msra.mxu0 0.0
  %75 = vmatpush.msra.mxu0 0.0
  %76 = vmatpush.msra.mxu0 0.0
  %77 = vmatpush.msra.mxu0 0.0
  %78 = vmatpush.msra.mxu0 0.0
  %79 = vmatpush.msra.mxu0 0.0
  %80 = vmatpush.msra.mxu0 0.0
  %81 = vmatpush.msra.mxu0 %v69
  %82 = vmatpush.msra.mxu0 %v68
  %83 = vmatpush.msra.mxu0 %v67
  %84 = vmatpush.msra.mxu0 %v66
  %85 = vmatpush.msra.mxu0 %v65
  %86 = vmatpush.msra.mxu0 %v64
  %87 = vmatpush.msra.mxu0 %v63
  %88 = vmatpush.msra.mxu0 %v62
  %89 = vmatmul.f32.gmra.mxu0 %v71
  %v90 = vpop.f32.mrf.mxu0
  %v91 = vadd.f32 0.0, %v90
  %92 = vdwg.mxu0
  %v93 = vld [vmem:[%s4] sm:$0xff]
  %v94 = vld [vmem:[%s4 + $0x8] sm:$0xff]
  %v95 = vld [vmem:[%s6] sm:$0xff]
  %v96 = vld [vmem:[%s6 + $0x8] sm:$0xff]
  %vm97 = vcmask 130048
  %v99 = vsel %vm97, %v57, 0
  %v102 = vsel %vm97, %v91, 0
  %104 = vmatpush.msra.mxu0 0.0
  %105 = vmatpush.msra.mxu0 0.0
  %106 = vmatpush.msra.mxu0 0.0
  %107 = vmatpush.msra.mxu0 0.0
  %108 = vmatpush.msra.mxu0 0.0
  %109 = vmatpush.msra.mxu0 0.0
  %110 = vmatpush.msra.mxu0 0.0
  %111 = vmatpush.msra.mxu0 0.0
  %112 = vmatpush.msra.mxu0 0.0
  %113 = vmatpush.msra.mxu0 0.0
  %114 = vmatpush.msra.mxu0 0.0
  %115 = vmatpush.msra.mxu0 0.0
  %116 = vmatpush.msra.mxu0 0.0
  %117 = vmatpush.msra.mxu0 0.0
  %118 = vmatpush.msra.mxu0 %v94
  %119 = vmatpush.msra.mxu0 %v93
  %120 = vmatmul.f32.gmra.mxu0 %v99
  %v121 = vpop.f32.mrf.mxu0
  %v122 = vadd.f32 0.0, %v121
  %123 = vmatmul.f32.gmra.mxu0 %v102
  %v124 = vpop.f32.mrf.mxu0
  %v125 = vadd.f32 0.0, %v124
  %126 = vdwg.mxu0
  %v127 = vsel %vm97, %v122, 0.0
  %128 = vadd.xlane.f32.xlu0 %v127
  %v129 = vpop.xlane.xlu0 %128
  %v130 = vadd.f32 %v129, 0.0
  %v131 = vmul.f32 %v122, %v122
  %v132 = vsel %vm97, %v131, 0.0
  %133 = vadd.xlane.f32.xlu0 %v132
  %v134 = vpop.xlane.xlu0 %133
  %v135 = vadd.f32 %v134, 0.0
  %v136 = vsel %vm97, %v125, 0.0
  %137 = vadd.xlane.f32.xlu0 %v136
  %v138 = vpop.xlane.xlu0 %137
  %v139 = vadd.f32 %v130, %v138
  %v140 = vmul.f32 %v125, %v125
  %v141 = vsel %vm97, %v140, 0.0
  %142 = vadd.xlane.f32.xlu0 %v141
  %v143 = vpop.xlane.xlu0 %142
  %v144 = vadd.f32 %v135, %v143
  %v145 = vrcp.pop 32.0
  %v146 = vmul.f32 32.0, %v145
  %v147 = vsub.f32 1.0, %v146
  %v148 = vmul.f32 %v145, %v147
  %v149 = vadd.f32 %v145, %v148
  %vm150 = vweird.f32 %v145
  %v151 = vsel %vm150, %v145, %v149
  %v152 = vmul.f32 %v139, %v151
  %v153 = vmul.f32 %v144, %v151
  %v154 = vmul.f32 %v152, %v152
  %v155 = vsub.f32 %v153, %v154
  %v156 = vadd.f32 %v155, 1e-05
  %v157 = vrsqrt.pop %v156
  %v158 = vmul.f32 %v157, %v156
  %v159 = vmul.f32 %v158, %v157
  %v160 = vmul.f32 0.5, %v159
  %v161 = vsub.f32 1.5, %v160
  %v162 = vmul.f32 %v157, %v161
  %vm163 = vweird.f32 %v156
  %vm164 = vweird.f32 %v157
  %vm165 = vmor %vm163, %vm164
  %v166 = vsel %vm165, %v157, %v162
  %168 = vset.pattern.permute.xlu0 0
  %169 = vperm.xlu0 %168, %v152
  %v170 = vpop.permute.xlu0 %169
  %v172 = vsub.f32 %v122, %v170
  %v173 = vsub.f32 %v125, %v170
  %175 = vset.pattern.permute.xlu0 0
  %176 = vperm.xlu0 %175, %v166
  %v177 = vpop.permute.xlu0 %176
  %v179 = vmul.f32 %v172, %v177
  %v180 = vmul.f32 %v173, %v177
  %v181 = vmax.f32 %v179, 0.0
  %v182 = vmax.f32 %v180, 0.0
  %v183 = vld [vmem:[%s3] sm:$0xff]
  %v184 = vld [vmem:[%s3 + $0x8] sm:$0xff]
  %v185 = vld [vmem:[%s3 + $0x10] sm:$0xff]
  %v186 = vld [vmem:[%s3 + $0x18] sm:$0xff]
  %v187 = vld [vmem:[%s3 + $0x20] sm:$0xff]
  %v188 = vld [vmem:[%s3 + $0x28] sm:$0xff]
  %v189 = vld [vmem:[%s3 + $0x30] sm:$0xff]
  %v190 = vld [vmem:[%s3 + $0x38] sm:$0xff]
  %v191 = vld [vmem:[%s3 + $0x40] sm:$0xff]
  %vm192 = vcmask 64512
  %v194 = vsel %vm192, %v183, 0
  %v197 = vsel %vm192, %v184, 0
  %v200 = vsel %vm192, %v185, 0
  %v203 = vsel %vm192, %v186, 0
  %v206 = vsel %vm192, %v187, 0
  %v209 = vsel %vm192, %v188, 0
  %v212 = vsel %vm192, %v189, 0
  %v215 = vsel %vm192, %v190, 0
  %v218 = vsel %vm192, %v191, 0
  %220 = vmatpush.msra.mxu0 0.0
  %221 = vmatpush.msra.mxu0 0.0
  %222 = vmatpush.msra.mxu0 0.0
  %223 = vmatpush.msra.mxu0 0.0
  %224 = vmatpush.msra.mxu0 0.0
  %225 = vmatpush.msra.mxu0 0.0
  %226 = vmatpush.msra.mxu0 0.0
  %227 = vmatpush.msra.mxu0 0.0
  %228 = vmatpush.msra.mxu0 0.0
  %229 = vmatpush.msra.mxu0 0.0
  %230 = vmatpush.msra.mxu0 0.0
  %231 = vmatpush.msra.mxu0 0.0
  %232 = vmatpush.msra.mxu0 0.0
  %233 = vmatpush.msra.mxu0 0.0
  %234 = vmatpush.msra.mxu0 0.0
  %235 = vmatpush.msra.mxu0 %v181
  %236 = vmatmul.f32.gmra.mxu0 %v194
  %v237 = vpop.f32.mrf.mxu0
  %v238 = vadd.f32 0.0, %v237
  %239 = vmatmul.f32.gmra.mxu0 %v197
  %v240 = vpop.f32.mrf.mxu0
  %v241 = vadd.f32 0.0, %v240
  %242 = vmatmul.f32.gmra.mxu0 %v200
  %v243 = vpop.f32.mrf.mxu0
  %v244 = vadd.f32 0.0, %v243
  %245 = vmatmul.f32.gmra.mxu0 %v203
  %v246 = vpop.f32.mrf.mxu0
  %v247 = vadd.f32 0.0, %v246
  %248 = vmatmul.f32.gmra.mxu0 %v206
  %v249 = vpop.f32.mrf.mxu0
  %v250 = vadd.f32 0.0, %v249
  %251 = vmatmul.f32.gmra.mxu0 %v209
  %v252 = vpop.f32.mrf.mxu0
  %v253 = vadd.f32 0.0, %v252
  %254 = vmatmul.f32.gmra.mxu0 %v212
  %v255 = vpop.f32.mrf.mxu0
  %v256 = vadd.f32 0.0, %v255
  %257 = vmatmul.f32.gmra.mxu0 %v215
  %v258 = vpop.f32.mrf.mxu0
  %v259 = vadd.f32 0.0, %v258
  %260 = vmatmul.f32.gmra.mxu0 %v218
  %v261 = vpop.f32.mrf.mxu0
  %v262 = vadd.f32 0.0, %v261
  %263 = vdwg.mxu0
  %v264 = vld [vmem:[%s5] sm:$0xff]
  %v265 = vld [vmem:[%s5 + $0x8] sm:$0xff]
  %s266 = scalar_lea.vmem %s5, 16
  %v267 = vld [vmem:[%s266] sm:$0xff]
  %v268 = vld [vmem:[%s266 + $0x8] sm:$0xff]
  %v270 = vsel %vm97, %v241, 0
  %272 = vmatpush.msra.mxu0 0.0
  %273 = vmatpush.msra.mxu0 0.0
  %274 = vmatpush.msra.mxu0 0.0
  %275 = vmatpush.msra.mxu0 0.0
  %276 = vmatpush.msra.mxu0 0.0
  %277 = vmatpush.msra.mxu0 0.0
  %278 = vmatpush.msra.mxu0 0.0
  %279 = vmatpush.msra.mxu0 0.0
  %280 = vmatpush.msra.mxu0 0.0
  %281 = vmatpush.msra.mxu0 0.0
  %282 = vmatpush.msra.mxu0 0.0
  %283 = vmatpush.msra.mxu0 0.0
  %284 = vmatpush.msra.mxu0 0.0
  %285 = vmatpush.msra.mxu0 0.0
  %286 = vmatpush.msra.mxu0 %v268
  %287 = vmatpush.msra.mxu0 %v267
  %288 = vmatmul.f32.gmra.mxu0 %v270
  %v289 = vpop.f32.mrf.mxu0
  %v290 = vadd.f32 0.0, %v289
  %291 = vdwg.mxu0
  %v293 = vsel %vm97, %v238, 0
  %295 = vmatpush.msra.mxu0 0.0
  %296 = vmatpush.msra.mxu0 0.0
  %297 = vmatpush.msra.mxu0 0.0
  %298 = vmatpush.msra.mxu0 0.0
  %299 = vmatpush.msra.mxu0 0.0
  %300 = vmatpush.msra.mxu0 0.0
  %301 = vmatpush.msra.mxu0 0.0
  %302 = vmatpush.msra.mxu0 0.0
  %303 = vmatpush.msra.mxu0 0.0
  %304 = vmatpush.msra.mxu0 0.0
  %305 = vmatpush.msra.mxu0 0.0
  %306 = vmatpush.msra.mxu0 0.0
  %307 = vmatpush.msra.mxu0 0.0
  %308 = vmatpush.msra.mxu0 0.0
  %309 = vmatpush.msra.mxu0 %v265
  %310 = vmatpush.msra.mxu0 %v264
  %311 = vmatmul.f32.gmra.mxu0 %v293
  %v312 = vpop.f32.mrf.mxu0
  %v313 = vadd.f32 %v290, %v312
  %314 = vdwg.mxu0
  %s315 = scalar_lea.vmem %s5, 32
  %v316 = vld [vmem:[%s315] sm:$0xff]
  %v317 = vld [vmem:[%s315 + $0x8] sm:$0xff]
  %v319 = vsel %vm97, %v244, 0
  %321 = vmatpush.msra.mxu0 0.0
  %322 = vmatpush.msra.mxu0 0.0
  %323 = vmatpush.msra.mxu0 0.0
  %324 = vmatpush.msra.mxu0 0.0
  %325 = vmatpush.msra.mxu0 0.0
  %326 = vmatpush.msra.mxu0 0.0
  %327 = vmatpush.msra.mxu0 0.0
  %328 = vmatpush.msra.mxu0 0.0
  %329 = vmatpush.msra.mxu0 0.0
  %330 = vmatpush.msra.mxu0 0.0
  %331 = vmatpush.msra.mxu0 0.0
  %332 = vmatpush.msra.mxu0 0.0
  %333 = vmatpush.msra.mxu0 0.0
  %334 = vmatpush.msra.mxu0 0.0
  %335 = vmatpush.msra.mxu0 %v317
  %336 = vmatpush.msra.mxu0 %v316
  %337 = vmatmul.f32.gmra.mxu0 %v319
  %v338 = vpop.f32.mrf.mxu0
  %v339 = vadd.f32 0.0, %v338
  %340 = vdwg.mxu0
  %v341 = vadd.f32 %v313, %v339
  %s342 = scalar_lea.vmem %s5, 48
  %v343 = vld [vmem:[%s342] sm:$0xff]
  %v344 = vld [vmem:[%s342 + $0x8] sm:$0xff]
  %v346 = vsel %vm97, %v247, 0
  %348 = vmatpush.msra.mxu0 0.0
  %349 = vmatpush.msra.mxu0 0.0
  %350 = vmatpush.msra.mxu0 0.0
  %351 = vmatpush.msra.mxu0 0.0
  %352 = vmatpush.msra.mxu0 0.0
  %353 = vmatpush.msra.mxu0 0.0
  %354 = vmatpush.msra.mxu0 0.0
  %355 = vmatpush.msra.mxu0 0.0
  %356 = vmatpush.msra.mxu0 0.0
  %357 = vmatpush.msra.mxu0 0.0
  %358 = vmatpush.msra.mxu0 0.0
  %359 = vmatpush.msra.mxu0 0.0
  %360 = vmatpush.msra.mxu0 0.0
  %361 = vmatpush.msra.mxu0 0.0
  %362 = vmatpush.msra.mxu0 %v344
  %363 = vmatpush.msra.mxu0 %v343
  %364 = vmatmul.f32.gmra.mxu0 %v346
  %v365 = vpop.f32.mrf.mxu0
  %v366 = vadd.f32 0.0, %v365
  %367 = vdwg.mxu0
  %v368 = vadd.f32 %v341, %v366
  %s369 = scalar_lea.vmem %s5, 64
  %v370 = vld [vmem:[%s369] sm:$0xff]
  %v371 = vld [vmem:[%s369 + $0x8] sm:$0xff]
  %v373 = vsel %vm97, %v250, 0
  %375 = vmatpush.msra.mxu0 0.0
  %376 = vmatpush.msra.mxu0 0.0
  %377 = vmatpush.msra.mxu0 0.0
  %378 = vmatpush.msra.mxu0 0.0
  %379 = vmatpush.msra.mxu0 0.0
  %380 = vmatpush.msra.mxu0 0.0
  %381 = vmatpush.msra.mxu0 0.0
  %382 = vmatpush.msra.mxu0 0.0
  %383 = vmatpush.msra.mxu0 0.0
  %384 = vmatpush.msra.mxu0 0.0
  %385 = vmatpush.msra.mxu0 0.0
  %386 = vmatpush.msra.mxu0 0.0
  %387 = vmatpush.msra.mxu0 0.0
  %388 = vmatpush.msra.mxu0 0.0
  %389 = vmatpush.msra.mxu0 %v371
  %390 = vmatpush.msra.mxu0 %v370
  %391 = vmatmul.f32.gmra.mxu0 %v373
  %v392 = vpop.f32.mrf.mxu0
  %v393 = vadd.f32 0.0, %v392
  %394 = vdwg.mxu0
  %v395 = vadd.f32 %v368, %v393
  %s396 = scalar_lea.vmem %s5, 80
  %v397 = vld [vmem:[%s396] sm:$0xff]
  %v398 = vld [vmem:[%s396 + $0x8] sm:$0xff]
  %v400 = vsel %vm97, %v253, 0
  %402 = vmatpush.msra.mxu0 0.0
  %403 = vmatpush.msra.mxu0 0.0
  %404 = vmatpush.msra.mxu0 0.0
  %405 = vmatpush.msra.mxu0 0.0
  %406 = vmatpush.msra.mxu0 0.0
  %407 = vmatpush.msra.mxu0 0.0
  %408 = vmatpush.msra.mxu0 0.0
  %409 = vmatpush.msra.mxu0 0.0
  %410 = vmatpush.msra.mxu0 0.0
  %411 = vmatpush.msra.mxu0 0.0
  %412 = vmatpush.msra.mxu0 0.0
  %413 = vmatpush.msra.mxu0 0.0
  %414 = vmatpush.msra.mxu0 0.0
  %415 = vmatpush.msra.mxu0 0.0
  %416 = vmatpush.msra.mxu0 %v398
  %417 = vmatpush.msra.mxu0 %v397
  %418 = vmatmul.f32.gmra.mxu0 %v400
  %v419 = vpop.f32.mrf.mxu0
  %v420 = vadd.f32 0.0, %v419
  %421 = vdwg.mxu0
  %v422 = vadd.f32 %v395, %v420
  %s423 = scalar_lea.vmem %s5, 96
  %v424 = vld [vmem:[%s423] sm:$0xff]
  %v425 = vld [vmem:[%s423 + $0x8] sm:$0xff]
  %v427 = vsel %vm97, %v256, 0
  %429 = vmatpush.msra.mxu0 0.0
  %430 = vmatpush.msra.mxu0 0.0
  %431 = vmatpush.msra.mxu0 0.0
  %432 = vmatpush.msra.mxu0 0.0
  %433 = vmatpush.msra.mxu0 0.0
  %434 = vmatpush.msra.mxu0 0.0
  %435 = vmatpush.msra.mxu0 0.0
  %436 = vmatpush.msra.mxu0 0.0
  %437 = vmatpush.msra.mxu0 0.0
  %438 = vmatpush.msra.mxu0 0.0
  %439 = vmatpush.msra.mxu0 0.0
  %440 = vmatpush.msra.mxu0 0.0
  %441 = vmatpush.msra.mxu0 0.0
  %442 = vmatpush.msra.mxu0 0.0
  %443 = vmatpush.msra.mxu0 %v425
  %444 = vmatpush.msra.mxu0 %v424
  %445 = vmatmul.f32.gmra.mxu0 %v427
  %v446 = vpop.f32.mrf.mxu0
  %v447 = vadd.f32 0.0, %v446
  %448 = vdwg.mxu0
  %v449 = vadd.f32 %v422, %v447
  %s450 = scalar_lea.vmem %s5, 112
  %v451 = vld [vmem:[%s450] sm:$0xff]
  %v452 = vld [vmem:[%s450 + $0x8] sm:$0xff]
  %v454 = vsel %vm97, %v259, 0
  %456 = vmatpush.msra.mxu0 0.0
  %457 = vmatpush.msra.mxu0 0.0
  %458 = vmatpush.msra.mxu0 0.0
  %459 = vmatpush.msra.mxu0 0.0
  %460 = vmatpush.msra.mxu0 0.0
  %461 = vmatpush.msra.mxu0 0.0
  %462 = vmatpush.msra.mxu0 0.0
  %463 = vmatpush.msra.mxu0 0.0
  %464 = vmatpush.msra.mxu0 0.0
  %465 = vmatpush.msra.mxu0 0.0
  %466 = vmatpush.msra.mxu0 0.0
  %467 = vmatpush.msra.mxu0 0.0
  %468 = vmatpush.msra.mxu0 0.0
  %469 = vmatpush.msra.mxu0 0.0
  %470 = vmatpush.msra.mxu0 %v452
  %471 = vmatpush.msra.mxu0 %v451
  %472 = vmatmul.f32.gmra.mxu0 %v454
  %v473 = vpop.f32.mrf.mxu0
  %v474 = vadd.f32 0.0, %v473
  %475 = vdwg.mxu0
  %v476 = vadd.f32 %v449, %v474
  %s477 = scalar_lea.vmem %s5, 128
  %v478 = vld [vmem:[%s477] sm:$0xff]
  %v479 = vld [vmem:[%s477 + $0x8] sm:$0xff]
  %v481 = vsel %vm97, %v262, 0
  %483 = vmatpush.msra.mxu0 0.0
  %484 = vmatpush.msra.mxu0 0.0
  %485 = vmatpush.msra.mxu0 0.0
  %486 = vmatpush.msra.mxu0 0.0
  %487 = vmatpush.msra.mxu0 0.0
  %488 = vmatpush.msra.mxu0 0.0
  %489 = vmatpush.msra.mxu0 0.0
  %490 = vmatpush.msra.mxu0 0.0
  %491 = vmatpush.msra.mxu0 0.0
  %492 = vmatpush.msra.mxu0 0.0
  %493 = vmatpush.msra.mxu0 0.0
  %494 = vmatpush.msra.mxu0 0.0
  %495 = vmatpush.msra.mxu0 0.0
  %496 = vmatpush.msra.mxu0 0.0
  %497 = vmatpush.msra.mxu0 %v479
  %498 = vmatpush.msra.mxu0 %v478
  %499 = vmatmul.f32.gmra.mxu0 %v481
  %v500 = vpop.f32.mrf.mxu0
  %v501 = vadd.f32 0.0, %v500
  %502 = vdwg.mxu0
  %v503 = vadd.f32 %v476, %v501
  %s504 = scalar_lea.vmem %s3, 72
  %v505 = vld [vmem:[%s504] sm:$0xff]
  %v506 = vld [vmem:[%s504 + $0x8] sm:$0xff]
  %v507 = vld [vmem:[%s504 + $0x10] sm:$0xff]
  %v508 = vld [vmem:[%s504 + $0x18] sm:$0xff]
  %v509 = vld [vmem:[%s504 + $0x20] sm:$0xff]
  %v510 = vld [vmem:[%s504 + $0x28] sm:$0xff]
  %v511 = vld [vmem:[%s504 + $0x30] sm:$0xff]
  %v512 = vld [vmem:[%s504 + $0x38] sm:$0xff]
  %v513 = vld [vmem:[%s504 + $0x40] sm:$0xff]
  %v515 = vsel %vm192, %v505, 0
  %v518 = vsel %vm192, %v506, 0
  %v521 = vsel %vm192, %v507, 0
  %v524 = vsel %vm192, %v508, 0
  %v527 = vsel %vm192, %v509, 0
  %v530 = vsel %vm192, %v510, 0
  %v533 = vsel %vm192, %v511, 0
  %v536 = vsel %vm192, %v512, 0
  %v539 = vsel %vm192, %v513, 0
  %541 = vmatpush.msra.mxu0 0.0
  %542 = vmatpush.msra.mxu0 0.0
  %543 = vmatpush.msra.mxu0 0.0
  %544 = vmatpush.msra.mxu0 0.0
  %545 = vmatpush.msra.mxu0 0.0
  %546 = vmatpush.msra.mxu0 0.0
  %547 = vmatpush.msra.mxu0 0.0
  %548 = vmatpush.msra.mxu0 0.0
  %549 = vmatpush.msra.mxu0 0.0
  %550 = vmatpush.msra.mxu0 0.0
  %551 = vmatpush.msra.mxu0 0.0
  %552 = vmatpush.msra.mxu0 0.0
  %553 = vmatpush.msra.mxu0 0.0
  %554 = vmatpush.msra.mxu0 0.0
  %555 = vmatpush.msra.mxu0 0.0
  %556 = vmatpush.msra.mxu0 %v182
  %557 = vmatmul.f32.gmra.mxu0 %v515
  %v558 = vpop.f32.mrf.mxu0
  %v559 = vadd.f32 0.0, %v558
  %560 = vmatmul.f32.gmra.mxu0 %v518
  %v561 = vpop.f32.mrf.mxu0
  %v562 = vadd.f32 0.0, %v561
  %563 = vmatmul.f32.gmra.mxu0 %v521
  %v564 = vpop.f32.mrf.mxu0
  %v565 = vadd.f32 0.0, %v564
  %566 = vmatmul.f32.gmra.mxu0 %v524
  %v567 = vpop.f32.mrf.mxu0
  %v568 = vadd.f32 0.0, %v567
  %569 = vmatmul.f32.gmra.mxu0 %v527
  %v570 = vpop.f32.mrf.mxu0
  %v571 = vadd.f32 0.0, %v570
  %572 = vmatmul.f32.gmra.mxu0 %v530
  %v573 = vpop.f32.mrf.mxu0
  %v574 = vadd.f32 0.0, %v573
  %575 = vmatmul.f32.gmra.mxu0 %v533
  %v576 = vpop.f32.mrf.mxu0
  %v577 = vadd.f32 0.0, %v576
  %578 = vmatmul.f32.gmra.mxu0 %v536
  %v579 = vpop.f32.mrf.mxu0
  %v580 = vadd.f32 0.0, %v579
  %581 = vmatmul.f32.gmra.mxu0 %v539
  %v582 = vpop.f32.mrf.mxu0
  %v583 = vadd.f32 0.0, %v582
  %584 = vdwg.mxu0
  %v586 = vsel %vm97, %v562, 0
  %588 = vmatpush.msra.mxu0 0.0
  %589 = vmatpush.msra.mxu0 0.0
  %590 = vmatpush.msra.mxu0 0.0
  %591 = vmatpush.msra.mxu0 0.0
  %592 = vmatpush.msra.mxu0 0.0
  %593 = vmatpush.msra.mxu0 0.0
  %594 = vmatpush.msra.mxu0 0.0
  %595 = vmatpush.msra.mxu0 0.0
  %596 = vmatpush.msra.mxu0 0.0
  %597 = vmatpush.msra.mxu0 0.0
  %598 = vmatpush.msra.mxu0 0.0
  %599 = vmatpush.msra.mxu0 0.0
  %600 = vmatpush.msra.mxu0 0.0
  %601 = vmatpush.msra.mxu0 0.0
  %602 = vmatpush.msra.mxu0 %v268
  %603 = vmatpush.msra.mxu0 %v267
  %604 = vmatmul.f32.gmra.mxu0 %v586
  %v605 = vpop.f32.mrf.mxu0
  %v606 = vadd.f32 0.0, %v605
  %607 = vdwg.mxu0
  %v609 = vsel %vm97, %v559, 0
  %611 = vmatpush.msra.mxu0 0.0
  %612 = vmatpush.msra.mxu0 0.0
  %613 = vmatpush.msra.mxu0 0.0
  %614 = vmatpush.msra.mxu0 0.0
  %615 = vmatpush.msra.mxu0 0.0
  %616 = vmatpush.msra.mxu0 0.0
  %617 = vmatpush.msra.mxu0 0.0
  %618 = vmatpush.msra.mxu0 0.0
  %619 = vmatpush.msra.mxu0 0.0
  %620 = vmatpush.msra.mxu0 0.0
  %621 = vmatpush.msra.mxu0 0.0
  %622 = vmatpush.msra.mxu0 0.0
  %623 = vmatpush.msra.mxu0 0.0
  %624 = vmatpush.msra.mxu0 0.0
  %625 = vmatpush.msra.mxu0 %v265
  %626 = vmatpush.msra.mxu0 %v264
  %627 = vmatmul.f32.gmra.mxu0 %v609
  %v628 = vpop.f32.mrf.mxu0
  %v629 = vadd.f32 %v606, %v628
  %630 = vdwg.mxu0
  %v632 = vsel %vm97, %v565, 0
  %634 = vmatpush.msra.mxu0 0.0
  %635 = vmatpush.msra.mxu0 0.0
  %636 = vmatpush.msra.mxu0 0.0
  %637 = vmatpush.msra.mxu0 0.0
  %638 = vmatpush.msra.mxu0 0.0
  %639 = vmatpush.msra.mxu0 0.0
  %640 = vmatpush.msra.mxu0 0.0
  %641 = vmatpush.msra.mxu0 0.0
  %642 = vmatpush.msra.mxu0 0.0
  %643 = vmatpush.msra.mxu0 0.0
  %644 = vmatpush.msra.mxu0 0.0
  %645 = vmatpush.msra.mxu0 0.0
  %646 = vmatpush.msra.mxu0 0.0
  %647 = vmatpush.msra.mxu0 0.0
  %648 = vmatpush.msra.mxu0 %v317
  %649 = vmatpush.msra.mxu0 %v316
  %650 = vmatmul.f32.gmra.mxu0 %v632
  %v651 = vpop.f32.mrf.mxu0
  %v652 = vadd.f32 0.0, %v651
  %653 = vdwg.mxu0
  %v654 = vadd.f32 %v629, %v652
  %v656 = vsel %vm97, %v568, 0
  %658 = vmatpush.msra.mxu0 0.0
  %659 = vmatpush.msra.mxu0 0.0
  %660 = vmatpush.msra.mxu0 0.0
  %661 = vmatpush.msra.mxu0 0.0
  %662 = vmatpush.msra.mxu0 0.0
  %663 = vmatpush.msra.mxu0 0.0
  %664 = vmatpush.msra.mxu0 0.0
  %665 = vmatpush.msra.mxu0 0.0
  %666 = vmatpush.msra.mxu0 0.0
  %667 = vmatpush.msra.mxu0 0.0
  %668 = vmatpush.msra.mxu0 0.0
  %669 = vmatpush.msra.mxu0 0.0
  %670 = vmatpush.msra.mxu0 0.0
  %671 = vmatpush.msra.mxu0 0.0
  %672 = vmatpush.msra.mxu0 %v344
  %673 = vmatpush.msra.mxu0 %v343
  %674 = vmatmul.f32.gmra.mxu0 %v656
  %v675 = vpop.f32.mrf.mxu0
  %v676 = vadd.f32 0.0, %v675
  %677 = vdwg.mxu0
  %v678 = vadd.f32 %v654, %v676
  %v680 = vsel %vm97, %v571, 0
  %682 = vmatpush.msra.mxu0 0.0
  %683 = vmatpush.msra.mxu0 0.0
  %684 = vmatpush.msra.mxu0 0.0
  %685 = vmatpush.msra.mxu0 0.0
  %686 = vmatpush.msra.mxu0 0.0
  %687 = vmatpush.msra.mxu0 0.0
  %688 = vmatpush.msra.mxu0 0.0
  %689 = vmatpush.msra.mxu0 0.0
  %690 = vmatpush.msra.mxu0 0.0
  %691 = vmatpush.msra.mxu0 0.0
  %692 = vmatpush.msra.mxu0 0.0
  %693 = vmatpush.msra.mxu0 0.0
  %694 = vmatpush.msra.mxu0 0.0
  %695 = vmatpush.msra.mxu0 0.0
  %696 = vmatpush.msra.mxu0 %v371
  %697 = vmatpush.msra.mxu0 %v370
  %698 = vmatmul.f32.gmra.mxu0 %v680
  %v699 = vpop.f32.mrf.mxu0
  %v700 = vadd.f32 0.0, %v699
  %701 = vdwg.mxu0
  %v702 = vadd.f32 %v678, %v700
  %v704 = vsel %vm97, %v574, 0
  %706 = vmatpush.msra.mxu0 0.0
  %707 = vmatpush.msra.mxu0 0.0
  %708 = vmatpush.msra.mxu0 0.0
  %709 = vmatpush.msra.mxu0 0.0
  %710 = vmatpush.msra.mxu0 0.0
  %711 = vmatpush.msra.mxu0 0.0
  %712 = vmatpush.msra.mxu0 0.0
  %713 = vmatpush.msra.mxu0 0.0
  %714 = vmatpush.msra.mxu0 0.0
  %715 = vmatpush.msra.mxu0 0.0
  %716 = vmatpush.msra.mxu0 0.0
  %717 = vmatpush.msra.mxu0 0.0
  %718 = vmatpush.msra.mxu0 0.0
  %719 = vmatpush.msra.mxu0 0.0
  %720 = vmatpush.msra.mxu0 %v398
  %721 = vmatpush.msra.mxu0 %v397
  %722 = vmatmul.f32.gmra.mxu0 %v704
  %v723 = vpop.f32.mrf.mxu0
  %v724 = vadd.f32 0.0, %v723
  %725 = vdwg.mxu0
  %v726 = vadd.f32 %v702, %v724
  %v728 = vsel %vm97, %v577, 0
  %730 = vmatpush.msra.mxu0 0.0
  %731 = vmatpush.msra.mxu0 0.0
  %732 = vmatpush.msra.mxu0 0.0
  %733 = vmatpush.msra.mxu0 0.0
  %734 = vmatpush.msra.mxu0 0.0
  %735 = vmatpush.msra.mxu0 0.0
  %736 = vmatpush.msra.mxu0 0.0
  %737 = vmatpush.msra.mxu0 0.0
  %738 = vmatpush.msra.mxu0 0.0
  %739 = vmatpush.msra.mxu0 0.0
  %740 = vmatpush.msra.mxu0 0.0
  %741 = vmatpush.msra.mxu0 0.0
  %742 = vmatpush.msra.mxu0 0.0
  %743 = vmatpush.msra.mxu0 0.0
  %744 = vmatpush.msra.mxu0 %v425
  %745 = vmatpush.msra.mxu0 %v424
  %746 = vmatmul.f32.gmra.mxu0 %v728
  %v747 = vpop.f32.mrf.mxu0
  %v748 = vadd.f32 0.0, %v747
  %749 = vdwg.mxu0
  %v750 = vadd.f32 %v726, %v748
  %v752 = vsel %vm97, %v580, 0
  %754 = vmatpush.msra.mxu0 0.0
  %755 = vmatpush.msra.mxu0 0.0
  %756 = vmatpush.msra.mxu0 0.0
  %757 = vmatpush.msra.mxu0 0.0
  %758 = vmatpush.msra.mxu0 0.0
  %759 = vmatpush.msra.mxu0 0.0
  %760 = vmatpush.msra.mxu0 0.0
  %761 = vmatpush.msra.mxu0 0.0
  %762 = vmatpush.msra.mxu0 0.0
  %763 = vmatpush.msra.mxu0 0.0
  %764 = vmatpush.msra.mxu0 0.0
  %765 = vmatpush.msra.mxu0 0.0
  %766 = vmatpush.msra.mxu0 0.0
  %767 = vmatpush.msra.mxu0 0.0
  %768 = vmatpush.msra.mxu0 %v452
  %769 = vmatpush.msra.mxu0 %v451
  %770 = vmatmul.f32.gmra.mxu0 %v752
  %v771 = vpop.f32.mrf.mxu0
  %v772 = vadd.f32 0.0, %v771
  %773 = vdwg.mxu0
  %v774 = vadd.f32 %v750, %v772
  %v776 = vsel %vm97, %v583, 0
  %778 = vmatpush.msra.mxu0 0.0
  %779 = vmatpush.msra.mxu0 0.0
  %780 = vmatpush.msra.mxu0 0.0
  %781 = vmatpush.msra.mxu0 0.0
  %782 = vmatpush.msra.mxu0 0.0
  %783 = vmatpush.msra.mxu0 0.0
  %784 = vmatpush.msra.mxu0 0.0
  %785 = vmatpush.msra.mxu0 0.0
  %786 = vmatpush.msra.mxu0 0.0
  %787 = vmatpush.msra.mxu0 0.0
  %788 = vmatpush.msra.mxu0 0.0
  %789 = vmatpush.msra.mxu0 0.0
  %790 = vmatpush.msra.mxu0 0.0
  %791 = vmatpush.msra.mxu0 0.0
  %792 = vmatpush.msra.mxu0 %v479
  %793 = vmatpush.msra.mxu0 %v478
  %794 = vmatmul.f32.gmra.mxu0 %v776
  %v795 = vpop.f32.mrf.mxu0
  %v796 = vadd.f32 0.0, %v795
  %797 = vdwg.mxu0
  %v798 = vadd.f32 %v774, %v796
  %v799 = vsel %vm97, %v503, 0.0
  %800 = vadd.xlane.f32.xlu0 %v799
  %v801 = vpop.xlane.xlu0 %800
  %v802 = vadd.f32 %v801, 0.0
  %v803 = vmul.f32 %v503, %v503
  %v804 = vsel %vm97, %v803, 0.0
  %805 = vadd.xlane.f32.xlu0 %v804
  %v806 = vpop.xlane.xlu0 %805
  %v807 = vadd.f32 %v806, 0.0
  %v808 = vsel %vm97, %v798, 0.0
  %809 = vadd.xlane.f32.xlu0 %v808
  %v810 = vpop.xlane.xlu0 %809
  %v811 = vadd.f32 %v802, %v810
  %v812 = vmul.f32 %v798, %v798
  %v813 = vsel %vm97, %v812, 0.0
  %814 = vadd.xlane.f32.xlu0 %v813
  %v815 = vpop.xlane.xlu0 %814
  %v816 = vadd.f32 %v807, %v815
  %v817 = vmul.f32 %v811, %v151
  %v818 = vmul.f32 %v816, %v151
  %v819 = vmul.f32 %v817, %v817
  %v820 = vsub.f32 %v818, %v819
  %v821 = vadd.f32 %v820, 1e-05
  %v822 = vrsqrt.pop %v821
  %v823 = vmul.f32 %v822, %v821
  %v824 = vmul.f32 %v823, %v822
  %v825 = vmul.f32 0.5, %v824
  %v826 = vsub.f32 1.5, %v825
  %v827 = vmul.f32 %v822, %v826
  %vm828 = vweird.f32 %v821
  %vm829 = vweird.f32 %v822
  %vm830 = vmor %vm828, %vm829
  %v831 = vsel %vm830, %v822, %v827
  %833 = vset.pattern.permute.xlu0 0
  %834 = vperm.xlu0 %833, %v817
  %v835 = vpop.permute.xlu0 %834
  %v837 = vsub.f32 %v503, %v835
  %v838 = vsub.f32 %v798, %v835
  %840 = vset.pattern.permute.xlu0 0
  %841 = vperm.xlu0 %840, %v831
  %v842 = vpop.permute.xlu0 %841
  %v844 = vmul.f32 %v837, %v842
  %v845 = vmul.f32 %v838, %v842
  %v846 = vmax.f32 %v844, 0.0
  %v847 = vmax.f32 %v845, 0.0
  %v849 = vsel %vm97, %v846, 0
  %v852 = vsel %vm97, %v847, 0
  %854 = vmatpush.msra.mxu0 0.0
  %855 = vmatpush.msra.mxu0 0.0
  %856 = vmatpush.msra.mxu0 0.0
  %857 = vmatpush.msra.mxu0 0.0
  %858 = vmatpush.msra.mxu0 0.0
  %859 = vmatpush.msra.mxu0 0.0
  %860 = vmatpush.msra.mxu0 0.0
  %861 = vmatpush.msra.mxu0 0.0
  %862 = vmatpush.msra.mxu0 0.0
  %863 = vmatpush.msra.mxu0 0.0
  %864 = vmatpush.msra.mxu0 0.0
  %865 = vmatpush.msra.mxu0 0.0
  %866 = vmatpush.msra.mxu0 0.0
  %867 = vmatpush.msra.mxu0 0.0
  %868 = vmatpush.msra.mxu0 %v96
  %869 = vmatpush.msra.mxu0 %v95
  %870 = vmatmul.f32.gmra.mxu0 %v849
  %v871 = vpop.f32.mrf.mxu0
  %v872 = vadd.f32 0.0, %v871
  %873 = vmatmul.f32.gmra.mxu0 %v852
  %v874 = vpop.f32.mrf.mxu0
  %v875 = vadd.f32 0.0, %v874
  %876 = vdwg.mxu0
  %v877 = vsel %vm97, %v872, 0.0
  %878 = vadd.xlane.f32.xlu0 %v877
  %v879 = vpop.xlane.xlu0 %878
  %v880 = vadd.f32 %v879, 0.0
  %v881 = vmul.f32 %v872, %v872
  %v882 = vsel %vm97, %v881, 0.0
  %883 = vadd.xlane.f32.xlu0 %v882
  %v884 = vpop.xlane.xlu0 %883
  %v885 = vadd.f32 %v884, 0.0
  %v886 = vsel %vm97, %v875, 0.0
  %887 = vadd.xlane.f32.xlu0 %v886
  %v888 = vpop.xlane.xlu0 %887
  %v889 = vadd.f32 %v880, %v888
  %v890 = vmul.f32 %v875, %v875
  %v891 = vsel %vm97, %v890, 0.0
  %892 = vadd.xlane.f32.xlu0 %v891
  %v893 = vpop.xlane.xlu0 %892
  %v894 = vadd.f32 %v885, %v893
  %v895 = vmul.f32 %v889, %v151
  %v896 = vmul.f32 %v894, %v151
  %v897 = vmul.f32 %v895, %v895
  %v898 = vsub.f32 %v896, %v897
  %v899 = vadd.f32 %v898, 1e-05
  %v900 = vrsqrt.pop %v899
  %v901 = vmul.f32 %v900, %v899
  %v902 = vmul.f32 %v901, %v900
  %v903 = vmul.f32 0.5, %v902
  %v904 = vsub.f32 1.5, %v903
  %v905 = vmul.f32 %v900, %v904
  %vm906 = vweird.f32 %v899
  %vm907 = vweird.f32 %v900
  %vm908 = vmor %vm906, %vm907
  %v909 = vsel %vm908, %v900, %v905
  %911 = vset.pattern.permute.xlu0 0
  %912 = vperm.xlu0 %911, %v895
  %v913 = vpop.permute.xlu0 %912
  %v915 = vsub.f32 %v872, %v913
  %v916 = vsub.f32 %v875, %v913
  %918 = vset.pattern.permute.xlu0 0
  %919 = vperm.xlu0 %918, %v909
  %v920 = vpop.permute.xlu0 %919
  %v922 = vmul.f32 %v915, %v920
  %v923 = vmul.f32 %v916, %v920
  %v924 = vadd.f32 %v922, %v57
  %v925 = vadd.f32 %v923, %v91
  %v926 = vmax.f32 %v924, 0.0
  %v927 = vmax.f32 %v925, 0.0
  %s928 = scalar_lea.vmem %s4, 16
  %v929 = vld [vmem:[%s928] sm:$0xff]
  %v930 = vld [vmem:[%s928 + $0x8] sm:$0xff]
  %s931 = scalar_lea.vmem %s6, 16
  %v932 = vld [vmem:[%s931] sm:$0xff]
  %v933 = vld [vmem:[%s931 + $0x8] sm:$0xff]
  %v935 = vsel %vm97, %v926, 0
  %v938 = vsel %vm97, %v927, 0
  %940 = vmatpush.msra.mxu0 0.0
  %941 = vmatpush.msra.mxu0 0.0
  %942 = vmatpush.msra.mxu0 0.0
  %943 = vmatpush.msra.mxu0 0.0
  %944 = vmatpush.msra.mxu0 0.0
  %945 = vmatpush.msra.mxu0 0.0
  %946 = vmatpush.msra.mxu0 0.0
  %947 = vmatpush.msra.mxu0 0.0
  %948 = vmatpush.msra.mxu0 0.0
  %949 = vmatpush.msra.mxu0 0.0
  %950 = vmatpush.msra.mxu0 0.0
  %951 = vmatpush.msra.mxu0 0.0
  %952 = vmatpush.msra.mxu0 0.0
  %953 = vmatpush.msra.mxu0 0.0
  %954 = vmatpush.msra.mxu0 %v930
  %955 = vmatpush.msra.mxu0 %v929
  %956 = vmatmul.f32.gmra.mxu0 %v935
  %v957 = vpop.f32.mrf.mxu0
  %v958 = vadd.f32 0.0, %v957
  %959 = vmatmul.f32.gmra.mxu0 %v938
  %v960 = vpop.f32.mrf.mxu0
  %v961 = vadd.f32 0.0, %v960
  %962 = vdwg.mxu0
  %v963 = vsel %vm97, %v958, 0.0
  %964 = vadd.xlane.f32.xlu0 %v963
  %v965 = vpop.xlane.xlu0 %964
  %v966 = vadd.f32 %v965, 0.0
  %v967 = vmul.f32 %v958, %v958
  %v968 = vsel %vm97, %v967, 0.0
  %969 = vadd.xlane.f32.xlu0 %v968
  %v970 = vpop.xlane.xlu0 %969
  %v971 = vadd.f32 %v970, 0.0
  %v972 = vsel %vm97, %v961, 0.0
  %973 = vadd.xlane.f32.xlu0 %v972
  %v974 = vpop.xlane.xlu0 %973
  %v975 = vadd.f32 %v966, %v974
  %v976 = vmul.f32 %v961, %v961
  %v977 = vsel %vm97, %v976, 0.0
  %978 = vadd.xlane.f32.xlu0 %v977
  %v979 = vpop.xlane.xlu0 %978
  %v980 = vadd.f32 %v971, %v979
  %v981 = vmul.f32 %v975, %v151
  %v982 = vmul.f32 %v980, %v151
  %v983 = vmul.f32 %v981, %v981
  %v984 = vsub.f32 %v982, %v983
  %v985 = vadd.f32 %v984, 1e-05
  %v986 = vrsqrt.pop %v985
  %v987 = vmul.f32 %v986, %v985
  %v988 = vmul.f32 %v987, %v986
  %v989 = vmul.f32 0.5, %v988
  %v990 = vsub.f32 1.5, %v989
  %v991 = vmul.f32 %v986, %v990
  %vm992 = vweird.f32 %v985
  %vm993 = vweird.f32 %v986
  %vm994 = vmor %vm992, %vm993
  %v995 = vsel %vm994, %v986, %v991
  %997 = vset.pattern.permute.xlu0 0
  %998 = vperm.xlu0 %997, %v981
  %v999 = vpop.permute.xlu0 %998
  %v1001 = vsub.f32 %v958, %v999
  %v1002 = vsub.f32 %v961, %v999
  %1004 = vset.pattern.permute.xlu0 0
  %1005 = vperm.xlu0 %1004, %v995
  %v1006 = vpop.permute.xlu0 %1005
  %v1008 = vmul.f32 %v1001, %v1006
  %v1009 = vmul.f32 %v1002, %v1006
  %v1010 = vmax.f32 %v1008, 0.0
  %v1011 = vmax.f32 %v1009, 0.0
  %1012 = vmatpush.msra.mxu0 0.0
  %1013 = vmatpush.msra.mxu0 0.0
  %1014 = vmatpush.msra.mxu0 0.0
  %1015 = vmatpush.msra.mxu0 0.0
  %1016 = vmatpush.msra.mxu0 0.0
  %1017 = vmatpush.msra.mxu0 0.0
  %1018 = vmatpush.msra.mxu0 0.0
  %1019 = vmatpush.msra.mxu0 0.0
  %1020 = vmatpush.msra.mxu0 0.0
  %1021 = vmatpush.msra.mxu0 0.0
  %1022 = vmatpush.msra.mxu0 0.0
  %1023 = vmatpush.msra.mxu0 0.0
  %1024 = vmatpush.msra.mxu0 0.0
  %1025 = vmatpush.msra.mxu0 0.0
  %1026 = vmatpush.msra.mxu0 0.0
  %1027 = vmatpush.msra.mxu0 %v1010
  %1028 = vmatmul.f32.gmra.mxu0 %v194
  %v1029 = vpop.f32.mrf.mxu0
  %v1030 = vadd.f32 0.0, %v1029
  %1031 = vmatmul.f32.gmra.mxu0 %v197
  %v1032 = vpop.f32.mrf.mxu0
  %v1033 = vadd.f32 0.0, %v1032
  %1034 = vmatmul.f32.gmra.mxu0 %v200
  %v1035 = vpop.f32.mrf.mxu0
  %v1036 = vadd.f32 0.0, %v1035
  %1037 = vmatmul.f32.gmra.mxu0 %v203
  %v1038 = vpop.f32.mrf.mxu0
  %v1039 = vadd.f32 0.0, %v1038
  %1040 = vmatmul.f32.gmra.mxu0 %v206
  %v1041 = vpop.f32.mrf.mxu0
  %v1042 = vadd.f32 0.0, %v1041
  %1043 = vmatmul.f32.gmra.mxu0 %v209
  %v1044 = vpop.f32.mrf.mxu0
  %v1045 = vadd.f32 0.0, %v1044
  %1046 = vmatmul.f32.gmra.mxu0 %v212
  %v1047 = vpop.f32.mrf.mxu0
  %v1048 = vadd.f32 0.0, %v1047
  %1049 = vmatmul.f32.gmra.mxu0 %v215
  %v1050 = vpop.f32.mrf.mxu0
  %v1051 = vadd.f32 0.0, %v1050
  %1052 = vmatmul.f32.gmra.mxu0 %v218
  %v1053 = vpop.f32.mrf.mxu0
  %v1054 = vadd.f32 0.0, %v1053
  %1055 = vdwg.mxu0
  %s1056 = scalar_lea.vmem %s5, 144
  %v1057 = vld [vmem:[%s1056] sm:$0xff]
  %v1058 = vld [vmem:[%s1056 + $0x8] sm:$0xff]
  %s1059 = scalar_lea.vmem %s5, 160
  %v1060 = vld [vmem:[%s1059] sm:$0xff]
  %v1061 = vld [vmem:[%s1059 + $0x8] sm:$0xff]
  %v1063 = vsel %vm97, %v1033, 0
  %1065 = vmatpush.msra.mxu0 0.0
  %1066 = vmatpush.msra.mxu0 0.0
  %1067 = vmatpush.msra.mxu0 0.0
  %1068 = vmatpush.msra.mxu0 0.0
  %1069 = vmatpush.msra.mxu0 0.0
  %1070 = vmatpush.msra.mxu0 0.0
  %1071 = vmatpush.msra.mxu0 0.0
  %1072 = vmatpush.msra.mxu0 0.0
  %1073 = vmatpush.msra.mxu0 0.0
  %1074 = vmatpush.msra.mxu0 0.0
  %1075 = vmatpush.msra.mxu0 0.0
  %1076 = vmatpush.msra.mxu0 0.0
  %1077 = vmatpush.msra.mxu0 0.0
  %1078 = vmatpush.msra.mxu0 0.0
  %1079 = vmatpush.msra.mxu0 %v1061
  %1080 = vmatpush.msra.mxu0 %v1060
  %1081 = vmatmul.f32.gmra.mxu0 %v1063
  %v1082 = vpop.f32.mrf.mxu0
  %v1083 = vadd.f32 0.0, %v1082
  %1084 = vdwg.mxu0
  %v1086 = vsel %vm97, %v1030, 0
  %1088 = vmatpush.msra.mxu0 0.0
  %1089 = vmatpush.msra.mxu0 0.0
  %1090 = vmatpush.msra.mxu0 0.0
  %1091 = vmatpush.msra.mxu0 0.0
  %1092 = vmatpush.msra.mxu0 0.0
  %1093 = vmatpush.msra.mxu0 0.0
  %1094 = vmatpush.msra.mxu0 0.0
  %1095 = vmatpush.msra.mxu0 0.0
  %1096 = vmatpush.msra.mxu0 0.0
  %1097 = vmatpush.msra.mxu0 0.0
  %1098 = vmatpush.msra.mxu0 0.0
  %1099 = vmatpush.msra.mxu0 0.0
  %1100 = vmatpush.msra.mxu0 0.0
  %1101 = vmatpush.msra.mxu0 0.0
  %1102 = vmatpush.msra.mxu0 %v1058
  %1103 = vmatpush.msra.mxu0 %v1057
  %1104 = vmatmul.f32.gmra.mxu0 %v1086
  %v1105 = vpop.f32.mrf.mxu0
  %v1106 = vadd.f32 %v1083, %v1105
  %1107 = vdwg.mxu0
  %s1108 = scalar_lea.vmem %s5, 176
  %v1109 = vld [vmem:[%s1108] sm:$0xff]
  %v1110 = vld [vmem:[%s1108 + $0x8] sm:$0xff]
  %v1112 = vsel %vm97, %v1036, 0
  %1114 = vmatpush.msra.mxu0 0.0
  %1115 = vmatpush.msra.mxu0 0.0
  %1116 = vmatpush.msra.mxu0 0.0
  %1117 = vmatpush.msra.mxu0 0.0
  %1118 = vmatpush.msra.mxu0 0.0
  %1119 = vmatpush.msra.mxu0 0.0
  %1120 = vmatpush.msra.mxu0 0.0
  %1121 = vmatpush.msra.mxu0 0.0
  %1122 = vmatpush.msra.mxu0 0.0
  %1123 = vmatpush.msra.mxu0 0.0
  %1124 = vmatpush.msra.mxu0 0.0
  %1125 = vmatpush.msra.mxu0 0.0
  %1126 = vmatpush.msra.mxu0 0.0
  %1127 = vmatpush.msra.mxu0 0.0
  %1128 = vmatpush.msra.mxu0 %v1110
  %1129 = vmatpush.msra.mxu0 %v1109
  %1130 = vmatmul.f32.gmra.mxu0 %v1112
  %v1131 = vpop.f32.mrf.mxu0
  %v1132 = vadd.f32 0.0, %v1131
  %1133 = vdwg.mxu0
  %v1134 = vadd.f32 %v1106, %v1132
  %s1135 = scalar_lea.vmem %s5, 192
  %v1136 = vld [vmem:[%s1135] sm:$0xff]
  %v1137 = vld [vmem:[%s1135 + $0x8] sm:$0xff]
  %v1139 = vsel %vm97, %v1039, 0
  %1141 = vmatpush.msra.mxu0 0.0
  %1142 = vmatpush.msra.mxu0 0.0
  %1143 = vmatpush.msra.mxu0 0.0
  %1144 = vmatpush.msra.mxu0 0.0
  %1145 = vmatpush.msra.mxu0 0.0
  %1146 = vmatpush.msra.mxu0 0.0
  %1147 = vmatpush.msra.mxu0 0.0
  %1148 = vmatpush.msra.mxu0 0.0
  %1149 = vmatpush.msra.mxu0 0.0
  %1150 = vmatpush.msra.mxu0 0.0
  %1151 = vmatpush.msra.mxu0 0.0
  %1152 = vmatpush.msra.mxu0 0.0
  %1153 = vmatpush.msra.mxu0 0.0
  %1154 = vmatpush.msra.mxu0 0.0
  %1155 = vmatpush.msra.mxu0 %v1137
  %1156 = vmatpush.msra.mxu0 %v1136
  %1157 = vmatmul.f32.gmra.mxu0 %v1139
  %v1158 = vpop.f32.mrf.mxu0
  %v1159 = vadd.f32 0.0, %v1158
  %1160 = vdwg.mxu0
  %v1161 = vadd.f32 %v1134, %v1159
  %s1162 = scalar_lea.vmem %s5, 208
  %v1163 = vld [vmem:[%s1162] sm:$0xff]
  %v1164 = vld [vmem:[%s1162 + $0x8] sm:$0xff]
  %v1166 = vsel %vm97, %v1042, 0
  %1168 = vmatpush.msra.mxu0 0.0
  %1169 = vmatpush.msra.mxu0 0.0
  %1170 = vmatpush.msra.mxu0 0.0
  %1171 = vmatpush.msra.mxu0 0.0
  %1172 = vmatpush.msra.mxu0 0.0
  %1173 = vmatpush.msra.mxu0 0.0
  %1174 = vmatpush.msra.mxu0 0.0
  %1175 = vmatpush.msra.mxu0 0.0
  %1176 = vmatpush.msra.mxu0 0.0
  %1177 = vmatpush.msra.mxu0 0.0
  %1178 = vmatpush.msra.mxu0 0.0
  %1179 = vmatpush.msra.mxu0 0.0
  %1180 = vmatpush.msra.mxu0 0.0
  %1181 = vmatpush.msra.mxu0 0.0
  %1182 = vmatpush.msra.mxu0 %v1164
  %1183 = vmatpush.msra.mxu0 %v1163
  %1184 = vmatmul.f32.gmra.mxu0 %v1166
  %v1185 = vpop.f32.mrf.mxu0
  %v1186 = vadd.f32 0.0, %v1185
  %1187 = vdwg.mxu0
  %v1188 = vadd.f32 %v1161, %v1186
  %s1189 = scalar_lea.vmem %s5, 224
  %v1190 = vld [vmem:[%s1189] sm:$0xff]
  %v1191 = vld [vmem:[%s1189 + $0x8] sm:$0xff]
  %v1193 = vsel %vm97, %v1045, 0
  %1195 = vmatpush.msra.mxu0 0.0
  %1196 = vmatpush.msra.mxu0 0.0
  %1197 = vmatpush.msra.mxu0 0.0
  %1198 = vmatpush.msra.mxu0 0.0
  %1199 = vmatpush.msra.mxu0 0.0
  %1200 = vmatpush.msra.mxu0 0.0
  %1201 = vmatpush.msra.mxu0 0.0
  %1202 = vmatpush.msra.mxu0 0.0
  %1203 = vmatpush.msra.mxu0 0.0
  %1204 = vmatpush.msra.mxu0 0.0
  %1205 = vmatpush.msra.mxu0 0.0
  %1206 = vmatpush.msra.mxu0 0.0
  %1207 = vmatpush.msra.mxu0 0.0
  %1208 = vmatpush.msra.mxu0 0.0
  %1209 = vmatpush.msra.mxu0 %v1191
  %1210 = vmatpush.msra.mxu0 %v1190
  %1211 = vmatmul.f32.gmra.mxu0 %v1193
  %v1212 = vpop.f32.mrf.mxu0
  %v1213 = vadd.f32 0.0, %v1212
  %1214 = vdwg.mxu0
  %v1215 = vadd.f32 %v1188, %v1213
  %s1216 = scalar_lea.vmem %s5, 240
  %v1217 = vld [vmem:[%s1216] sm:$0xff]
  %v1218 = vld [vmem:[%s1216 + $0x8] sm:$0xff]
  %v1220 = vsel %vm97, %v1048, 0
  %1222 = vmatpush.msra.mxu0 0.0
  %1223 = vmatpush.msra.mxu0 0.0
  %1224 = vmatpush.msra.mxu0 0.0
  %1225 = vmatpush.msra.mxu0 0.0
  %1226 = vmatpush.msra.mxu0 0.0
  %1227 = vmatpush.msra.mxu0 0.0
  %1228 = vmatpush.msra.mxu0 0.0
  %1229 = vmatpush.msra.mxu0 0.0
  %1230 = vmatpush.msra.mxu0 0.0
  %1231 = vmatpush.msra.mxu0 0.0
  %1232 = vmatpush.msra.mxu0 0.0
  %1233 = vmatpush.msra.mxu0 0.0
  %1234 = vmatpush.msra.mxu0 0.0
  %1235 = vmatpush.msra.mxu0 0.0
  %1236 = vmatpush.msra.mxu0 %v1218
  %1237 = vmatpush.msra.mxu0 %v1217
  %1238 = vmatmul.f32.gmra.mxu0 %v1220
  %v1239 = vpop.f32.mrf.mxu0
  %v1240 = vadd.f32 0.0, %v1239
  %1241 = vdwg.mxu0
  %v1242 = vadd.f32 %v1215, %v1240
  %s1243 = scalar_lea.vmem %s5, 256
  %v1244 = vld [vmem:[%s1243] sm:$0xff]
  %v1245 = vld [vmem:[%s1243 + $0x8] sm:$0xff]
  %v1247 = vsel %vm97, %v1051, 0
  %1249 = vmatpush.msra.mxu0 0.0
  %1250 = vmatpush.msra.mxu0 0.0
  %1251 = vmatpush.msra.mxu0 0.0
  %1252 = vmatpush.msra.mxu0 0.0
  %1253 = vmatpush.msra.mxu0 0.0
  %1254 = vmatpush.msra.mxu0 0.0
  %1255 = vmatpush.msra.mxu0 0.0
  %1256 = vmatpush.msra.mxu0 0.0
  %1257 = vmatpush.msra.mxu0 0.0
  %1258 = vmatpush.msra.mxu0 0.0
  %1259 = vmatpush.msra.mxu0 0.0
  %1260 = vmatpush.msra.mxu0 0.0
  %1261 = vmatpush.msra.mxu0 0.0
  %1262 = vmatpush.msra.mxu0 0.0
  %1263 = vmatpush.msra.mxu0 %v1245
  %1264 = vmatpush.msra.mxu0 %v1244
  %1265 = vmatmul.f32.gmra.mxu0 %v1247
  %v1266 = vpop.f32.mrf.mxu0
  %v1267 = vadd.f32 0.0, %v1266
  %1268 = vdwg.mxu0
  %v1269 = vadd.f32 %v1242, %v1267
  %s1270 = scalar_lea.vmem %s5, 272
  %v1271 = vld [vmem:[%s1270] sm:$0xff]
  %v1272 = vld [vmem:[%s1270 + $0x8] sm:$0xff]
  %v1274 = vsel %vm97, %v1054, 0
  %1276 = vmatpush.msra.mxu0 0.0
  %1277 = vmatpush.msra.mxu0 0.0
  %1278 = vmatpush.msra.mxu0 0.0
  %1279 = vmatpush.msra.mxu0 0.0
  %1280 = vmatpush.msra.mxu0 0.0
  %1281 = vmatpush.msra.mxu0 0.0
  %1282 = vmatpush.msra.mxu0 0.0
  %1283 = vmatpush.msra.mxu0 0.0
  %1284 = vmatpush.msra.mxu0 0.0
  %1285 = vmatpush.msra.mxu0 0.0
  %1286 = vmatpush.msra.mxu0 0.0
  %1287 = vmatpush.msra.mxu0 0.0
  %1288 = vmatpush.msra.mxu0 0.0
  %1289 = vmatpush.msra.mxu0 0.0
  %1290 = vmatpush.msra.mxu0 %v1272
  %1291 = vmatpush.msra.mxu0 %v1271
  %1292 = vmatmul.f32.gmra.mxu0 %v1274
  %v1293 = vpop.f32.mrf.mxu0
  %v1294 = vadd.f32 0.0, %v1293
  %1295 = vdwg.mxu0
  %v1296 = vadd.f32 %v1269, %v1294
  %1297 = vmatpush.msra.mxu0 0.0
  %1298 = vmatpush.msra.mxu0 0.0
  %1299 = vmatpush.msra.mxu0 0.0
  %1300 = vmatpush.msra.mxu0 0.0
  %1301 = vmatpush.msra.mxu0 0.0
  %1302 = vmatpush.msra.mxu0 0.0
  %1303 = vmatpush.msra.mxu0 0.0
  %1304 = vmatpush.msra.mxu0 0.0
  %1305 = vmatpush.msra.mxu0 0.0
  %1306 = vmatpush.msra.mxu0 0.0
  %1307 = vmatpush.msra.mxu0 0.0
  %1308 = vmatpush.msra.mxu0 0.0
  %1309 = vmatpush.msra.mxu0 0.0
  %1310 = vmatpush.msra.mxu0 0.0
  %1311 = vmatpush.msra.mxu0 0.0
  %1312 = vmatpush.msra.mxu0 %v1011
  %1313 = vmatmul.f32.gmra.mxu0 %v515
  %v1314 = vpop.f32.mrf.mxu0
  %v1315 = vadd.f32 0.0, %v1314
  %1316 = vmatmul.f32.gmra.mxu0 %v518
  %v1317 = vpop.f32.mrf.mxu0
  %v1318 = vadd.f32 0.0, %v1317
  %1319 = vmatmul.f32.gmra.mxu0 %v521
  %v1320 = vpop.f32.mrf.mxu0
  %v1321 = vadd.f32 0.0, %v1320
  %1322 = vmatmul.f32.gmra.mxu0 %v524
  %v1323 = vpop.f32.mrf.mxu0
  %v1324 = vadd.f32 0.0, %v1323
  %1325 = vmatmul.f32.gmra.mxu0 %v527
  %v1326 = vpop.f32.mrf.mxu0
  %v1327 = vadd.f32 0.0, %v1326
  %1328 = vmatmul.f32.gmra.mxu0 %v530
  %v1329 = vpop.f32.mrf.mxu0
  %v1330 = vadd.f32 0.0, %v1329
  %1331 = vmatmul.f32.gmra.mxu0 %v533
  %v1332 = vpop.f32.mrf.mxu0
  %v1333 = vadd.f32 0.0, %v1332
  %1334 = vmatmul.f32.gmra.mxu0 %v536
  %v1335 = vpop.f32.mrf.mxu0
  %v1336 = vadd.f32 0.0, %v1335
  %1337 = vmatmul.f32.gmra.mxu0 %v539
  %v1338 = vpop.f32.mrf.mxu0
  %v1339 = vadd.f32 0.0, %v1338
  %1340 = vdwg.mxu0
  %v1342 = vsel %vm97, %v1318, 0
  %1344 = vmatpush.msra.mxu0 0.0
  %1345 = vmatpush.msra.mxu0 0.0
  %1346 = vmatpush.msra.mxu0 0.0
  %1347 = vmatpush.msra.mxu0 0.0
  %1348 = vmatpush.msra.mxu0 0.0
  %1349 = vmatpush.msra.mxu0 0.0
  %1350 = vmatpush.msra.mxu0 0.0
  %1351 = vmatpush.msra.mxu0 0.0
  %1352 = vmatpush.msra.mxu0 0.0
  %1353 = vmatpush.msra.mxu0 0.0
  %1354 = vmatpush.msra.mxu0 0.0
  %1355 = vmatpush.msra.mxu0 0.0
  %1356 = vmatpush.msra.mxu0 0.0
  %1357 = vmatpush.msra.mxu0 0.0
  %1358 = vmatpush.msra.mxu0 %v1061
  %1359 = vmatpush.msra.mxu0 %v1060
  %1360 = vmatmul.f32.gmra.mxu0 %v1342
  %v1361 = vpop.f32.mrf.mxu0
  %v1362 = vadd.f32 0.0, %v1361
  %1363 = vdwg.mxu0
  %v1365 = vsel %vm97, %v1315, 0
  %1367 = vmatpush.msra.mxu0 0.0
  %1368 = vmatpush.msra.mxu0 0.0
  %1369 = vmatpush.msra.mxu0 0.0
  %1370 = vmatpush.msra.mxu0 0.0
  %1371 = vmatpush.msra.mxu0 0.0
  %1372 = vmatpush.msra.mxu0 0.0
  %1373 = vmatpush.msra.mxu0 0.0
  %1374 = vmatpush.msra.mxu0 0.0
  %1375 = vmatpush.msra.mxu0 0.0
  %1376 = vmatpush.msra.mxu0 0.0
  %1377 = vmatpush.msra.mxu0 0.0
  %1378 = vmatpush.msra.mxu0 0.0
  %1379 = vmatpush.msra.mxu0 0.0
  %1380 = vmatpush.msra.mxu0 0.0
  %1381 = vmatpush.msra.mxu0 %v1058
  %1382 = vmatpush.msra.mxu0 %v1057
  %1383 = vmatmul.f32.gmra.mxu0 %v1365
  %v1384 = vpop.f32.mrf.mxu0
  %v1385 = vadd.f32 %v1362, %v1384
  %1386 = vdwg.mxu0
  %v1388 = vsel %vm97, %v1321, 0
  %1390 = vmatpush.msra.mxu0 0.0
  %1391 = vmatpush.msra.mxu0 0.0
  %1392 = vmatpush.msra.mxu0 0.0
  %1393 = vmatpush.msra.mxu0 0.0
  %1394 = vmatpush.msra.mxu0 0.0
  %1395 = vmatpush.msra.mxu0 0.0
  %1396 = vmatpush.msra.mxu0 0.0
  %1397 = vmatpush.msra.mxu0 0.0
  %1398 = vmatpush.msra.mxu0 0.0
  %1399 = vmatpush.msra.mxu0 0.0
  %1400 = vmatpush.msra.mxu0 0.0
  %1401 = vmatpush.msra.mxu0 0.0
  %1402 = vmatpush.msra.mxu0 0.0
  %1403 = vmatpush.msra.mxu0 0.0
  %1404 = vmatpush.msra.mxu0 %v1110
  %1405 = vmatpush.msra.mxu0 %v1109
  %1406 = vmatmul.f32.gmra.mxu0 %v1388
  %v1407 = vpop.f32.mrf.mxu0
  %v1408 = vadd.f32 0.0, %v1407
  %1409 = vdwg.mxu0
  %v1410 = vadd.f32 %v1385, %v1408
  %v1412 = vsel %vm97, %v1324, 0
  %1414 = vmatpush.msra.mxu0 0.0
  %1415 = vmatpush.msra.mxu0 0.0
  %1416 = vmatpush.msra.mxu0 0.0
  %1417 = vmatpush.msra.mxu0 0.0
  %1418 = vmatpush.msra.mxu0 0.0
  %1419 = vmatpush.msra.mxu0 0.0
  %1420 = vmatpush.msra.mxu0 0.0
  %1421 = vmatpush.msra.mxu0 0.0
  %1422 = vmatpush.msra.mxu0 0.0
  %1423 = vmatpush.msra.mxu0 0.0
  %1424 = vmatpush.msra.mxu0 0.0
  %1425 = vmatpush.msra.mxu0 0.0
  %1426 = vmatpush.msra.mxu0 0.0
  %1427 = vmatpush.msra.mxu0 0.0
  %1428 = vmatpush.msra.mxu0 %v1137
  %1429 = vmatpush.msra.mxu0 %v1136
  %1430 = vmatmul.f32.gmra.mxu0 %v1412
  %v1431 = vpop.f32.mrf.mxu0
  %v1432 = vadd.f32 0.0, %v1431
  %1433 = vdwg.mxu0
  %v1434 = vadd.f32 %v1410, %v1432
  %v1436 = vsel %vm97, %v1327, 0
  %1438 = vmatpush.msra.mxu0 0.0
  %1439 = vmatpush.msra.mxu0 0.0
  %1440 = vmatpush.msra.mxu0 0.0
  %1441 = vmatpush.msra.mxu0 0.0
  %1442 = vmatpush.msra.mxu0 0.0
  %1443 = vmatpush.msra.mxu0 0.0
  %1444 = vmatpush.msra.mxu0 0.0
  %1445 = vmatpush.msra.mxu0 0.0
  %1446 = vmatpush.msra.mxu0 0.0
  %1447 = vmatpush.msra.mxu0 0.0
  %1448 = vmatpush.msra.mxu0 0.0
  %1449 = vmatpush.msra.mxu0 0.0
  %1450 = vmatpush.msra.mxu0 0.0
  %1451 = vmatpush.msra.mxu0 0.0
  %1452 = vmatpush.msra.mxu0 %v1164
  %1453 = vmatpush.msra.mxu0 %v1163
  %1454 = vmatmul.f32.gmra.mxu0 %v1436
  %v1455 = vpop.f32.mrf.mxu0
  %v1456 = vadd.f32 0.0, %v1455
  %1457 = vdwg.mxu0
  %v1458 = vadd.f32 %v1434, %v1456
  %v1460 = vsel %vm97, %v1330, 0
  %1462 = vmatpush.msra.mxu0 0.0
  %1463 = vmatpush.msra.mxu0 0.0
  %1464 = vmatpush.msra.mxu0 0.0
  %1465 = vmatpush.msra.mxu0 0.0
  %1466 = vmatpush.msra.mxu0 0.0
  %1467 = vmatpush.msra.mxu0 0.0
  %1468 = vmatpush.msra.mxu0 0.0
  %1469 = vmatpush.msra.mxu0 0.0
  %1470 = vmatpush.msra.mxu0 0.0
  %1471 = vmatpush.msra.mxu0 0.0
  %1472 = vmatpush.msra.mxu0 0.0
  %1473 = vmatpush.msra.mxu0 0.0
  %1474 = vmatpush.msra.mxu0 0.0
  %1475 = vmatpush.msra.mxu0 0.0
  %1476 = vmatpush.msra.mxu0 %v1191
  %1477 = vmatpush.msra.mxu0 %v1190
  %1478 = vmatmul.f32.gmra.mxu0 %v1460
  %v1479 = vpop.f32.mrf.mxu0
  %v1480 = vadd.f32 0.0, %v1479
  %1481 = vdwg.mxu0
  %v1482 = vadd.f32 %v1458, %v1480
  %v1484 = vsel %vm97, %v1333, 0
  %1486 = vmatpush.msra.mxu0 0.0
  %1487 = vmatpush.msra.mxu0 0.0
  %1488 = vmatpush.msra.mxu0 0.0
  %1489 = vmatpush.msra.mxu0 0.0
  %1490 = vmatpush.msra.mxu0 0.0
  %1491 = vmatpush.msra.mxu0 0.0
  %1492 = vmatpush.msra.mxu0 0.0
  %1493 = vmatpush.msra.mxu0 0.0
  %1494 = vmatpush.msra.mxu0 0.0
  %1495 = vmatpush.msra.mxu0 0.0
  %1496 = vmatpush.msra.mxu0 0.0
  %1497 = vmatpush.msra.mxu0 0.0
  %1498 = vmatpush.msra.mxu0 0.0
  %1499 = vmatpush.msra.mxu0 0.0
  %1500 = vmatpush.msra.mxu0 %v1218
  %1501 = vmatpush.msra.mxu0 %v1217
  %1502 = vmatmul.f32.gmra.mxu0 %v1484
  %v1503 = vpop.f32.mrf.mxu0
  %v1504 = vadd.f32 0.0, %v1503
  %1505 = vdwg.mxu0
  %v1506 = vadd.f32 %v1482, %v1504
  %v1508 = vsel %vm97, %v1336, 0
  %1510 = vmatpush.msra.mxu0 0.0
  %1511 = vmatpush.msra.mxu0 0.0
  %1512 = vmatpush.msra.mxu0 0.0
  %1513 = vmatpush.msra.mxu0 0.0
  %1514 = vmatpush.msra.mxu0 0.0
  %1515 = vmatpush.msra.mxu0 0.0
  %1516 = vmatpush.msra.mxu0 0.0
  %1517 = vmatpush.msra.mxu0 0.0
  %1518 = vmatpush.msra.mxu0 0.0
  %1519 = vmatpush.msra.mxu0 0.0
  %1520 = vmatpush.msra.mxu0 0.0
  %1521 = vmatpush.msra.mxu0 0.0
  %1522 = vmatpush.msra.mxu0 0.0
  %1523 = vmatpush.msra.mxu0 0.0
  %1524 = vmatpush.msra.mxu0 %v1245
  %1525 = vmatpush.msra.mxu0 %v1244
  %1526 = vmatmul.f32.gmra.mxu0 %v1508
  %v1527 = vpop.f32.mrf.mxu0
  %v1528 = vadd.f32 0.0, %v1527
  %1529 = vdwg.mxu0
  %v1530 = vadd.f32 %v1506, %v1528
  %v1532 = vsel %vm97, %v1339, 0
  %1534 = vmatpush.msra.mxu0 0.0
  %1535 = vmatpush.msra.mxu0 0.0
  %1536 = vmatpush.msra.mxu0 0.0
  %1537 = vmatpush.msra.mxu0 0.0
  %1538 = vmatpush.msra.mxu0 0.0
  %1539 = vmatpush.msra.mxu0 0.0
  %1540 = vmatpush.msra.mxu0 0.0
  %1541 = vmatpush.msra.mxu0 0.0
  %1542 = vmatpush.msra.mxu0 0.0
  %1543 = vmatpush.msra.mxu0 0.0
  %1544 = vmatpush.msra.mxu0 0.0
  %1545 = vmatpush.msra.mxu0 0.0
  %1546 = vmatpush.msra.mxu0 0.0
  %1547 = vmatpush.msra.mxu0 0.0
  %1548 = vmatpush.msra.mxu0 %v1272
  %1549 = vmatpush.msra.mxu0 %v1271
  %1550 = vmatmul.f32.gmra.mxu0 %v1532
  %v1551 = vpop.f32.mrf.mxu0
  %v1552 = vadd.f32 0.0, %v1551
  %1553 = vdwg.mxu0
  %v1554 = vadd.f32 %v1530, %v1552
  %v1555 = vsel %vm97, %v1296, 0.0
  %1556 = vadd.xlane.f32.xlu0 %v1555
  %v1557 = vpop.xlane.xlu0 %1556
  %v1558 = vadd.f32 %v1557, 0.0
  %v1559 = vmul.f32 %v1296, %v1296
  %v1560 = vsel %vm97, %v1559, 0.0
  %1561 = vadd.xlane.f32.xlu0 %v1560
  %v1562 = vpop.xlane.xlu0 %1561
  %v1563 = vadd.f32 %v1562, 0.0
  %v1564 = vsel %vm97, %v1554, 0.0
  %1565 = vadd.xlane.f32.xlu0 %v1564
  %v1566 = vpop.xlane.xlu0 %1565
  %v1567 = vadd.f32 %v1558, %v1566
  %v1568 = vmul.f32 %v1554, %v1554
  %v1569 = vsel %vm97, %v1568, 0.0
  %1570 = vadd.xlane.f32.xlu0 %v1569
  %v1571 = vpop.xlane.xlu0 %1570
  %v1572 = vadd.f32 %v1563, %v1571
  %v1573 = vmul.f32 %v1567, %v151
  %v1574 = vmul.f32 %v1572, %v151
  %v1575 = vmul.f32 %v1573, %v1573
  %v1576 = vsub.f32 %v1574, %v1575
  %v1577 = vadd.f32 %v1576, 1e-05
  %v1578 = vrsqrt.pop %v1577
  %v1579 = vmul.f32 %v1578, %v1577
  %v1580 = vmul.f32 %v1579, %v1578
  %v1581 = vmul.f32 0.5, %v1580
  %v1582 = vsub.f32 1.5, %v1581
  %v1583 = vmul.f32 %v1578, %v1582
  %vm1584 = vweird.f32 %v1577
  %vm1585 = vweird.f32 %v1578
  %vm1586 = vmor %vm1584, %vm1585
  %v1587 = vsel %vm1586, %v1578, %v1583
  %1589 = vset.pattern.permute.xlu0 0
  %1590 = vperm.xlu0 %1589, %v1573
  %v1591 = vpop.permute.xlu0 %1590
  %v1593 = vsub.f32 %v1296, %v1591
  %v1594 = vsub.f32 %v1554, %v1591
  %1596 = vset.pattern.permute.xlu0 0
  %1597 = vperm.xlu0 %1596, %v1587
  %v1598 = vpop.permute.xlu0 %1597
  %v1600 = vmul.f32 %v1593, %v1598
  %v1601 = vmul.f32 %v1594, %v1598
  %v1602 = vmax.f32 %v1600, 0.0
  %v1603 = vmax.f32 %v1601, 0.0
  %v1605 = vsel %vm97, %v1602, 0
  %v1608 = vsel %vm97, %v1603, 0
  %1610 = vmatpush.msra.mxu0 0.0
  %1611 = vmatpush.msra.mxu0 0.0
  %1612 = vmatpush.msra.mxu0 0.0
  %1613 = vmatpush.msra.mxu0 0.0
  %1614 = vmatpush.msra.mxu0 0.0
  %1615 = vmatpush.msra.mxu0 0.0
  %1616 = vmatpush.msra.mxu0 0.0
  %1617 = vmatpush.msra.mxu0 0.0
  %1618 = vmatpush.msra.mxu0 0.0
  %1619 = vmatpush.msra.mxu0 0.0
  %1620 = vmatpush.msra.mxu0 0.0
  %1621 = vmatpush.msra.mxu0 0.0
  %1622 = vmatpush.msra.mxu0 0.0
  %1623 = vmatpush.msra.mxu0 0.0
  %1624 = vmatpush.msra.mxu0 %v933
  %1625 = vmatpush.msra.mxu0 %v932
  %1626 = vmatmul.f32.gmra.mxu0 %v1605
  %v1627 = vpop.f32.mrf.mxu0
  %v1628 = vadd.f32 0.0, %v1627
  %1629 = vmatmul.f32.gmra.mxu0 %v1608
  %v1630 = vpop.f32.mrf.mxu0
  %v1631 = vadd.f32 0.0, %v1630
  %1632 = vdwg.mxu0
  %v1633 = vsel %vm97, %v1628, 0.0
  %1634 = vadd.xlane.f32.xlu0 %v1633
  %v1635 = vpop.xlane.xlu0 %1634
  %v1636 = vadd.f32 %v1635, 0.0
  %v1637 = vmul.f32 %v1628, %v1628
  %v1638 = vsel %vm97, %v1637, 0.0
  %1639 = vadd.xlane.f32.xlu0 %v1638
  %v1640 = vpop.xlane.xlu0 %1639
  %v1641 = vadd.f32 %v1640, 0.0
  %v1642 = vsel %vm97, %v1631, 0.0
  %1643 = vadd.xlane.f32.xlu0 %v1642
  %v1644 = vpop.xlane.xlu0 %1643
  %v1645 = vadd.f32 %v1636, %v1644
  %v1646 = vmul.f32 %v1631, %v1631
  %v1647 = vsel %vm97, %v1646, 0.0
  %1648 = vadd.xlane.f32.xlu0 %v1647
  %v1649 = vpop.xlane.xlu0 %1648
  %v1650 = vadd.f32 %v1641, %v1649
  %v1651 = vmul.f32 %v1645, %v151
  %v1652 = vmul.f32 %v1650, %v151
  %v1653 = vmul.f32 %v1651, %v1651
  %v1654 = vsub.f32 %v1652, %v1653
  %v1655 = vadd.f32 %v1654, 1e-05
  %v1656 = vrsqrt.pop %v1655
  %v1657 = vmul.f32 %v1656, %v1655
  %v1658 = vmul.f32 %v1657, %v1656
  %v1659 = vmul.f32 0.5, %v1658
  %v1660 = vsub.f32 1.5, %v1659
  %v1661 = vmul.f32 %v1656, %v1660
  %vm1662 = vweird.f32 %v1655
  %vm1663 = vweird.f32 %v1656
  %vm1664 = vmor %vm1662, %vm1663
  %v1665 = vsel %vm1664, %v1656, %v1661
  %1667 = vset.pattern.permute.xlu0 0
  %1668 = vperm.xlu0 %1667, %v1651
  %v1669 = vpop.permute.xlu0 %1668
  %v1671 = vsub.f32 %v1628, %v1669
  %v1672 = vsub.f32 %v1631, %v1669
  %1674 = vset.pattern.permute.xlu0 0
  %1675 = vperm.xlu0 %1674, %v1665
  %v1676 = vpop.permute.xlu0 %1675
  %v1678 = vmul.f32 %v1671, %v1676
  %v1679 = vmul.f32 %v1672, %v1676
  %v1680 = vadd.f32 %v1678, %v926
  %v1681 = vadd.f32 %v1679, %v927
  %v1682 = vmax.f32 %v1680, 0.0
  %v1683 = vmax.f32 %v1681, 0.0
  %s1684 = scalar_lea.vmem %s4, 32
  %v1685 = vld [vmem:[%s1684] sm:$0xff]
  %v1686 = vld [vmem:[%s1684 + $0x8] sm:$0xff]
  %s1687 = scalar_lea.vmem %s6, 32
  %v1688 = vld [vmem:[%s1687] sm:$0xff]
  %v1689 = vld [vmem:[%s1687 + $0x8] sm:$0xff]
  %v1691 = vsel %vm97, %v1682, 0
  %v1694 = vsel %vm97, %v1683, 0
  %1696 = vmatpush.msra.mxu0 0.0
  %1697 = vmatpush.msra.mxu0 0.0
  %1698 = vmatpush.msra.mxu0 0.0
  %1699 = vmatpush.msra.mxu0 0.0
  %1700 = vmatpush.msra.mxu0 0.0
  %1701 = vmatpush.msra.mxu0 0.0
  %1702 = vmatpush.msra.mxu0 0.0
  %1703 = vmatpush.msra.mxu0 0.0
  %1704 = vmatpush.msra.mxu0 0.0
  %1705 = vmatpush.msra.mxu0 0.0
  %1706 = vmatpush.msra.mxu0 0.0
  %1707 = vmatpush.msra.mxu0 0.0
  %1708 = vmatpush.msra.mxu0 0.0
  %1709 = vmatpush.msra.mxu0 0.0
  %1710 = vmatpush.msra.mxu0 %v1686
  %1711 = vmatpush.msra.mxu0 %v1685
  %1712 = vmatmul.f32.gmra.mxu0 %v1691
  %v1713 = vpop.f32.mrf.mxu0
  %v1714 = vadd.f32 0.0, %v1713
  %1715 = vmatmul.f32.gmra.mxu0 %v1694
  %v1716 = vpop.f32.mrf.mxu0
  %v1717 = vadd.f32 0.0, %v1716
  %1718 = vdwg.mxu0
  %v1719 = vsel %vm97, %v1714, 0.0
  %1720 = vadd.xlane.f32.xlu0 %v1719
  %v1721 = vpop.xlane.xlu0 %1720
  %v1722 = vadd.f32 %v1721, 0.0
  %v1723 = vmul.f32 %v1714, %v1714
  %v1724 = vsel %vm97, %v1723, 0.0
  %1725 = vadd.xlane.f32.xlu0 %v1724
  %v1726 = vpop.xlane.xlu0 %1725
  %v1727 = vadd.f32 %v1726, 0.0
  %v1728 = vsel %vm97, %v1717, 0.0
  %1729 = vadd.xlane.f32.xlu0 %v1728
  %v1730 = vpop.xlane.xlu0 %1729
  %v1731 = vadd.f32 %v1722, %v1730
  %v1732 = vmul.f32 %v1717, %v1717
  %v1733 = vsel %vm97, %v1732, 0.0
  %1734 = vadd.xlane.f32.xlu0 %v1733
  %v1735 = vpop.xlane.xlu0 %1734
  %v1736 = vadd.f32 %v1727, %v1735
  %v1737 = vmul.f32 %v1731, %v151
  %v1738 = vmul.f32 %v1736, %v151
  %v1739 = vmul.f32 %v1737, %v1737
  %v1740 = vsub.f32 %v1738, %v1739
  %v1741 = vadd.f32 %v1740, 1e-05
  %v1742 = vrsqrt.pop %v1741
  %v1743 = vmul.f32 %v1742, %v1741
  %v1744 = vmul.f32 %v1743, %v1742
  %v1745 = vmul.f32 0.5, %v1744
  %v1746 = vsub.f32 1.5, %v1745
  %v1747 = vmul.f32 %v1742, %v1746
  %vm1748 = vweird.f32 %v1741
  %vm1749 = vweird.f32 %v1742
  %vm1750 = vmor %vm1748, %vm1749
  %v1751 = vsel %vm1750, %v1742, %v1747
  %1753 = vset.pattern.permute.xlu0 0
  %1754 = vperm.xlu0 %1753, %v1737
  %v1755 = vpop.permute.xlu0 %1754
  %v1757 = vsub.f32 %v1714, %v1755
  %v1758 = vsub.f32 %v1717, %v1755
  %1760 = vset.pattern.permute.xlu0 0
  %1761 = vperm.xlu0 %1760, %v1751
  %v1762 = vpop.permute.xlu0 %1761
  %v1764 = vmul.f32 %v1757, %v1762
  %v1765 = vmul.f32 %v1758, %v1762
  %v1766 = vmax.f32 %v1764, 0.0
  %v1767 = vmax.f32 %v1765, 0.0
  %1768 = vmatpush.msra.mxu0 0.0
  %1769 = vmatpush.msra.mxu0 0.0
  %1770 = vmatpush.msra.mxu0 0.0
  %1771 = vmatpush.msra.mxu0 0.0
  %1772 = vmatpush.msra.mxu0 0.0
  %1773 = vmatpush.msra.mxu0 0.0
  %1774 = vmatpush.msra.mxu0 0.0
  %1775 = vmatpush.msra.mxu0 0.0
  %1776 = vmatpush.msra.mxu0 0.0
  %1777 = vmatpush.msra.mxu0 0.0
  %1778 = vmatpush.msra.mxu0 0.0
  %1779 = vmatpush.msra.mxu0 0.0
  %1780 = vmatpush.msra.mxu0 0.0
  %1781 = vmatpush.msra.mxu0 0.0
  %1782 = vmatpush.msra.mxu0 0.0
  %1783 = vmatpush.msra.mxu0 %v1766
  %1784 = vmatmul.f32.gmra.mxu0 %v194
  %v1785 = vpop.f32.mrf.mxu0
  %v1786 = vadd.f32 0.0, %v1785
  %1787 = vmatmul.f32.gmra.mxu0 %v197
  %v1788 = vpop.f32.mrf.mxu0
  %v1789 = vadd.f32 0.0, %v1788
  %1790 = vmatmul.f32.gmra.mxu0 %v200
  %v1791 = vpop.f32.mrf.mxu0
  %v1792 = vadd.f32 0.0, %v1791
  %1793 = vmatmul.f32.gmra.mxu0 %v203
  %v1794 = vpop.f32.mrf.mxu0
  %v1795 = vadd.f32 0.0, %v1794
  %1796 = vmatmul.f32.gmra.mxu0 %v206
  %v1797 = vpop.f32.mrf.mxu0
  %v1798 = vadd.f32 0.0, %v1797
  %1799 = vmatmul.f32.gmra.mxu0 %v209
  %v1800 = vpop.f32.mrf.mxu0
  %v1801 = vadd.f32 0.0, %v1800
  %1802 = vmatmul.f32.gmra.mxu0 %v212
  %v1803 = vpop.f32.mrf.mxu0
  %v1804 = vadd.f32 0.0, %v1803
  %1805 = vmatmul.f32.gmra.mxu0 %v215
  %v1806 = vpop.f32.mrf.mxu0
  %v1807 = vadd.f32 0.0, %v1806
  %1808 = vmatmul.f32.gmra.mxu0 %v218
  %v1809 = vpop.f32.mrf.mxu0
  %v1810 = vadd.f32 0.0, %v1809
  %1811 = vdwg.mxu0
  %s1812 = scalar_lea.vmem %s5, 288
  %v1813 = vld [vmem:[%s1812] sm:$0xff]
  %v1814 = vld [vmem:[%s1812 + $0x8] sm:$0xff]
  %s1815 = scalar_lea.vmem %s5, 304
  %v1816 = vld [vmem:[%s1815] sm:$0xff]
  %v1817 = vld [vmem:[%s1815 + $0x8] sm:$0xff]
  %v1819 = vsel %vm97, %v1789, 0
  %1821 = vmatpush.msra.mxu0 0.0
  %1822 = vmatpush.msra.mxu0 0.0
  %1823 = vmatpush.msra.mxu0 0.0
  %1824 = vmatpush.msra.mxu0 0.0
  %1825 = vmatpush.msra.mxu0 0.0
  %1826 = vmatpush.msra.mxu0 0.0
  %1827 = vmatpush.msra.mxu0 0.0
  %1828 = vmatpush.msra.mxu0 0.0
  %1829 = vmatpush.msra.mxu0 0.0
  %1830 = vmatpush.msra.mxu0 0.0
  %1831 = vmatpush.msra.mxu0 0.0
  %1832 = vmatpush.msra.mxu0 0.0
  %1833 = vmatpush.msra.mxu0 0.0
  %1834 = vmatpush.msra.mxu0 0.0
  %1835 = vmatpush.msra.mxu0 %v1817
  %1836 = vmatpush.msra.mxu0 %v1816
  %1837 = vmatmul.f32.gmra.mxu0 %v1819
  %v1838 = vpop.f32.mrf.mxu0
  %v1839 = vadd.f32 0.0, %v1838
  %1840 = vdwg.mxu0
  %v1842 = vsel %vm97, %v1786, 0
  %1844 = vmatpush.msra.mxu0 0.0
  %1845 = vmatpush.msra.mxu0 0.0
  %1846 = vmatpush.msra.mxu0 0.0
  %1847 = vmatpush.msra.mxu0 0.0
  %1848 = vmatpush.msra.mxu0 0.0
  %1849 = vmatpush.msra.mxu0 0.0
  %1850 = vmatpush.msra.mxu0 0.0
  %1851 = vmatpush.msra.mxu0 0.0
  %1852 = vmatpush.msra.mxu0 0.0
  %1853 = vmatpush.msra.mxu0 0.0
  %1854 = vmatpush.msra.mxu0 0.0
  %1855 = vmatpush.msra.mxu0 0.0
  %1856 = vmatpush.msra.mxu0 0.0
  %1857 = vmatpush.msra.mxu0 0.0
  %1858 = vmatpush.msra.mxu0 %v1814
  %1859 = vmatpush.msra.mxu0 %v1813
  %1860 = vmatmul.f32.gmra.mxu0 %v1842
  %v1861 = vpop.f32.mrf.mxu0
  %v1862 = vadd.f32 %v1839, %v1861
  %1863 = vdwg.mxu0
  %s1864 = scalar_lea.vmem %s5, 320
  %v1865 = vld [vmem:[%s1864] sm:$0xff]
  %v1866 = vld [vmem:[%s1864 + $0x8] sm:$0xff]
  %v1868 = vsel %vm97, %v1792, 0
  %1870 = vmatpush.msra.mxu0 0.0
  %1871 = vmatpush.msra.mxu0 0.0
  %1872 = vmatpush.msra.mxu0 0.0
  %1873 = vmatpush.msra.mxu0 0.0
  %1874 = vmatpush.msra.mxu0 0.0
  %1875 = vmatpush.msra.mxu0 0.0
  %1876 = vmatpush.msra.mxu0 0.0
  %1877 = vmatpush.msra.mxu0 0.0
  %1878 = vmatpush.msra.mxu0 0.0
  %1879 = vmatpush.msra.mxu0 0.0
  %1880 = vmatpush.msra.mxu0 0.0
  %1881 = vmatpush.msra.mxu0 0.0
  %1882 = vmatpush.msra.mxu0 0.0
  %1883 = vmatpush.msra.mxu0 0.0
  %1884 = vmatpush.msra.mxu0 %v1866
  %1885 = vmatpush.msra.mxu0 %v1865
  %1886 = vmatmul.f32.gmra.mxu0 %v1868
  %v1887 = vpop.f32.mrf.mxu0
  %v1888 = vadd.f32 0.0, %v1887
  %1889 = vdwg.mxu0
  %v1890 = vadd.f32 %v1862, %v1888
  %s1891 = scalar_lea.vmem %s5, 336
  %v1892 = vld [vmem:[%s1891] sm:$0xff]
  %v1893 = vld [vmem:[%s1891 + $0x8] sm:$0xff]
  %v1895 = vsel %vm97, %v1795, 0
  %1897 = vmatpush.msra.mxu0 0.0
  %1898 = vmatpush.msra.mxu0 0.0
  %1899 = vmatpush.msra.mxu0 0.0
  %1900 = vmatpush.msra.mxu0 0.0
  %1901 = vmatpush.msra.mxu0 0.0
  %1902 = vmatpush.msra.mxu0 0.0
  %1903 = vmatpush.msra.mxu0 0.0
  %1904 = vmatpush.msra.mxu0 0.0
  %1905 = vmatpush.msra.mxu0 0.0
  %1906 = vmatpush.msra.mxu0 0.0
  %1907 = vmatpush.msra.mxu0 0.0
  %1908 = vmatpush.msra.mxu0 0.0
  %1909 = vmatpush.msra.mxu0 0.0
  %1910 = vmatpush.msra.mxu0 0.0
  %1911 = vmatpush.msra.mxu0 %v1893
  %1912 = vmatpush.msra.mxu0 %v1892
  %1913 = vmatmul.f32.gmra.mxu0 %v1895
  %v1914 = vpop.f32.mrf.mxu0
  %v1915 = vadd.f32 0.0, %v1914
  %1916 = vdwg.mxu0
  %v1917 = vadd.f32 %v1890, %v1915
  %s1918 = scalar_lea.vmem %s5, 352
  %v1919 = vld [vmem:[%s1918] sm:$0xff]
  %v1920 = vld [vmem:[%s1918 + $0x8] sm:$0xff]
  %v1922 = vsel %vm97, %v1798, 0
  %1924 = vmatpush.msra.mxu0 0.0
  %1925 = vmatpush.msra.mxu0 0.0
  %1926 = vmatpush.msra.mxu0 0.0
  %1927 = vmatpush.msra.mxu0 0.0
  %1928 = vmatpush.msra.mxu0 0.0
  %1929 = vmatpush.msra.mxu0 0.0
  %1930 = vmatpush.msra.mxu0 0.0
  %1931 = vmatpush.msra.mxu0 0.0
  %1932 = vmatpush.msra.mxu0 0.0
  %1933 = vmatpush.msra.mxu0 0.0
  %1934 = vmatpush.msra.mxu0 0.0
  %1935 = vmatpush.msra.mxu0 0.0
  %1936 = vmatpush.msra.mxu0 0.0
  %1937 = vmatpush.msra.mxu0 0.0
  %1938 = vmatpush.msra.mxu0 %v1920
  %1939 = vmatpush.msra.mxu0 %v1919
  %1940 = vmatmul.f32.gmra.mxu0 %v1922
  %v1941 = vpop.f32.mrf.mxu0
  %v1942 = vadd.f32 0.0, %v1941
  %1943 = vdwg.mxu0
  %v1944 = vadd.f32 %v1917, %v1942
  %s1945 = scalar_lea.vmem %s5, 368
  %v1946 = vld [vmem:[%s1945] sm:$0xff]
  %v1947 = vld [vmem:[%s1945 + $0x8] sm:$0xff]
  %v1949 = vsel %vm97, %v1801, 0
  %1951 = vmatpush.msra.mxu0 0.0
  %1952 = vmatpush.msra.mxu0 0.0
  %1953 = vmatpush.msra.mxu0 0.0
  %1954 = vmatpush.msra.mxu0 0.0
  %1955 = vmatpush.msra.mxu0 0.0
  %1956 = vmatpush.msra.mxu0 0.0
  %1957 = vmatpush.msra.mxu0 0.0
  %1958 = vmatpush.msra.mxu0 0.0
  %1959 = vmatpush.msra.mxu0 0.0
  %1960 = vmatpush.msra.mxu0 0.0
  %1961 = vmatpush.msra.mxu0 0.0
  %1962 = vmatpush.msra.mxu0 0.0
  %1963 = vmatpush.msra.mxu0 0.0
  %1964 = vmatpush.msra.mxu0 0.0
  %1965 = vmatpush.msra.mxu0 %v1947
  %1966 = vmatpush.msra.mxu0 %v1946
  %1967 = vmatmul.f32.gmra.mxu0 %v1949
  %v1968 = vpop.f32.mrf.mxu0
  %v1969 = vadd.f32 0.0, %v1968
  %1970 = vdwg.mxu0
  %v1971 = vadd.f32 %v1944, %v1969
  %s1972 = scalar_lea.vmem %s5, 384
  %v1973 = vld [vmem:[%s1972] sm:$0xff]
  %v1974 = vld [vmem:[%s1972 + $0x8] sm:$0xff]
  %v1976 = vsel %vm97, %v1804, 0
  %1978 = vmatpush.msra.mxu0 0.0
  %1979 = vmatpush.msra.mxu0 0.0
  %1980 = vmatpush.msra.mxu0 0.0
  %1981 = vmatpush.msra.mxu0 0.0
  %1982 = vmatpush.msra.mxu0 0.0
  %1983 = vmatpush.msra.mxu0 0.0
  %1984 = vmatpush.msra.mxu0 0.0
  %1985 = vmatpush.msra.mxu0 0.0
  %1986 = vmatpush.msra.mxu0 0.0
  %1987 = vmatpush.msra.mxu0 0.0
  %1988 = vmatpush.msra.mxu0 0.0
  %1989 = vmatpush.msra.mxu0 0.0
  %1990 = vmatpush.msra.mxu0 0.0
  %1991 = vmatpush.msra.mxu0 0.0
  %1992 = vmatpush.msra.mxu0 %v1974
  %1993 = vmatpush.msra.mxu0 %v1973
  %1994 = vmatmul.f32.gmra.mxu0 %v1976
  %v1995 = vpop.f32.mrf.mxu0
  %v1996 = vadd.f32 0.0, %v1995
  %1997 = vdwg.mxu0
  %v1998 = vadd.f32 %v1971, %v1996
  %s1999 = scalar_lea.vmem %s5, 400
  %v2000 = vld [vmem:[%s1999] sm:$0xff]
  %v2001 = vld [vmem:[%s1999 + $0x8] sm:$0xff]
  %v2003 = vsel %vm97, %v1807, 0
  %2005 = vmatpush.msra.mxu0 0.0
  %2006 = vmatpush.msra.mxu0 0.0
  %2007 = vmatpush.msra.mxu0 0.0
  %2008 = vmatpush.msra.mxu0 0.0
  %2009 = vmatpush.msra.mxu0 0.0
  %2010 = vmatpush.msra.mxu0 0.0
  %2011 = vmatpush.msra.mxu0 0.0
  %2012 = vmatpush.msra.mxu0 0.0
  %2013 = vmatpush.msra.mxu0 0.0
  %2014 = vmatpush.msra.mxu0 0.0
  %2015 = vmatpush.msra.mxu0 0.0
  %2016 = vmatpush.msra.mxu0 0.0
  %2017 = vmatpush.msra.mxu0 0.0
  %2018 = vmatpush.msra.mxu0 0.0
  %2019 = vmatpush.msra.mxu0 %v2001
  %2020 = vmatpush.msra.mxu0 %v2000
  %2021 = vmatmul.f32.gmra.mxu0 %v2003
  %v2022 = vpop.f32.mrf.mxu0
  %v2023 = vadd.f32 0.0, %v2022
  %2024 = vdwg.mxu0
  %v2025 = vadd.f32 %v1998, %v2023
  %s2026 = scalar_lea.vmem %s5, 416
  %v2027 = vld [vmem:[%s2026] sm:$0xff]
  %v2028 = vld [vmem:[%s2026 + $0x8] sm:$0xff]
  %v2030 = vsel %vm97, %v1810, 0
  %2032 = vmatpush.msra.mxu0 0.0
  %2033 = vmatpush.msra.mxu0 0.0
  %2034 = vmatpush.msra.mxu0 0.0
  %2035 = vmatpush.msra.mxu0 0.0
  %2036 = vmatpush.msra.mxu0 0.0
  %2037 = vmatpush.msra.mxu0 0.0
  %2038 = vmatpush.msra.mxu0 0.0
  %2039 = vmatpush.msra.mxu0 0.0
  %2040 = vmatpush.msra.mxu0 0.0
  %2041 = vmatpush.msra.mxu0 0.0
  %2042 = vmatpush.msra.mxu0 0.0
  %2043 = vmatpush.msra.mxu0 0.0
  %2044 = vmatpush.msra.mxu0 0.0
  %2045 = vmatpush.msra.mxu0 0.0
  %2046 = vmatpush.msra.mxu0 %v2028
  %2047 = vmatpush.msra.mxu0 %v2027
  %2048 = vmatmul.f32.gmra.mxu0 %v2030
  %v2049 = vpop.f32.mrf.mxu0
  %v2050 = vadd.f32 0.0, %v2049
  %2051 = vdwg.mxu0
  %v2052 = vadd.f32 %v2025, %v2050
  %2053 = vmatpush.msra.mxu0 0.0
  %2054 = vmatpush.msra.mxu0 0.0
  %2055 = vmatpush.msra.mxu0 0.0
  %2056 = vmatpush.msra.mxu0 0.0
  %2057 = vmatpush.msra.mxu0 0.0
  %2058 = vmatpush.msra.mxu0 0.0
  %2059 = vmatpush.msra.mxu0 0.0
  %2060 = vmatpush.msra.mxu0 0.0
  %2061 = vmatpush.msra.mxu0 0.0
  %2062 = vmatpush.msra.mxu0 0.0
  %2063 = vmatpush.msra.mxu0 0.0
  %2064 = vmatpush.msra.mxu0 0.0
  %2065 = vmatpush.msra.mxu0 0.0
  %2066 = vmatpush.msra.mxu0 0.0
  %2067 = vmatpush.msra.mxu0 0.0
  %2068 = vmatpush.msra.mxu0 %v1767
  %2069 = vmatmul.f32.gmra.mxu0 %v515
  %v2070 = vpop.f32.mrf.mxu0
  %v2071 = vadd.f32 0.0, %v2070
  %2072 = vmatmul.f32.gmra.mxu0 %v518
  %v2073 = vpop.f32.mrf.mxu0
  %v2074 = vadd.f32 0.0, %v2073
  %2075 = vmatmul.f32.gmra.mxu0 %v521
  %v2076 = vpop.f32.mrf.mxu0
  %v2077 = vadd.f32 0.0, %v2076
  %2078 = vmatmul.f32.gmra.mxu0 %v524
  %v2079 = vpop.f32.mrf.mxu0
  %v2080 = vadd.f32 0.0, %v2079
  %2081 = vmatmul.f32.gmra.mxu0 %v527
  %v2082 = vpop.f32.mrf.mxu0
  %v2083 = vadd.f32 0.0, %v2082
  %2084 = vmatmul.f32.gmra.mxu0 %v530
  %v2085 = vpop.f32.mrf.mxu0
  %v2086 = vadd.f32 0.0, %v2085
  %2087 = vmatmul.f32.gmra.mxu0 %v533
  %v2088 = vpop.f32.mrf.mxu0
  %v2089 = vadd.f32 0.0, %v2088
  %2090 = vmatmul.f32.gmra.mxu0 %v536
  %v2091 = vpop.f32.mrf.mxu0
  %v2092 = vadd.f32 0.0, %v2091
  %2093 = vmatmul.f32.gmra.mxu0 %v539
  %v2094 = vpop.f32.mrf.mxu0
  %v2095 = vadd.f32 0.0, %v2094
  %2096 = vdwg.mxu0
  %v2098 = vsel %vm97, %v2074, 0
  %2100 = vmatpush.msra.mxu0 0.0
  %2101 = vmatpush.msra.mxu0 0.0
  %2102 = vmatpush.msra.mxu0 0.0
  %2103 = vmatpush.msra.mxu0 0.0
  %2104 = vmatpush.msra.mxu0 0.0
  %2105 = vmatpush.msra.mxu0 0.0
  %2106 = vmatpush.msra.mxu0 0.0
  %2107 = vmatpush.msra.mxu0 0.0
  %2108 = vmatpush.msra.mxu0 0.0
  %2109 = vmatpush.msra.mxu0 0.0
  %2110 = vmatpush.msra.mxu0 0.0
  %2111 = vmatpush.msra.mxu0 0.0
  %2112 = vmatpush.msra.mxu0 0.0
  %2113 = vmatpush.msra.mxu0 0.0
  %2114 = vmatpush.msra.mxu0 %v1817
  %2115 = vmatpush.msra.mxu0 %v1816
  %2116 = vmatmul.f32.gmra.mxu0 %v2098
  %v2117 = vpop.f32.mrf.mxu0
  %v2118 = vadd.f32 0.0, %v2117
  %2119 = vdwg.mxu0
  %v2121 = vsel %vm97, %v2071, 0
  %2123 = vmatpush.msra.mxu0 0.0
  %2124 = vmatpush.msra.mxu0 0.0
  %2125 = vmatpush.msra.mxu0 0.0
  %2126 = vmatpush.msra.mxu0 0.0
  %2127 = vmatpush.msra.mxu0 0.0
  %2128 = vmatpush.msra.mxu0 0.0
  %2129 = vmatpush.msra.mxu0 0.0
  %2130 = vmatpush.msra.mxu0 0.0
  %2131 = vmatpush.msra.mxu0 0.0
  %2132 = vmatpush.msra.mxu0 0.0
  %2133 = vmatpush.msra.mxu0 0.0
  %2134 = vmatpush.msra.mxu0 0.0
  %2135 = vmatpush.msra.mxu0 0.0
  %2136 = vmatpush.msra.mxu0 0.0
  %2137 = vmatpush.msra.mxu0 %v1814
  %2138 = vmatpush.msra.mxu0 %v1813
  %2139 = vmatmul.f32.gmra.mxu0 %v2121
  %v2140 = vpop.f32.mrf.mxu0
  %v2141 = vadd.f32 %v2118, %v2140
  %2142 = vdwg.mxu0
  %v2144 = vsel %vm97, %v2077, 0
  %2146 = vmatpush.msra.mxu0 0.0
  %2147 = vmatpush.msra.mxu0 0.0
  %2148 = vmatpush.msra.mxu0 0.0
  %2149 = vmatpush.msra.mxu0 0.0
  %2150 = vmatpush.msra.mxu0 0.0
  %2151 = vmatpush.msra.mxu0 0.0
  %2152 = vmatpush.msra.mxu0 0.0
  %2153 = vmatpush.msra.mxu0 0.0
  %2154 = vmatpush.msra.mxu0 0.0
  %2155 = vmatpush.msra.mxu0 0.0
  %2156 = vmatpush.msra.mxu0 0.0
  %2157 = vmatpush.msra.mxu0 0.0
  %2158 = vmatpush.msra.mxu0 0.0
  %2159 = vmatpush.msra.mxu0 0.0
  %2160 = vmatpush.msra.mxu0 %v1866
  %2161 = vmatpush.msra.mxu0 %v1865
  %2162 = vmatmul.f32.gmra.mxu0 %v2144
  %v2163 = vpop.f32.mrf.mxu0
  %v2164 = vadd.f32 0.0, %v2163
  %2165 = vdwg.mxu0
  %v2166 = vadd.f32 %v2141, %v2164
  %v2168 = vsel %vm97, %v2080, 0
  %2170 = vmatpush.msra.mxu0 0.0
  %2171 = vmatpush.msra.mxu0 0.0
  %2172 = vmatpush.msra.mxu0 0.0
  %2173 = vmatpush.msra.mxu0 0.0
  %2174 = vmatpush.msra.mxu0 0.0
  %2175 = vmatpush.msra.mxu0 0.0
  %2176 = vmatpush.msra.mxu0 0.0
  %2177 = vmatpush.msra.mxu0 0.0
  %2178 = vmatpush.msra.mxu0 0.0
  %2179 = vmatpush.msra.mxu0 0.0
  %2180 = vmatpush.msra.mxu0 0.0
  %2181 = vmatpush.msra.mxu0 0.0
  %2182 = vmatpush.msra.mxu0 0.0
  %2183 = vmatpush.msra.mxu0 0.0
  %2184 = vmatpush.msra.mxu0 %v1893
  %2185 = vmatpush.msra.mxu0 %v1892
  %2186 = vmatmul.f32.gmra.mxu0 %v2168
  %v2187 = vpop.f32.mrf.mxu0
  %v2188 = vadd.f32 0.0, %v2187
  %2189 = vdwg.mxu0
  %v2190 = vadd.f32 %v2166, %v2188
  %v2192 = vsel %vm97, %v2083, 0
  %2194 = vmatpush.msra.mxu0 0.0
  %2195 = vmatpush.msra.mxu0 0.0
  %2196 = vmatpush.msra.mxu0 0.0
  %2197 = vmatpush.msra.mxu0 0.0
  %2198 = vmatpush.msra.mxu0 0.0
  %2199 = vmatpush.msra.mxu0 0.0
  %2200 = vmatpush.msra.mxu0 0.0
  %2201 = vmatpush.msra.mxu0 0.0
  %2202 = vmatpush.msra.mxu0 0.0
  %2203 = vmatpush.msra.mxu0 0.0
  %2204 = vmatpush.msra.mxu0 0.0
  %2205 = vmatpush.msra.mxu0 0.0
  %2206 = vmatpush.msra.mxu0 0.0
  %2207 = vmatpush.msra.mxu0 0.0
  %2208 = vmatpush.msra.mxu0 %v1920
  %2209 = vmatpush.msra.mxu0 %v1919
  %2210 = vmatmul.f32.gmra.mxu0 %v2192
  %v2211 = vpop.f32.mrf.mxu0
  %v2212 = vadd.f32 0.0, %v2211
  %2213 = vdwg.mxu0
  %v2214 = vadd.f32 %v2190, %v2212
  %v2216 = vsel %vm97, %v2086, 0
  %2218 = vmatpush.msra.mxu0 0.0
  %2219 = vmatpush.msra.mxu0 0.0
  %2220 = vmatpush.msra.mxu0 0.0
  %2221 = vmatpush.msra.mxu0 0.0
  %2222 = vmatpush.msra.mxu0 0.0
  %2223 = vmatpush.msra.mxu0 0.0
  %2224 = vmatpush.msra.mxu0 0.0
  %2225 = vmatpush.msra.mxu0 0.0
  %2226 = vmatpush.msra.mxu0 0.0
  %2227 = vmatpush.msra.mxu0 0.0
  %2228 = vmatpush.msra.mxu0 0.0
  %2229 = vmatpush.msra.mxu0 0.0
  %2230 = vmatpush.msra.mxu0 0.0
  %2231 = vmatpush.msra.mxu0 0.0
  %2232 = vmatpush.msra.mxu0 %v1947
  %2233 = vmatpush.msra.mxu0 %v1946
  %2234 = vmatmul.f32.gmra.mxu0 %v2216
  %v2235 = vpop.f32.mrf.mxu0
  %v2236 = vadd.f32 0.0, %v2235
  %2237 = vdwg.mxu0
  %v2238 = vadd.f32 %v2214, %v2236
  %v2240 = vsel %vm97, %v2089, 0
  %2242 = vmatpush.msra.mxu0 0.0
  %2243 = vmatpush.msra.mxu0 0.0
  %2244 = vmatpush.msra.mxu0 0.0
  %2245 = vmatpush.msra.mxu0 0.0
  %2246 = vmatpush.msra.mxu0 0.0
  %2247 = vmatpush.msra.mxu0 0.0
  %2248 = vmatpush.msra.mxu0 0.0
  %2249 = vmatpush.msra.mxu0 0.0
  %2250 = vmatpush.msra.mxu0 0.0
  %2251 = vmatpush.msra.mxu0 0.0
  %2252 = vmatpush.msra.mxu0 0.0
  %2253 = vmatpush.msra.mxu0 0.0
  %2254 = vmatpush.msra.mxu0 0.0
  %2255 = vmatpush.msra.mxu0 0.0
  %2256 = vmatpush.msra.mxu0 %v1974
  %2257 = vmatpush.msra.mxu0 %v1973
  %2258 = vmatmul.f32.gmra.mxu0 %v2240
  %v2259 = vpop.f32.mrf.mxu0
  %v2260 = vadd.f32 0.0, %v2259
  %2261 = vdwg.mxu0
  %v2262 = vadd.f32 %v2238, %v2260
  %v2264 = vsel %vm97, %v2092, 0
  %2266 = vmatpush.msra.mxu0 0.0
  %2267 = vmatpush.msra.mxu0 0.0
  %2268 = vmatpush.msra.mxu0 0.0
  %2269 = vmatpush.msra.mxu0 0.0
  %2270 = vmatpush.msra.mxu0 0.0
  %2271 = vmatpush.msra.mxu0 0.0
  %2272 = vmatpush.msra.mxu0 0.0
  %2273 = vmatpush.msra.mxu0 0.0
  %2274 = vmatpush.msra.mxu0 0.0
  %2275 = vmatpush.msra.mxu0 0.0
  %2276 = vmatpush.msra.mxu0 0.0
  %2277 = vmatpush.msra.mxu0 0.0
  %2278 = vmatpush.msra.mxu0 0.0
  %2279 = vmatpush.msra.mxu0 0.0
  %2280 = vmatpush.msra.mxu0 %v2001
  %2281 = vmatpush.msra.mxu0 %v2000
  %2282 = vmatmul.f32.gmra.mxu0 %v2264
  %v2283 = vpop.f32.mrf.mxu0
  %v2284 = vadd.f32 0.0, %v2283
  %2285 = vdwg.mxu0
  %v2286 = vadd.f32 %v2262, %v2284
  %v2288 = vsel %vm97, %v2095, 0
  %2290 = vmatpush.msra.mxu0 0.0
  %2291 = vmatpush.msra.mxu0 0.0
  %2292 = vmatpush.msra.mxu0 0.0
  %2293 = vmatpush.msra.mxu0 0.0
  %2294 = vmatpush.msra.mxu0 0.0
  %2295 = vmatpush.msra.mxu0 0.0
  %2296 = vmatpush.msra.mxu0 0.0
  %2297 = vmatpush.msra.mxu0 0.0
  %2298 = vmatpush.msra.mxu0 0.0
  %2299 = vmatpush.msra.mxu0 0.0
  %2300 = vmatpush.msra.mxu0 0.0
  %2301 = vmatpush.msra.mxu0 0.0
  %2302 = vmatpush.msra.mxu0 0.0
  %2303 = vmatpush.msra.mxu0 0.0
  %2304 = vmatpush.msra.mxu0 %v2028
  %2305 = vmatpush.msra.mxu0 %v2027
  %2306 = vmatmul.f32.gmra.mxu0 %v2288
  %v2307 = vpop.f32.mrf.mxu0
  %v2308 = vadd.f32 0.0, %v2307
  %2309 = vdwg.mxu0
  %v2310 = vadd.f32 %v2286, %v2308
  %v2311 = vsel %vm97, %v2052, 0.0
  %2312 = vadd.xlane.f32.xlu0 %v2311
  %v2313 = vpop.xlane.xlu0 %2312
  %v2314 = vadd.f32 %v2313, 0.0
  %v2315 = vmul.f32 %v2052, %v2052
  %v2316 = vsel %vm97, %v2315, 0.0
  %2317 = vadd.xlane.f32.xlu0 %v2316
  %v2318 = vpop.xlane.xlu0 %2317
  %v2319 = vadd.f32 %v2318, 0.0
  %v2320 = vsel %vm97, %v2310, 0.0
  %2321 = vadd.xlane.f32.xlu0 %v2320
  %v2322 = vpop.xlane.xlu0 %2321
  %v2323 = vadd.f32 %v2314, %v2322
  %v2324 = vmul.f32 %v2310, %v2310
  %v2325 = vsel %vm97, %v2324, 0.0
  %2326 = vadd.xlane.f32.xlu0 %v2325
  %v2327 = vpop.xlane.xlu0 %2326
  %v2328 = vadd.f32 %v2319, %v2327
  %v2329 = vmul.f32 %v2323, %v151
  %v2330 = vmul.f32 %v2328, %v151
  %v2331 = vmul.f32 %v2329, %v2329
  %v2332 = vsub.f32 %v2330, %v2331
  %v2333 = vadd.f32 %v2332, 1e-05
  %v2334 = vrsqrt.pop %v2333
  %v2335 = vmul.f32 %v2334, %v2333
  %v2336 = vmul.f32 %v2335, %v2334
  %v2337 = vmul.f32 0.5, %v2336
  %v2338 = vsub.f32 1.5, %v2337
  %v2339 = vmul.f32 %v2334, %v2338
  %vm2340 = vweird.f32 %v2333
  %vm2341 = vweird.f32 %v2334
  %vm2342 = vmor %vm2340, %vm2341
  %v2343 = vsel %vm2342, %v2334, %v2339
  %2345 = vset.pattern.permute.xlu0 0
  %2346 = vperm.xlu0 %2345, %v2329
  %v2347 = vpop.permute.xlu0 %2346
  %v2349 = vsub.f32 %v2052, %v2347
  %v2350 = vsub.f32 %v2310, %v2347
  %2352 = vset.pattern.permute.xlu0 0
  %2353 = vperm.xlu0 %2352, %v2343
  %v2354 = vpop.permute.xlu0 %2353
  %v2356 = vmul.f32 %v2349, %v2354
  %v2357 = vmul.f32 %v2350, %v2354
  %v2358 = vmax.f32 %v2356, 0.0
  %v2359 = vmax.f32 %v2357, 0.0
  %v2361 = vsel %vm97, %v2358, 0
  %v2364 = vsel %vm97, %v2359, 0
  %2366 = vmatpush.msra.mxu0 0.0
  %2367 = vmatpush.msra.mxu0 0.0
  %2368 = vmatpush.msra.mxu0 0.0
  %2369 = vmatpush.msra.mxu0 0.0
  %2370 = vmatpush.msra.mxu0 0.0
  %2371 = vmatpush.msra.mxu0 0.0
  %2372 = vmatpush.msra.mxu0 0.0
  %2373 = vmatpush.msra.mxu0 0.0
  %2374 = vmatpush.msra.mxu0 0.0
  %2375 = vmatpush.msra.mxu0 0.0
  %2376 = vmatpush.msra.mxu0 0.0
  %2377 = vmatpush.msra.mxu0 0.0
  %2378 = vmatpush.msra.mxu0 0.0
  %2379 = vmatpush.msra.mxu0 0.0
  %2380 = vmatpush.msra.mxu0 %v1689
  %2381 = vmatpush.msra.mxu0 %v1688
  %2382 = vmatmul.f32.gmra.mxu0 %v2361
  %v2383 = vpop.f32.mrf.mxu0
  %v2384 = vadd.f32 0.0, %v2383
  %2385 = vmatmul.f32.gmra.mxu0 %v2364
  %v2386 = vpop.f32.mrf.mxu0
  %v2387 = vadd.f32 0.0, %v2386
  %2388 = vdwg.mxu0
  %v2389 = vsel %vm97, %v2384, 0.0
  %2390 = vadd.xlane.f32.xlu0 %v2389
  %v2391 = vpop.xlane.xlu0 %2390
  %v2392 = vadd.f32 %v2391, 0.0
  %v2393 = vmul.f32 %v2384, %v2384
  %v2394 = vsel %vm97, %v2393, 0.0
  %2395 = vadd.xlane.f32.xlu0 %v2394
  %v2396 = vpop.xlane.xlu0 %2395
  %v2397 = vadd.f32 %v2396, 0.0
  %v2398 = vsel %vm97, %v2387, 0.0
  %2399 = vadd.xlane.f32.xlu0 %v2398
  %v2400 = vpop.xlane.xlu0 %2399
  %v2401 = vadd.f32 %v2392, %v2400
  %v2402 = vmul.f32 %v2387, %v2387
  %v2403 = vsel %vm97, %v2402, 0.0
  %2404 = vadd.xlane.f32.xlu0 %v2403
  %v2405 = vpop.xlane.xlu0 %2404
  %v2406 = vadd.f32 %v2397, %v2405
  %v2407 = vmul.f32 %v2401, %v151
  %v2408 = vmul.f32 %v2406, %v151
  %v2409 = vmul.f32 %v2407, %v2407
  %v2410 = vsub.f32 %v2408, %v2409
  %v2411 = vadd.f32 %v2410, 1e-05
  %v2412 = vrsqrt.pop %v2411
  %v2413 = vmul.f32 %v2412, %v2411
  %v2414 = vmul.f32 %v2413, %v2412
  %v2415 = vmul.f32 0.5, %v2414
  %v2416 = vsub.f32 1.5, %v2415
  %v2417 = vmul.f32 %v2412, %v2416
  %vm2418 = vweird.f32 %v2411
  %vm2419 = vweird.f32 %v2412
  %vm2420 = vmor %vm2418, %vm2419
  %v2421 = vsel %vm2420, %v2412, %v2417
  %2423 = vset.pattern.permute.xlu0 0
  %2424 = vperm.xlu0 %2423, %v2407
  %v2425 = vpop.permute.xlu0 %2424
  %v2427 = vsub.f32 %v2384, %v2425
  %v2428 = vsub.f32 %v2387, %v2425
  %2430 = vset.pattern.permute.xlu0 0
  %2431 = vperm.xlu0 %2430, %v2421
  %v2432 = vpop.permute.xlu0 %2431
  %v2434 = vmul.f32 %v2427, %v2432
  %v2435 = vmul.f32 %v2428, %v2432
  %v2436 = vadd.f32 %v2434, %v1682
  %v2437 = vadd.f32 %v2435, %v1683
  %v2438 = vmax.f32 %v2436, 0.0
  %v2439 = vmax.f32 %v2437, 0.0
  %v2440 = vld [vmem:[%s2] sm:$0xff]
  %v2441 = vld [vmem:[%s2 + $0x8] sm:$0xff]
  %v2442 = vld [vmem:[%s2 + $0x10] sm:$0xff]
  %v2443 = vld [vmem:[%s2 + $0x18] sm:$0xff]
  %v2444 = vld [vmem:[%s2 + $0x20] sm:$0xff]
  %v2445 = vld [vmem:[%s2 + $0x28] sm:$0xff]
  %v2446 = vld [vmem:[%s2 + $0x30] sm:$0xff]
  %v2447 = vld [vmem:[%s2 + $0x38] sm:$0xff]
  %v2449 = vsel %vm192, %v2440, 0
  %v2452 = vsel %vm192, %v2441, 0
  %v2455 = vsel %vm192, %v2442, 0
  %v2458 = vsel %vm192, %v2443, 0
  %v2461 = vsel %vm192, %v2444, 0
  %v2464 = vsel %vm192, %v2445, 0
  %v2467 = vsel %vm192, %v2446, 0
  %v2470 = vsel %vm192, %v2447, 0
  %2472 = vmatpush.msra.mxu0 0.0
  %2473 = vmatpush.msra.mxu0 0.0
  %2474 = vmatpush.msra.mxu0 0.0
  %2475 = vmatpush.msra.mxu0 0.0
  %2476 = vmatpush.msra.mxu0 0.0
  %2477 = vmatpush.msra.mxu0 0.0
  %2478 = vmatpush.msra.mxu0 0.0
  %2479 = vmatpush.msra.mxu0 0.0
  %2480 = vmatpush.msra.mxu0 0.0
  %2481 = vmatpush.msra.mxu0 0.0
  %2482 = vmatpush.msra.mxu0 0.0
  %2483 = vmatpush.msra.mxu0 0.0
  %2484 = vmatpush.msra.mxu0 0.0
  %2485 = vmatpush.msra.mxu0 0.0
  %2486 = vmatpush.msra.mxu0 0.0
  %2487 = vmatpush.msra.mxu0 %v2438
  %2488 = vmatmul.f32.gmra.mxu0 %v2449
  %v2489 = vpop.f32.mrf.mxu0
  %v2490 = vadd.f32 0.0, %v2489
  %2491 = vmatmul.f32.gmra.mxu0 %v2452
  %v2492 = vpop.f32.mrf.mxu0
  %v2493 = vadd.f32 0.0, %v2492
  %2494 = vmatmul.f32.gmra.mxu0 %v2455
  %v2495 = vpop.f32.mrf.mxu0
  %v2496 = vadd.f32 0.0, %v2495
  %2497 = vmatmul.f32.gmra.mxu0 %v2458
  %v2498 = vpop.f32.mrf.mxu0
  %v2499 = vadd.f32 0.0, %v2498
  %2500 = vmatmul.f32.gmra.mxu0 %v2461
  %v2501 = vpop.f32.mrf.mxu0
  %v2502 = vadd.f32 0.0, %v2501
  %2503 = vmatmul.f32.gmra.mxu0 %v2464
  %v2504 = vpop.f32.mrf.mxu0
  %v2505 = vadd.f32 0.0, %v2504
  %2506 = vmatmul.f32.gmra.mxu0 %v2467
  %v2507 = vpop.f32.mrf.mxu0
  %v2508 = vadd.f32 0.0, %v2507
  %2509 = vmatmul.f32.gmra.mxu0 %v2470
  %v2510 = vpop.f32.mrf.mxu0
  %v2511 = vadd.f32 0.0, %v2510
  %2512 = vdwg.mxu0
  %2513 = vst.msk [vmem:[%s7] sm:$0xff] %vm97, %v2490
  %2514 = vst.msk [vmem:[%s7 + $0x8] sm:$0xff] %vm97, %v2493
  %2515 = vst.msk [vmem:[%s7 + $0x10] sm:$0xff] %vm97, %v2496
  %2516 = vst.msk [vmem:[%s7 + $0x18] sm:$0xff] %vm97, %v2499
  %2517 = vst.msk [vmem:[%s7 + $0x20] sm:$0xff] %vm97, %v2502
  %2518 = vst.msk [vmem:[%s7 + $0x28] sm:$0xff] %vm97, %v2505
  %2519 = vst.msk [vmem:[%s7 + $0x30] sm:$0xff] %vm97, %v2508
  %2520 = vst.msk [vmem:[%s7 + $0x38] sm:$0xff] %vm97, %v2511
  %s2521 = scalar_lea.vmem %s2, 64
  %v2522 = vld [vmem:[%s2521] sm:$0xff]
  %v2523 = vld [vmem:[%s2521 + $0x8] sm:$0xff]
  %v2524 = vld [vmem:[%s2521 + $0x10] sm:$0xff]
  %v2525 = vld [vmem:[%s2521 + $0x18] sm:$0xff]
  %v2526 = vld [vmem:[%s2521 + $0x20] sm:$0xff]
  %v2527 = vld [vmem:[%s2521 + $0x28] sm:$0xff]
  %v2528 = vld [vmem:[%s2521 + $0x30] sm:$0xff]
  %v2529 = vld [vmem:[%s2521 + $0x38] sm:$0xff]
  %v2531 = vsel %vm192, %v2522, 0
  %v2534 = vsel %vm192, %v2523, 0
  %v2537 = vsel %vm192, %v2524, 0
  %v2540 = vsel %vm192, %v2525, 0
  %v2543 = vsel %vm192, %v2526, 0
  %v2546 = vsel %vm192, %v2527, 0
  %v2549 = vsel %vm192, %v2528, 0
  %v2552 = vsel %vm192, %v2529, 0
  %2554 = vmatpush.msra.mxu0 0.0
  %2555 = vmatpush.msra.mxu0 0.0
  %2556 = vmatpush.msra.mxu0 0.0
  %2557 = vmatpush.msra.mxu0 0.0
  %2558 = vmatpush.msra.mxu0 0.0
  %2559 = vmatpush.msra.mxu0 0.0
  %2560 = vmatpush.msra.mxu0 0.0
  %2561 = vmatpush.msra.mxu0 0.0
  %2562 = vmatpush.msra.mxu0 0.0
  %2563 = vmatpush.msra.mxu0 0.0
  %2564 = vmatpush.msra.mxu0 0.0
  %2565 = vmatpush.msra.mxu0 0.0
  %2566 = vmatpush.msra.mxu0 0.0
  %2567 = vmatpush.msra.mxu0 0.0
  %2568 = vmatpush.msra.mxu0 0.0
  %2569 = vmatpush.msra.mxu0 %v2439
  %2570 = vmatmul.f32.gmra.mxu0 %v2531
  %v2571 = vpop.f32.mrf.mxu0
  %v2572 = vadd.f32 0.0, %v2571
  %2573 = vmatmul.f32.gmra.mxu0 %v2534
  %v2574 = vpop.f32.mrf.mxu0
  %v2575 = vadd.f32 0.0, %v2574
  %2576 = vmatmul.f32.gmra.mxu0 %v2537
  %v2577 = vpop.f32.mrf.mxu0
  %v2578 = vadd.f32 0.0, %v2577
  %2579 = vmatmul.f32.gmra.mxu0 %v2540
  %v2580 = vpop.f32.mrf.mxu0
  %v2581 = vadd.f32 0.0, %v2580
  %2582 = vmatmul.f32.gmra.mxu0 %v2543
  %v2583 = vpop.f32.mrf.mxu0
  %v2584 = vadd.f32 0.0, %v2583
  %2585 = vmatmul.f32.gmra.mxu0 %v2546
  %v2586 = vpop.f32.mrf.mxu0
  %v2587 = vadd.f32 0.0, %v2586
  %2588 = vmatmul.f32.gmra.mxu0 %v2549
  %v2589 = vpop.f32.mrf.mxu0
  %v2590 = vadd.f32 0.0, %v2589
  %2591 = vmatmul.f32.gmra.mxu0 %v2552
  %v2592 = vpop.f32.mrf.mxu0
  %v2593 = vadd.f32 0.0, %v2592
  %2594 = vdwg.mxu0
  %s2595 = scalar_lea.vmem %s7, 64
  %2596 = vst.msk [vmem:[%s2595] sm:$0xff] %vm97, %v2572
  %2597 = vst.msk [vmem:[%s2595 + $0x8] sm:$0xff] %vm97, %v2575
  %2598 = vst.msk [vmem:[%s2595 + $0x10] sm:$0xff] %vm97, %v2578
  %2599 = vst.msk [vmem:[%s2595 + $0x18] sm:$0xff] %vm97, %v2581
  %2600 = vst.msk [vmem:[%s2595 + $0x20] sm:$0xff] %vm97, %v2584
  %2601 = vst.msk [vmem:[%s2595 + $0x28] sm:$0xff] %vm97, %v2587
  %2602 = vst.msk [vmem:[%s2595 + $0x30] sm:$0xff] %vm97, %v2590
  %2603 = vst.msk [vmem:[%s2595 + $0x38] sm:$0xff] %vm97, %v2593
  // Predicated region
  $region30: #{hgblock_forward.2} parent=0 // pred_check
    _
  $region31: #{hgblock_forward.2} parent=0 // pred_check_branch
    %2605 = sbr.rel (0) target = $region33
  $region32: #{hgblock_forward.2} parent=0 // pred_region
    _
  $region33: #{hgblock_forward.2} parent=0 // pred_fallthru
    _
  // Predicated region
  $region34: #{hgblock_forward.2} parent=0 // pred_check
    _
  $region35: #{hgblock_forward.2} parent=0 // pred_check_branch
    %2607 = sbr.rel (0) target = $region37
  $region36: #{hgblock_forward.2} parent=0 // pred_region
    _
  $region37: #{hgblock_forward.2} parent=0 // pred_fallthru
    _

</llo_original>
